<compile_context>
chip_gen: v6e
topology: v6e:2x2x1
jax: 0.10.0
libtpu: 0.0.40
codegen_flags: <defaults>
</compile_context>

<pallas_src>
import jax
import jax.numpy as jnp
from jax import lax
from jax.experimental import pallas as pl
from jax.experimental.pallas import tpu as pltpu


def _round_up(v, m):
    return (v + m - 1) // m * m


def clr_block_forward(x_nchw, w_conv, b_conv, w_dw, *, mxu_dtype=jnp.float32):
    """CLRBlock forward: depthwise clr_conv(dense original_conv(x)).

    x_nchw: (N, Cin, H, W); w_conv: (Cout, Cin, K, K) [OIHW]; b_conv: (Cout,);
    w_dw: (Cout, 1, K, K) depthwise [OIHW].  Returns (N, Cout, H, W).
    mxu_dtype: dtype of the stage-1 MXU operands (jnp.bfloat16 recommended on
    v6e/v7x; accumulation is f32 either way).
    """
    N, Cin, H, W = x_nchw.shape
    Cout, _, K, _ = w_conv.shape
    pad = K // 2

    CK = K * K * Cin                     # contraction width of the big-K matmul
    HM = H + 2 * pad                     # mid domain height: conv out + dw zero ring
    WA = _round_up(W + 2 * pad, 16)      # mid width, 16-sublane aligned (f32 & bf16)
    HP = H + 4 * pad                     # padded input tile height
    WP = WA + 2 * pad                    # padded input tile width

    # ---- wrapper-side layout plumbing (done once, tiny vs. the convs) ----
    # NHWC with the NATURAL channel count: no 128-lane zero padding in HBM.
    x = jnp.transpose(x_nchw, (0, 2, 3, 1))                       # (N, H, W, Cin)
    xp = jnp.pad(x, ((0, 0),
                     (2 * pad, 2 * pad),
                     (2 * pad, WP - W - 2 * pad),
                     (0, 0)))                                     # (N, HP, WP, Cin)

    # Dense-conv weights as one im2col matrix: w_mat[(kh*K+kw)*Cin + ci, co].
    w_mat = jnp.transpose(w_conv, (2, 3, 1, 0)).reshape(CK, Cout).astype(mxu_dtype)
    bias = b_conv.reshape(1, Cout).astype(jnp.float32)

    # Depthwise weights, tap-major, broadcastable over (H, W, Cout); f32 (VPU).
    dw = jnp.transpose(w_dw[:, 0], (1, 2, 0)).reshape(K * K, 1, 1, Cout)
    dw = dw.astype(jnp.float32)

    # ---- the fused Pallas kernel (one batch image per grid step) ----
    def kernel(xp_ref, w_ref, b_ref, dw_ref, o_ref, im_ref):
        # Stage 1: dense KxK conv as ONE MXU matmul over the (HM, WA) mid
        # domain.  The im2col LHS is built once in VMEM; each tap copy is a
        # plain strided slice store (no reshape on a strided view, so no hidden
        # extra copies), cast to the MXU dtype on the way in.
        for t in range(K * K):
            kh, kw = divmod(t, K)
            im_ref[:, :, t * Cin:(t + 1) * Cin] = (
                xp_ref[0, kh:kh + HM, kw:kw + WA, :].astype(im_ref.dtype))

        acc = jnp.dot(im_ref[...].reshape(HM * WA, CK), w_ref[...],
                      preferred_element_type=jnp.float32)          # (HM*WA, Cout)
        mid_raw = acc.reshape(HM, WA, Cout) + b_ref[...]           # bias epilogue

        # Interior mask built in-kernel: keep real conv outputs, zero the
        # depthwise zero ring and the width-alignment junk columns.
        rows = lax.broadcasted_iota(jnp.int32, (HM, WA, Cout), 0)
        cols = lax.broadcasted_iota(jnp.int32, (HM, WA, Cout), 1)
        keep = (rows >= pad) & (rows < pad + H) & (cols >= pad) & (cols < pad + W)
        mid = jnp.where(keep, mid_raw, 0.0)                        # (HM, WA, Cout) f32

        # Stage 2: depthwise KxK conv on the VMEM-resident intermediate as a
        # single summed 9-tap expression and ONE output store (no o_ref RMW).
        # TODO(synk): the kw shifts could use pltpu.roll along the sublane axis
        # (XLU) instead of misaligned slices; plain slices kept for robustness.
        dw_out = None
        for t in range(K * K):
            kh, kw = divmod(t, K)
            term = mid[kh:kh + H, kw:kw + W, :] * dw_ref[t]
            dw_out = term if dw_out is None else dw_out + term
        o_ref[0] = dw_out.astype(o_ref.dtype)

    flops = N * (2 * HM * WA * CK * Cout + K * K * 2 * H * W * Cout)
    bytes_accessed = (xp.size * xp.dtype.itemsize
                      + w_mat.size * w_mat.dtype.itemsize
                      + bias.size * 4 + dw.size * 4
                      + N * H * W * Cout * 4)

    y = pl.pallas_call(
        kernel,
        out_shape=jax.ShapeDtypeStruct((N, H, W, Cout), jnp.float32),
        grid=(N,),
        in_specs=[
            pl.BlockSpec((1, HP, WP, Cin), lambda b: (b, 0, 0, 0)),
            pl.BlockSpec((CK, Cout), lambda b: (0, 0)),
            pl.BlockSpec((1, Cout), lambda b: (0, 0)),
            pl.BlockSpec((K * K, 1, 1, Cout), lambda b: (0, 0, 0, 0)),
        ],
        out_specs=pl.BlockSpec((1, H, W, Cout), lambda b: (b, 0, 0, 0)),
        scratch_shapes=[pltpu.VMEM((HM, WA, CK), mxu_dtype)],      # im2col LHS
        compiler_params=pltpu.CompilerParams(dimension_semantics=("parallel",)),
        cost_estimate=pl.CostEstimate(flops=flops, transcendentals=0,
                                      bytes_accessed=bytes_accessed),
    )(xp, w_mat, bias, dw)

    return jnp.transpose(y, (0, 3, 1, 2))                          # back to NCHW


if __name__ == "__main__":
    N, Cin, H, W = 2, 4, 16, 16
    Cout, K = 8, 3

    key = jax.random.PRNGKey(0)
    k1, k2, k3, k4 = jax.random.split(key, 4)
    x_nchw = jax.random.normal(k1, (N, Cin, H, W), jnp.float32)
    w_conv = 0.1 * jax.random.normal(k2, (Cout, Cin, K, K), jnp.float32)
    b_conv = 0.1 * jax.random.normal(k3, (Cout,), jnp.float32)
    # nn.init.dirac_(clr_conv.weight, groups=Cout): identity depthwise kernel
    w_dw_dirac = jnp.zeros((Cout, 1, K, K), jnp.float32).at[:, 0, K // 2, K // 2].set(1.0)
    # also exercise non-identity depthwise taps (clr_conv is the trainable part)
    w_dw_rand = w_dw_dirac + 0.05 * jax.random.normal(k4, (Cout, 1, K, K), jnp.float32)

    def reference(x, wc, bc, wd):
        y = lax.conv_general_dilated(
            x, wc, (1, 1), "SAME",
            dimension_numbers=("NCHW", "OIHW", "NCHW"),
        ) + bc[None, :, None, None]
        return lax.conv_general_dilated(
            y, wd, (1, 1), "SAME",
            dimension_numbers=("NCHW", "OIHW", "NCHW"),
            feature_group_count=Cout,
        )

    # f32 MXU-operand path (default): tight tolerance.
    for w_dw in (w_dw_dirac, w_dw_rand):
        out = jax.block_until_ready(clr_block_forward(x_nchw, w_conv, b_conv, w_dw))
        ref = reference(x_nchw, w_conv, b_conv, w_dw)
        assert out.shape == (N, Cout, H, W)
        assert jnp.allclose(out, ref, atol=1e-4, rtol=1e-4), "f32 path mismatch"

    # bf16 MXU-operand path (recommended on v6e/v7x): relaxed tolerance.
    out = jax.block_until_ready(
        clr_block_forward(x_nchw, w_conv, b_conv, w_dw_rand, mxu_dtype=jnp.bfloat16))
    ref = reference(x_nchw, w_conv, b_conv, w_dw_rand)
    assert out.shape == (N, Cout, H, W)
    assert jnp.allclose(out, ref, atol=3e-2, rtol=3e-2), "bf16 path mismatch"

    print("KERNEL_OK")
</pallas_src>

<mosaic_0001>
module attributes {stable_mosaic.version = 11 : i64} {
  func.func @kernel(%arg0: i32, %arg1: memref<1x20x34x4xf32, #tpu.memory_space<vmem>>, %arg2: memref<36x8xf32, #tpu.memory_space<vmem>>, %arg3: memref<1x8xf32, #tpu.memory_space<vmem>>, %arg4: memref<9x1x1x8xf32, #tpu.memory_space<vmem>>, %arg5: memref<1x16x16x8xf32, #tpu.memory_space<vmem>>, %arg6: memref<18x32x36xf32, #tpu.memory_space<vmem>>) attributes {dimension_semantics = [#tpu.dimension_semantics<parallel>], iteration_bounds = array<i64: 2>, scalar_prefetch = 0 : i64, scratch_operands = 1 : i64, tpu.core_type = #tpu.core_type<tc>, window_params = [{transform_indices = @transform_0, window_bounds = array<i64: 1, 20, 34, 4>}, {pipeline_mode = #tpu.pipeline_mode<synchronous>, transform_indices = @transform_1, window_bounds = array<i64: 36, 8>}, {pipeline_mode = #tpu.pipeline_mode<synchronous>, transform_indices = @transform_2, window_bounds = array<i64: 1, 8>}, {pipeline_mode = #tpu.pipeline_mode<synchronous>, transform_indices = @transform_3, window_bounds = array<i64: 9, 1, 1, 8>}, {transform_indices = @transform_4, window_bounds = array<i64: 1, 16, 16, 8>}]} {
    %c0 = arith.constant 0 : index
    %c0_0 = arith.constant 0 : index
    %c0_1 = arith.constant 0 : index
    %c0_2 = arith.constant 0 : index
    %0 = vector.load %arg1[%c0, %c0_0, %c0_1, %c0_2] : memref<1x20x34x4xf32, #tpu.memory_space<vmem>>, vector<1x18x32x4xf32>
    %1 = vector.shape_cast %0 : vector<1x18x32x4xf32> to vector<18x32x4xf32>
    %c0_3 = arith.constant 0 : index
    %c0_4 = arith.constant 0 : index
    %c0_5 = arith.constant 0 : index
    %2 = vector.load %arg6[%c0_3, %c0_4, %c0_5] : memref<18x32x36xf32, #tpu.memory_space<vmem>>, vector<18x32x4xf32>
    tpu.vector_store %arg6[%c0_3, %c0_4, %c0_5], %1 {strides = array<i32>} : memref<18x32x36xf32, #tpu.memory_space<vmem>>, vector<18x32x4xf32>,
    %c0_6 = arith.constant 0 : index
    %c0_7 = arith.constant 0 : index
    %c1 = arith.constant 1 : index
    %c0_8 = arith.constant 0 : index
    %3 = vector.load %arg1[%c0_6, %c0_7, %c1, %c0_8] : memref<1x20x34x4xf32, #tpu.memory_space<vmem>>, vector<1x18x32x4xf32>
    %4 = vector.shape_cast %3 : vector<1x18x32x4xf32> to vector<18x32x4xf32>
    %c0_9 = arith.constant 0 : index
    %c0_10 = arith.constant 0 : index
    %c4 = arith.constant 4 : index
    %5 = vector.load %arg6[%c0_9, %c0_10, %c4] : memref<18x32x36xf32, #tpu.memory_space<vmem>>, vector<18x32x4xf32>
    tpu.vector_store %arg6[%c0_9, %c0_10, %c4], %4 {strides = array<i32>} : memref<18x32x36xf32, #tpu.memory_space<vmem>>, vector<18x32x4xf32>,
    %c0_11 = arith.constant 0 : index
    %c0_12 = arith.constant 0 : index
    %c2 = arith.constant 2 : index
    %c0_13 = arith.constant 0 : index
    %6 = vector.load %arg1[%c0_11, %c0_12, %c2, %c0_13] : memref<1x20x34x4xf32, #tpu.memory_space<vmem>>, vector<1x18x32x4xf32>
    %7 = vector.shape_cast %6 : vector<1x18x32x4xf32> to vector<18x32x4xf32>
    %c0_14 = arith.constant 0 : index
    %c0_15 = arith.constant 0 : index
    %c8 = arith.constant 8 : index
    %8 = vector.load %arg6[%c0_14, %c0_15, %c8] : memref<18x32x36xf32, #tpu.memory_space<vmem>>, vector<18x32x4xf32>
    tpu.vector_store %arg6[%c0_14, %c0_15, %c8], %7 {strides = array<i32>} : memref<18x32x36xf32, #tpu.memory_space<vmem>>, vector<18x32x4xf32>,
    %c0_16 = arith.constant 0 : index
    %c1_17 = arith.constant 1 : index
    %c0_18 = arith.constant 0 : index
    %c0_19 = arith.constant 0 : index
    %9 = vector.load %arg1[%c0_16, %c1_17, %c0_18, %c0_19] : memref<1x20x34x4xf32, #tpu.memory_space<vmem>>, vector<1x18x32x4xf32>
    %10 = vector.shape_cast %9 : vector<1x18x32x4xf32> to vector<18x32x4xf32>
    %c0_20 = arith.constant 0 : index
    %c0_21 = arith.constant 0 : index
    %c12 = arith.constant 12 : index
    %11 = vector.load %arg6[%c0_20, %c0_21, %c12] : memref<18x32x36xf32, #tpu.memory_space<vmem>>, vector<18x32x4xf32>
    tpu.vector_store %arg6[%c0_20, %c0_21, %c12], %10 {strides = array<i32>} : memref<18x32x36xf32, #tpu.memory_space<vmem>>, vector<18x32x4xf32>,
    %c0_22 = arith.constant 0 : index
    %c1_23 = arith.constant 1 : index
    %c1_24 = arith.constant 1 : index
    %c0_25 = arith.constant 0 : index
    %12 = vector.load %arg1[%c0_22, %c1_23, %c1_24, %c0_25] : memref<1x20x34x4xf32, #tpu.memory_space<vmem>>, vector<1x18x32x4xf32>
    %13 = vector.shape_cast %12 : vector<1x18x32x4xf32> to vector<18x32x4xf32>
    %c0_26 = arith.constant 0 : index
    %c0_27 = arith.constant 0 : index
    %c16 = arith.constant 16 : index
    %14 = vector.load %arg6[%c0_26, %c0_27, %c16] : memref<18x32x36xf32, #tpu.memory_space<vmem>>, vector<18x32x4xf32>
    tpu.vector_store %arg6[%c0_26, %c0_27, %c16], %13 {strides = array<i32>} : memref<18x32x36xf32, #tpu.memory_space<vmem>>, vector<18x32x4xf32>,
    %c0_28 = arith.constant 0 : index
    %c1_29 = arith.constant 1 : index
    %c2_30 = arith.constant 2 : index
    %c0_31 = arith.constant 0 : index
    %15 = vector.load %arg1[%c0_28, %c1_29, %c2_30, %c0_31] : memref<1x20x34x4xf32, #tpu.memory_space<vmem>>, vector<1x18x32x4xf32>
    %16 = vector.shape_cast %15 : vector<1x18x32x4xf32> to vector<18x32x4xf32>
    %c0_32 = arith.constant 0 : index
    %c0_33 = arith.constant 0 : index
    %c20 = arith.constant 20 : index
    %17 = vector.load %arg6[%c0_32, %c0_33, %c20] : memref<18x32x36xf32, #tpu.memory_space<vmem>>, vector<18x32x4xf32>
    tpu.vector_store %arg6[%c0_32, %c0_33, %c20], %16 {strides = array<i32>} : memref<18x32x36xf32, #tpu.memory_space<vmem>>, vector<18x32x4xf32>,
    %c0_34 = arith.constant 0 : index
    %c2_35 = arith.constant 2 : index
    %c0_36 = arith.constant 0 : index
    %c0_37 = arith.constant 0 : index
    %18 = vector.load %arg1[%c0_34, %c2_35, %c0_36, %c0_37] : memref<1x20x34x4xf32, #tpu.memory_space<vmem>>, vector<1x18x32x4xf32>
    %19 = vector.shape_cast %18 : vector<1x18x32x4xf32> to vector<18x32x4xf32>
    %c0_38 = arith.constant 0 : index
    %c0_39 = arith.constant 0 : index
    %c24 = arith.constant 24 : index
    %20 = vector.load %arg6[%c0_38, %c0_39, %c24] : memref<18x32x36xf32, #tpu.memory_space<vmem>>, vector<18x32x4xf32>
    tpu.vector_store %arg6[%c0_38, %c0_39, %c24], %19 {strides = array<i32>} : memref<18x32x36xf32, #tpu.memory_space<vmem>>, vector<18x32x4xf32>,
    %c0_40 = arith.constant 0 : index
    %c2_41 = arith.constant 2 : index
    %c1_42 = arith.constant 1 : index
    %c0_43 = arith.constant 0 : index
    %21 = vector.load %arg1[%c0_40, %c2_41, %c1_42, %c0_43] : memref<1x20x34x4xf32, #tpu.memory_space<vmem>>, vector<1x18x32x4xf32>
    %22 = vector.shape_cast %21 : vector<1x18x32x4xf32> to vector<18x32x4xf32>
    %c0_44 = arith.constant 0 : index
    %c0_45 = arith.constant 0 : index
    %c28 = arith.constant 28 : index
    %23 = vector.load %arg6[%c0_44, %c0_45, %c28] : memref<18x32x36xf32, #tpu.memory_space<vmem>>, vector<18x32x4xf32>
    tpu.vector_store %arg6[%c0_44, %c0_45, %c28], %22 {strides = array<i32>} : memref<18x32x36xf32, #tpu.memory_space<vmem>>, vector<18x32x4xf32>,
    %c0_46 = arith.constant 0 : index
    %c2_47 = arith.constant 2 : index
    %c2_48 = arith.constant 2 : index
    %c0_49 = arith.constant 0 : index
    %24 = vector.load %arg1[%c0_46, %c2_47, %c2_48, %c0_49] : memref<1x20x34x4xf32, #tpu.memory_space<vmem>>, vector<1x18x32x4xf32>
    %25 = vector.shape_cast %24 : vector<1x18x32x4xf32> to vector<18x32x4xf32>
    %c0_50 = arith.constant 0 : index
    %c0_51 = arith.constant 0 : index
    %c32 = arith.constant 32 : index
    %26 = vector.load %arg6[%c0_50, %c0_51, %c32] : memref<18x32x36xf32, #tpu.memory_space<vmem>>, vector<18x32x4xf32>
    tpu.vector_store %arg6[%c0_50, %c0_51, %c32], %25 {strides = array<i32>} : memref<18x32x36xf32, #tpu.memory_space<vmem>>, vector<18x32x4xf32>,
    %c0_52 = arith.constant 0 : index
    %c0_53 = arith.constant 0 : index
    %c0_54 = arith.constant 0 : index
    %27 = vector.load %arg6[%c0_52, %c0_53, %c0_54] : memref<18x32x36xf32, #tpu.memory_space<vmem>>, vector<18x32x36xf32>
    %28 = vector.shape_cast %27 : vector<18x32x36xf32> to vector<576x36xf32>
    %c0_55 = arith.constant 0 : index
    %c0_56 = arith.constant 0 : index
    %29 = vector.load %arg2[%c0_55, %c0_56] : memref<36x8xf32, #tpu.memory_space<vmem>>, vector<36x8xf32>
    %cst = arith.constant dense<0.000000e+00> : vector<576x8xf32>
    %30 = tpu.matmul %28, %29, %cst {dimension_numbers = #tpu.dot_dimension_numbers<[1], [0], [0], [1], [0, 0, 1, 1], [], []>} : vector<576x36xf32>, vector<36x8xf32>, vector<576x8xf32> -> vector<576x8xf32>
    %31 = vector.shape_cast %30 : vector<576x8xf32> to vector<18x32x8xf32>
    %c0_57 = arith.constant 0 : index
    %c0_58 = arith.constant 0 : index
    %32 = vector.load %arg3[%c0_57, %c0_58] : memref<1x8xf32, #tpu.memory_space<vmem>>, vector<1x8xf32>
    %33 = vector.shape_cast %32 : vector<1x8xf32> to vector<1x1x8xf32>
    %34 = vector.broadcast %33 : vector<1x1x8xf32> to vector<18x32x8xf32>
    %35 = arith.addf %31, %34 : vector<18x32x8xf32>
    %36 = tpu.iota {dimensions = array<i32: 0>} : vector<18x32x8xi32>
    %37 = tpu.iota {dimensions = array<i32: 1>} : vector<18x32x8xi32>
    %c1_i32 = arith.constant 1 : i32
    %38 = vector.broadcast %c1_i32 : i32 to vector<18x32x8xi32>
    %39 = arith.cmpi sge, %36, %38 : vector<18x32x8xi32>
    %c17_i32 = arith.constant 17 : i32
    %40 = vector.broadcast %c17_i32 : i32 to vector<18x32x8xi32>
    %41 = arith.cmpi slt, %36, %40 : vector<18x32x8xi32>
    %42 = arith.andi %39, %41 : vector<18x32x8xi1>
    %c1_i32_59 = arith.constant 1 : i32
    %43 = vector.broadcast %c1_i32_59 : i32 to vector<18x32x8xi32>
    %44 = arith.cmpi sge, %37, %43 : vector<18x32x8xi32>
    %45 = arith.andi %42, %44 : vector<18x32x8xi1>
    %c17_i32_60 = arith.constant 17 : i32
    %46 = vector.broadcast %c17_i32_60 : i32 to vector<18x32x8xi32>
    %47 = arith.cmpi slt, %37, %46 : vector<18x32x8xi32>
    %48 = arith.andi %45, %47 : vector<18x32x8xi1>
    %cst_61 = arith.constant 0.000000e+00 : f32
    %49 = vector.broadcast %cst_61 : f32 to vector<18x32x8xf32>
    %50 = arith.select %48, %35, %49 : vector<18x32x8xi1>, vector<18x32x8xf32>
    %51 = vector.extract_strided_slice %50 {offsets = [0, 0, 0], sizes = [16, 16, 8], strides = [1, 1, 1]} : vector<18x32x8xf32> to vector<16x16x8xf32>
    %c0_62 = arith.constant 0 : index
    %c0_63 = arith.constant 0 : index
    %c0_64 = arith.constant 0 : index
    %c0_65 = arith.constant 0 : index
    %52 = vector.load %arg4[%c0_62, %c0_63, %c0_64, %c0_65] : memref<9x1x1x8xf32, #tpu.memory_space<vmem>>, vector<1x1x1x8xf32>
    %53 = vector.shape_cast %52 : vector<1x1x1x8xf32> to vector<1x1x8xf32>
    %54 = vector.broadcast %53 : vector<1x1x8xf32> to vector<16x16x8xf32>
    %55 = arith.mulf %51, %54 : vector<16x16x8xf32>
    %56 = vector.extract_strided_slice %50 {offsets = [0, 1, 0], sizes = [16, 16, 8], strides = [1, 1, 1]} : vector<18x32x8xf32> to vector<16x16x8xf32>
    %c1_66 = arith.constant 1 : index
    %c0_67 = arith.constant 0 : index
    %c0_68 = arith.constant 0 : index
    %c0_69 = arith.constant 0 : index
    %57 = vector.load %arg4[%c1_66, %c0_67, %c0_68, %c0_69] : memref<9x1x1x8xf32, #tpu.memory_space<vmem>>, vector<1x1x1x8xf32>
    %58 = vector.shape_cast %57 : vector<1x1x1x8xf32> to vector<1x1x8xf32>
    %59 = vector.broadcast %58 : vector<1x1x8xf32> to vector<16x16x8xf32>
    %60 = arith.mulf %56, %59 : vector<16x16x8xf32>
    %61 = arith.addf %55, %60 : vector<16x16x8xf32>
    %62 = vector.extract_strided_slice %50 {offsets = [0, 2, 0], sizes = [16, 16, 8], strides = [1, 1, 1]} : vector<18x32x8xf32> to vector<16x16x8xf32>
    %c2_70 = arith.constant 2 : index
    %c0_71 = arith.constant 0 : index
    %c0_72 = arith.constant 0 : index
    %c0_73 = arith.constant 0 : index
    %63 = vector.load %arg4[%c2_70, %c0_71, %c0_72, %c0_73] : memref<9x1x1x8xf32, #tpu.memory_space<vmem>>, vector<1x1x1x8xf32>
    %64 = vector.shape_cast %63 : vector<1x1x1x8xf32> to vector<1x1x8xf32>
    %65 = vector.broadcast %64 : vector<1x1x8xf32> to vector<16x16x8xf32>
    %66 = arith.mulf %62, %65 : vector<16x16x8xf32>
    %67 = arith.addf %61, %66 : vector<16x16x8xf32>
    %68 = vector.extract_strided_slice %50 {offsets = [1, 0, 0], sizes = [16, 16, 8], strides = [1, 1, 1]} : vector<18x32x8xf32> to vector<16x16x8xf32>
    %c3 = arith.constant 3 : index
    %c0_74 = arith.constant 0 : index
    %c0_75 = arith.constant 0 : index
    %c0_76 = arith.constant 0 : index
    %69 = vector.load %arg4[%c3, %c0_74, %c0_75, %c0_76] : memref<9x1x1x8xf32, #tpu.memory_space<vmem>>, vector<1x1x1x8xf32>
    %70 = vector.shape_cast %69 : vector<1x1x1x8xf32> to vector<1x1x8xf32>
    %71 = vector.broadcast %70 : vector<1x1x8xf32> to vector<16x16x8xf32>
    %72 = arith.mulf %68, %71 : vector<16x16x8xf32>
    %73 = arith.addf %67, %72 : vector<16x16x8xf32>
    %74 = vector.extract_strided_slice %50 {offsets = [1, 1, 0], sizes = [16, 16, 8], strides = [1, 1, 1]} : vector<18x32x8xf32> to vector<16x16x8xf32>
    %c4_77 = arith.constant 4 : index
    %c0_78 = arith.constant 0 : index
    %c0_79 = arith.constant 0 : index
    %c0_80 = arith.constant 0 : index
    %75 = vector.load %arg4[%c4_77, %c0_78, %c0_79, %c0_80] : memref<9x1x1x8xf32, #tpu.memory_space<vmem>>, vector<1x1x1x8xf32>
    %76 = vector.shape_cast %75 : vector<1x1x1x8xf32> to vector<1x1x8xf32>
    %77 = vector.broadcast %76 : vector<1x1x8xf32> to vector<16x16x8xf32>
    %78 = arith.mulf %74, %77 : vector<16x16x8xf32>
    %79 = arith.addf %73, %78 : vector<16x16x8xf32>
    %80 = vector.extract_strided_slice %50 {offsets = [1, 2, 0], sizes = [16, 16, 8], strides = [1, 1, 1]} : vector<18x32x8xf32> to vector<16x16x8xf32>
    %c5 = arith.constant 5 : index
    %c0_81 = arith.constant 0 : index
    %c0_82 = arith.constant 0 : index
    %c0_83 = arith.constant 0 : index
    %81 = vector.load %arg4[%c5, %c0_81, %c0_82, %c0_83] : memref<9x1x1x8xf32, #tpu.memory_space<vmem>>, vector<1x1x1x8xf32>
    %82 = vector.shape_cast %81 : vector<1x1x1x8xf32> to vector<1x1x8xf32>
    %83 = vector.broadcast %82 : vector<1x1x8xf32> to vector<16x16x8xf32>
    %84 = arith.mulf %80, %83 : vector<16x16x8xf32>
    %85 = arith.addf %79, %84 : vector<16x16x8xf32>
    %86 = vector.extract_strided_slice %50 {offsets = [2, 0, 0], sizes = [16, 16, 8], strides = [1, 1, 1]} : vector<18x32x8xf32> to vector<16x16x8xf32>
    %c6 = arith.constant 6 : index
    %c0_84 = arith.constant 0 : index
    %c0_85 = arith.constant 0 : index
    %c0_86 = arith.constant 0 : index
    %87 = vector.load %arg4[%c6, %c0_84, %c0_85, %c0_86] : memref<9x1x1x8xf32, #tpu.memory_space<vmem>>, vector<1x1x1x8xf32>
    %88 = vector.shape_cast %87 : vector<1x1x1x8xf32> to vector<1x1x8xf32>
    %89 = vector.broadcast %88 : vector<1x1x8xf32> to vector<16x16x8xf32>
    %90 = arith.mulf %86, %89 : vector<16x16x8xf32>
    %91 = arith.addf %85, %90 : vector<16x16x8xf32>
    %92 = vector.extract_strided_slice %50 {offsets = [2, 1, 0], sizes = [16, 16, 8], strides = [1, 1, 1]} : vector<18x32x8xf32> to vector<16x16x8xf32>
    %c7 = arith.constant 7 : index
    %c0_87 = arith.constant 0 : index
    %c0_88 = arith.constant 0 : index
    %c0_89 = arith.constant 0 : index
    %93 = vector.load %arg4[%c7, %c0_87, %c0_88, %c0_89] : memref<9x1x1x8xf32, #tpu.memory_space<vmem>>, vector<1x1x1x8xf32>
    %94 = vector.shape_cast %93 : vector<1x1x1x8xf32> to vector<1x1x8xf32>
    %95 = vector.broadcast %94 : vector<1x1x8xf32> to vector<16x16x8xf32>
    %96 = arith.mulf %92, %95 : vector<16x16x8xf32>
    %97 = arith.addf %91, %96 : vector<16x16x8xf32>
    %98 = vector.extract_strided_slice %50 {offsets = [2, 2, 0], sizes = [16, 16, 8], strides = [1, 1, 1]} : vector<18x32x8xf32> to vector<16x16x8xf32>
    %c8_90 = arith.constant 8 : index
    %c0_91 = arith.constant 0 : index
    %c0_92 = arith.constant 0 : index
    %c0_93 = arith.constant 0 : index
    %99 = vector.load %arg4[%c8_90, %c0_91, %c0_92, %c0_93] : memref<9x1x1x8xf32, #tpu.memory_space<vmem>>, vector<1x1x1x8xf32>
    %100 = vector.shape_cast %99 : vector<1x1x1x8xf32> to vector<1x1x8xf32>
    %101 = vector.broadcast %100 : vector<1x1x8xf32> to vector<16x16x8xf32>
    %102 = arith.mulf %98, %101 : vector<16x16x8xf32>
    %103 = arith.addf %97, %102 : vector<16x16x8xf32>
    %c0_94 = arith.constant 0 : index
    %c0_95 = arith.constant 0 : index
    %c0_96 = arith.constant 0 : index
    %c0_97 = arith.constant 0 : index
    %104 = vector.load %arg5[%c0_94, %c0_95, %c0_96, %c0_97] : memref<1x16x16x8xf32, #tpu.memory_space<vmem>>, vector<1x16x16x8xf32>
    %105 = vector.shape_cast %104 : vector<1x16x16x8xf32> to vector<16x16x8xf32>
    %106 = vector.shape_cast %103 : vector<16x16x8xf32> to vector<1x16x16x8xf32>
    tpu.vector_store %arg5[%c0_94, %c0_95, %c0_96, %c0_97], %106 {strides = array<i32>} : memref<1x16x16x8xf32, #tpu.memory_space<vmem>>, vector<1x16x16x8xf32>,
    return
  }
  func.func @transform_0(%arg0: i32) -> (i32, i32, i32, i32) {
    %c0_i32 = arith.constant 0 : i32
    %c0_i32_0 = arith.constant 0 : i32
    %c0_i32_1 = arith.constant 0 : i32
    %c0_i32_2 = arith.constant 0 : i32
    return %arg0, %c0_i32, %c0_i32_0, %c0_i32_1 : i32, i32, i32, i32
  }
  func.func @transform_1(%arg0: i32) -> (i32, i32) {
    %c0_i32 = arith.constant 0 : i32
    %c0_i32_0 = arith.constant 0 : i32
    %c0_i32_1 = arith.constant 0 : i32
    return %c0_i32, %c0_i32_0 : i32, i32
  }
  func.func @transform_2(%arg0: i32) -> (i32, i32) {
    %c0_i32 = arith.constant 0 : i32
    %c0_i32_0 = arith.constant 0 : i32
    %c0_i32_1 = arith.constant 0 : i32
    return %c0_i32, %c0_i32_0 : i32, i32
  }
  func.func @transform_3(%arg0: i32) -> (i32, i32, i32, i32) {
    %c0_i32 = arith.constant 0 : i32
    %c0_i32_0 = arith.constant 0 : i32
    %c0_i32_1 = arith.constant 0 : i32
    %c0_i32_2 = arith.constant 0 : i32
    %c0_i32_3 = arith.constant 0 : i32
    return %c0_i32, %c0_i32_0, %c0_i32_1, %c0_i32_2 : i32, i32, i32, i32
  }
  func.func @transform_4(%arg0: i32) -> (i32, i32, i32, i32) {
    %c0_i32 = arith.constant 0 : i32
    %c0_i32_0 = arith.constant 0 : i32
    %c0_i32_1 = arith.constant 0 : i32
    %c0_i32_2 = arith.constant 0 : i32
    return %arg0, %c0_i32, %c0_i32_0, %c0_i32_1 : i32, i32, i32, i32
  }
}

</mosaic_0001>

<llo_original>
// kernel: tpu_custom_call.1
$region0: #{tpu_custom_call.1}
  #allocation0 [shape = 'u32[]', space=smem, size = 0x4, offset = 0x4, fixed_abs, tag = 'smem constant byte address 0x4 - core index']
  #allocation1 [shape = 'u32[144,128]{1,0:T(1,128)}', space=vmem, size = 0x12000, scoped, tag = 'internal scratch']
  #allocation2 [shape = 'f32[18,32,36]{2,1,0:T(8,128)}', space=vmem, size = 0x48000, scoped, tag = 'scratch operand']
  %s0 = inlined_call_operand.vmem [shape: f32[2,20,34,4], index: 0, kind: input, shape index: {}]
  %s1 = inlined_call_operand.vmem [shape: f32[36,8], index: 1, kind: input, shape index: {}]
  %s2 = inlined_call_operand.vmem [shape: f32[1,8], index: 2, kind: input, shape index: {}]
  %s3 = inlined_call_operand.vmem [shape: f32[9,1,1,8], index: 3, kind: input, shape index: {}]
  %s4 = inlined_call_operand.vmem [shape: f32[2,16,16,8], index: 4, kind: output, shape index: {}]
  %s5 = sld [smem:[#allocation0]]
  $region49: #{tpu_custom_call.1} parent=0
    _
  %s7 = ssub.s32 1, %s5
  %s8 = scalar_select 0, %s7, %s5
  loop: start=0, step=1, limit=4
  $region2: #{tpu_custom_call.1} parent=0 // loop_pre_header
    _
  $region3: #{tpu_custom_call.1} parent=0 // loop_header
    %s10 = sphi 0, %s14
    %p11 = scmp.ge.s32.totalorder %s10, 4
    %s20 = sphi 0, %s22
    %s23 = sphi 0, %s20
    %s24 = sphi 0, %s23
    %s40 = sphi 0, %s24
    %s44 = sphi 0, %s44
    %s46 = sphi 0, %s44
    %s47 = sphi 0, %s46
    %s61 = sphi 0, %s47
    %s65 = sphi 0, %s65
    %s67 = sphi 0, %s65
    %s68 = sphi 0, %s67
    %s82 = sphi 0, %s68
    %s86 = sphi 0, %s86
    %s88 = sphi 0, %s86
    %s89 = sphi 0, %s88
    %s103 = sphi 0, %s89
    %s109 = sphi 0, %s111
    %s112 = sphi 0, %s109
    %s113 = sphi 0, %s112
    %s129 = sphi 0, %s113
  $region4: #{tpu_custom_call.1} parent=0 // loop_header_branch
    %13 = sbr.rel (%p11) target = $region8
  $region5: #{tpu_custom_call.1} parent=0 // loop_body
    %s15 = ssub.s32 %s10, 1
    %s16 = ssub.s32 %s10, 2
    %s17 = sadd.s32 %s10, 1
    %s18 = ssub.s32 %s10, %s17
    %p19 = scmp.eq.s32.totalorder %s18, 0
    %s21 = sadd.s32 %s20, 1
    %s22 = scalar_select %p19, %s20, %s21
    %p25 = pneg %p19
    %p26 = scmp.eq.s32.totalorder %s10, 1
    %p27 = por %p25, %p26
    %p28 = scmp.ne.s32.totalorder %s20, %s23
    %p29 = scmp.eq.s32.totalorder %s10, 0
    %p30 = por %p28, %p29
    %p31 = scmp.ne.s32.totalorder %s20, %s23
    %p32 = scmp.eq.s32.totalorder %s15, 1
    %p33 = por %p31, %p32
    %p34 = scmp.ne.s32.totalorder %s23, %s24
    %p35 = scmp.eq.s32.totalorder %s15, 0
    %p36 = por %p34, %p35
    %p37 = scmp.ne.s32.totalorder %s23, %s24
    %p38 = scmp.eq.s32.totalorder %s16, 1
    %p39 = por %p37, %p38
    %p41 = scmp.ne.s32.totalorder %s24, %s40
    %p42 = scmp.eq.s32.totalorder %s16, 0
    %p43 = por %p41, %p42
    %s45 = sadd.s32 %s44, 1
    %p48 = scmp.eq.s32.totalorder %s10, 1
    %p49 = scmp.ne.s32.totalorder %s44, %s46
    %p50 = scmp.eq.s32.totalorder %s10, 0
    %p51 = por %p49, %p50
    %p52 = scmp.ne.s32.totalorder %s44, %s46
    %p53 = scmp.eq.s32.totalorder %s15, 1
    %p54 = por %p52, %p53
    %p55 = scmp.ne.s32.totalorder %s46, %s47
    %p56 = scmp.eq.s32.totalorder %s15, 0
    %p57 = por %p55, %p56
    %p58 = scmp.ne.s32.totalorder %s46, %s47
    %p59 = scmp.eq.s32.totalorder %s16, 1
    %p60 = por %p58, %p59
    %p62 = scmp.ne.s32.totalorder %s47, %s61
    %p63 = scmp.eq.s32.totalorder %s16, 0
    %p64 = por %p62, %p63
    %s66 = sadd.s32 %s65, 1
    %p69 = scmp.eq.s32.totalorder %s10, 1
    %p70 = scmp.ne.s32.totalorder %s65, %s67
    %p71 = scmp.eq.s32.totalorder %s10, 0
    %p72 = por %p70, %p71
    %p73 = scmp.ne.s32.totalorder %s65, %s67
    %p74 = scmp.eq.s32.totalorder %s15, 1
    %p75 = por %p73, %p74
    %p76 = scmp.ne.s32.totalorder %s67, %s68
    %p77 = scmp.eq.s32.totalorder %s15, 0
    %p78 = por %p76, %p77
    %p79 = scmp.ne.s32.totalorder %s67, %s68
    %p80 = scmp.eq.s32.totalorder %s16, 1
    %p81 = por %p79, %p80
    %p83 = scmp.ne.s32.totalorder %s68, %s82
    %p84 = scmp.eq.s32.totalorder %s16, 0
    %p85 = por %p83, %p84
    %s87 = sadd.s32 %s86, 1
    %p90 = scmp.eq.s32.totalorder %s10, 1
    %p91 = scmp.ne.s32.totalorder %s86, %s88
    %p92 = scmp.eq.s32.totalorder %s10, 0
    %p93 = por %p91, %p92
    %p94 = scmp.ne.s32.totalorder %s86, %s88
    %p95 = scmp.eq.s32.totalorder %s15, 1
    %p96 = por %p94, %p95
    %p97 = scmp.ne.s32.totalorder %s88, %s89
    %p98 = scmp.eq.s32.totalorder %s15, 0
    %p99 = por %p97, %p98
    %p100 = scmp.ne.s32.totalorder %s88, %s89
    %p101 = scmp.eq.s32.totalorder %s16, 1
    %p102 = por %p100, %p101
    %p104 = scmp.ne.s32.totalorder %s89, %s103
    %p105 = scmp.eq.s32.totalorder %s16, 0
    %p106 = por %p104, %p105
    %s107 = ssub.s32 %s10, %s17
    %p108 = scmp.eq.s32.totalorder %s107, 0
    %s110 = sadd.s32 %s109, 1
    %s111 = scalar_select %p108, %s109, %s110
    %p114 = pneg %p108
    %p115 = scmp.eq.s32.totalorder %s10, 1
    %p116 = por %p114, %p115
    %p117 = scmp.ne.s32.totalorder %s109, %s112
    %p118 = scmp.eq.s32.totalorder %s10, 0
    %p119 = por %p117, %p118
    %p120 = scmp.ne.s32.totalorder %s109, %s112
    %p121 = scmp.eq.s32.totalorder %s15, 1
    %p122 = por %p120, %p121
    %p123 = scmp.ne.s32.totalorder %s112, %s113
    %p124 = scmp.eq.s32.totalorder %s15, 0
    %p125 = por %p123, %p124
    %p126 = scmp.ne.s32.totalorder %s112, %s113
    %p127 = scmp.eq.s32.totalorder %s16, 1
    %p128 = por %p126, %p127
    %p130 = scmp.ne.s32.totalorder %s113, %s129
    %p131 = scmp.eq.s32.totalorder %s16, 0
    %p132 = por %p130, %p131
    %p133 = scmp.le.s32.totalorder 1, %s10
    %p134 = scmp.lt.s32.totalorder %s10, 3
    %p135 = pnand %p133, %p134
    %p136 = pneg %p135
    // Predicated region
    $region9: #{tpu_custom_call.1} parent=5 // pred_check
      _
    $region10: #{tpu_custom_call.1} parent=5 // pred_check_branch
      %138 = sbr.rel (%p135) target = $region12
    $region11: #{tpu_custom_call.1} parent=5 // pred_region
      %s139 = ssub.s32 %s10, 1
      // Predicated region
      $region13: #{tpu_custom_call.1} parent=11 // pred_check
        %p140 = pneg %p57
      $region14: #{tpu_custom_call.1} parent=11 // pred_check_branch
        %142 = sbr.rel (%p140) target = $region16
      $region15: #{tpu_custom_call.1} parent=11 // pred_region
        _
      $region16: #{tpu_custom_call.1} parent=11 // pred_fallthru
        _
      // Predicated region
      $region17: #{tpu_custom_call.1} parent=11 // pred_check
        %p143 = pneg %p78
      $region18: #{tpu_custom_call.1} parent=11 // pred_check_branch
        %145 = sbr.rel (%p143) target = $region20
      $region19: #{tpu_custom_call.1} parent=11 // pred_region
        _
      $region20: #{tpu_custom_call.1} parent=11 // pred_fallthru
        _
      // Predicated region
      $region21: #{tpu_custom_call.1} parent=11 // pred_check
        %p146 = pneg %p99
      $region22: #{tpu_custom_call.1} parent=11 // pred_check_branch
        %148 = sbr.rel (%p146) target = $region24
      $region23: #{tpu_custom_call.1} parent=11 // pred_region
        _
      $region24: #{tpu_custom_call.1} parent=11 // pred_fallthru
        _
    $region12: #{tpu_custom_call.1} parent=5 // pred_fallthru
      _
    %p149 = scmp.lt.s32.totalorder %s10, 2
    // Predicated region
    $region25: #{tpu_custom_call.1} parent=5 // pred_check
      %p150 = pneg %p149
    $region26: #{tpu_custom_call.1} parent=5 // pred_check_branch
      %152 = sbr.rel (%p150) target = $region28
    $region27: #{tpu_custom_call.1} parent=5 // pred_region
      // Predicated region
      $region29: #{tpu_custom_call.1} parent=27 // pred_check
        %p153 = pneg %p30
      $region30: #{tpu_custom_call.1} parent=27 // pred_check_branch
        %155 = sbr.rel (%p153) target = $region32
      $region31: #{tpu_custom_call.1} parent=27 // pred_region
        %p156 = scmp.lt.s32.totalorder %s10, 1
        %s157 = scalar_select %p156, %s10, 1
        %s158 = smul.addr %s157, 100
        %s159 = smul.addr %s158, 8
        %s160 = scalar_lea.vmem %s0, %s159
      $region32: #{tpu_custom_call.1} parent=27 // pred_fallthru
        _
    $region28: #{tpu_custom_call.1} parent=5 // pred_fallthru
      _
    %p161 = scmp.le.s32.totalorder 1, %s10
    %p162 = scmp.lt.s32.totalorder %s10, 3
    %p163 = pnand %p161, %p162
    %p164 = pneg %p163
    // Predicated region
    $region33: #{tpu_custom_call.1} parent=5 // pred_check
      _
    $region34: #{tpu_custom_call.1} parent=5 // pred_check_branch
      %166 = sbr.rel (%p163) target = $region36
    $region35: #{tpu_custom_call.1} parent=5 // pred_region
      %s167 = ssub.s32 %s10, 1
      %p168 = scmp.lt.s32.totalorder %s15, 1
      %s169 = scalar_select %p168, %s15, 1
      %s170 = smul.addr %s169, 100
      %s171 = smul.addr %s170, 8
      %s172 = scalar_lea.vmem %s0, %s171
      %p173 = pneg %p36
      %p174 = pneg %p33
      %p175 = pneg %p57
      %p176 = pneg %p54
      %p177 = pneg %p78
      %p178 = pneg %p75
      %p179 = pneg %p99
      %p180 = pneg %p96
      %p181 = pneg %p125
      %p182 = pneg %p122
      %p183 = scmp.lt.s32.totalorder %s15, 1
      %s184 = scalar_select %p183, %s15, 1
      %s185 = smul.addr %s184, 32
      %s186 = smul.addr %s185, 8
      %s187 = scalar_lea.vmem %s4, %s186
      %p188 = scmp.lt.s32.totalorder %s15, 1
      %s189 = scalar_select %p188, %s15, 1
      %s190 = smul.addr %s189, 100
      %s191 = smul.addr %s190, 8
      %s192 = scalar_lea.vmem %s0, %s191
      %p193 = scmp.lt.s32.totalorder %s15, 1
      %s194 = scalar_select %p193, %s15, 1
      %s195 = smul.addr %s194, 32
      %s196 = smul.addr %s195, 8
      %s197 = scalar_lea.vmem %s4, %s196
      %v198 = vld [vmem:[%s192] sm:$0xff]
      %v199 = vld [vmem:[%s192 + $0x8] sm:$0xff]
      %v200 = vld [vmem:[%s192 + $0x10] sm:$0xff]
      %v201 = vld [vmem:[%s192 + $0x18] sm:$0xff]
      %v202 = vld [vmem:[%s192 + $0x28] sm:$0xff]
      %v203 = vld [vmem:[%s192 + $0x30] sm:$0xff]
      %v204 = vld [vmem:[%s192 + $0x38] sm:$0xff]
      %v205 = vld [vmem:[%s192 + $0x40] sm:$0xff]
      %v206 = vld [vmem:[%s192 + $0x50] sm:$0xff]
      %v207 = vld [vmem:[%s192 + $0x58] sm:$0xff]
      %v208 = vld [vmem:[%s192 + $0x60] sm:$0xff]
      %v209 = vld [vmem:[%s192 + $0x68] sm:$0xff]
      %v210 = vld [vmem:[%s192 + $0x78] sm:$0xff]
      %v211 = vld [vmem:[%s192 + $0x80] sm:$0xff]
      %v212 = vld [vmem:[%s192 + $0x88] sm:$0xff]
      %v213 = vld [vmem:[%s192 + $0x90] sm:$0xff]
      %v214 = vld [vmem:[%s192 + $0xa0] sm:$0xff]
      %v215 = vld [vmem:[%s192 + $0xa8] sm:$0xff]
      %v216 = vld [vmem:[%s192 + $0xb0] sm:$0xff]
      %v217 = vld [vmem:[%s192 + $0xb8] sm:$0xff]
      %v218 = vld [vmem:[%s192 + $0xc8] sm:$0xff]
      %v219 = vld [vmem:[%s192 + $0xd0] sm:$0xff]
      %v220 = vld [vmem:[%s192 + $0xd8] sm:$0xff]
      %v221 = vld [vmem:[%s192 + $0xe0] sm:$0xff]
      %v222 = vld [vmem:[%s192 + $0xf0] sm:$0xff]
      %v223 = vld [vmem:[%s192 + $0xf8] sm:$0xff]
      %v224 = vld [vmem:[%s192 + $0x100] sm:$0xff]
      %v225 = vld [vmem:[%s192 + $0x108] sm:$0xff]
      %v226 = vld [vmem:[%s192 + $0x118] sm:$0xff]
      %v227 = vld [vmem:[%s192 + $0x120] sm:$0xff]
      %v228 = vld [vmem:[%s192 + $0x128] sm:$0xff]
      %v229 = vld [vmem:[%s192 + $0x130] sm:$0xff]
      %v230 = vld [vmem:[%s192 + $0x140] sm:$0xff]
      %v231 = vld [vmem:[%s192 + $0x148] sm:$0xff]
      %v232 = vld [vmem:[%s192 + $0x150] sm:$0xff]
      %v233 = vld [vmem:[%s192 + $0x158] sm:$0xff]
      %v234 = vld [vmem:[%s192 + $0x168] sm:$0xff]
      %v235 = vld [vmem:[%s192 + $0x170] sm:$0xff]
      %v236 = vld [vmem:[%s192 + $0x178] sm:$0xff]
      %v237 = vld [vmem:[%s192 + $0x180] sm:$0xff]
      %v238 = vld [vmem:[%s192 + $0x190] sm:$0xff]
      %v239 = vld [vmem:[%s192 + $0x198] sm:$0xff]
      %v240 = vld [vmem:[%s192 + $0x1a0] sm:$0xff]
      %v241 = vld [vmem:[%s192 + $0x1a8] sm:$0xff]
      %v242 = vld [vmem:[%s192 + $0x1b8] sm:$0xff]
      %v243 = vld [vmem:[%s192 + $0x1c0] sm:$0xff]
      %v244 = vld [vmem:[%s192 + $0x1c8] sm:$0xff]
      %v245 = vld [vmem:[%s192 + $0x1d0] sm:$0xff]
      %v246 = vld [vmem:[%s192 + $0x1e0] sm:$0xff]
      %v247 = vld [vmem:[%s192 + $0x1e8] sm:$0xff]
      %v248 = vld [vmem:[%s192 + $0x1f0] sm:$0xff]
      %v249 = vld [vmem:[%s192 + $0x1f8] sm:$0xff]
      %v250 = vld [vmem:[%s192 + $0x208] sm:$0xff]
      %v251 = vld [vmem:[%s192 + $0x210] sm:$0xff]
      %v252 = vld [vmem:[%s192 + $0x218] sm:$0xff]
      %v253 = vld [vmem:[%s192 + $0x220] sm:$0xff]
      %v254 = vld [vmem:[%s192 + $0x230] sm:$0xff]
      %v255 = vld [vmem:[%s192 + $0x238] sm:$0xff]
      %v256 = vld [vmem:[%s192 + $0x240] sm:$0xff]
      %v257 = vld [vmem:[%s192 + $0x248] sm:$0xff]
      %v258 = vld [vmem:[%s192 + $0x258] sm:$0xff]
      %v259 = vld [vmem:[%s192 + $0x260] sm:$0xff]
      %v260 = vld [vmem:[%s192 + $0x268] sm:$0xff]
      %v261 = vld [vmem:[%s192 + $0x270] sm:$0xff]
      %v262 = vld [vmem:[%s192 + $0x280] sm:$0xff]
      %v263 = vld [vmem:[%s192 + $0x288] sm:$0xff]
      %v264 = vld [vmem:[%s192 + $0x290] sm:$0xff]
      %v265 = vld [vmem:[%s192 + $0x298] sm:$0xff]
      %v266 = vld [vmem:[%s192 + $0x2a8] sm:$0xff]
      %v267 = vld [vmem:[%s192 + $0x2b0] sm:$0xff]
      %v268 = vld [vmem:[%s192 + $0x2b8] sm:$0xff]
      %v269 = vld [vmem:[%s192 + $0x2c0] sm:$0xff]
      %vm270 = vcmask 31744
      %271 = vst.msk [vmem:[#allocation2] sm:$0xff] %vm270, %v198
      %272 = vst.msk [vmem:[#allocation2 + $0x8] sm:$0xff] %vm270, %v199
      %273 = vst.msk [vmem:[#allocation2 + $0x10] sm:$0xff] %vm270, %v200
      %274 = vst.msk [vmem:[#allocation2 + $0x18] sm:$0xff] %vm270, %v201
      %275 = vst.msk [vmem:[#allocation2 + $0x20] sm:$0xff] %vm270, %v202
      %276 = vst.msk [vmem:[#allocation2 + $0x28] sm:$0xff] %vm270, %v203
      %277 = vst.msk [vmem:[#allocation2 + $0x30] sm:$0xff] %vm270, %v204
      %278 = vst.msk [vmem:[#allocation2 + $0x38] sm:$0xff] %vm270, %v205
      %279 = vst.msk [vmem:[#allocation2 + $0x40] sm:$0xff] %vm270, %v206
      %280 = vst.msk [vmem:[#allocation2 + $0x48] sm:$0xff] %vm270, %v207
      %281 = vst.msk [vmem:[#allocation2 + $0x50] sm:$0xff] %vm270, %v208
      %282 = vst.msk [vmem:[#allocation2 + $0x58] sm:$0xff] %vm270, %v209
      %283 = vst.msk [vmem:[#allocation2 + $0x60] sm:$0xff] %vm270, %v210
      %284 = vst.msk [vmem:[#allocation2 + $0x68] sm:$0xff] %vm270, %v211
      %285 = vst.msk [vmem:[#allocation2 + $0x70] sm:$0xff] %vm270, %v212
      %286 = vst.msk [vmem:[#allocation2 + $0x78] sm:$0xff] %vm270, %v213
      %287 = vst.msk [vmem:[#allocation2 + $0x80] sm:$0xff] %vm270, %v214
      %288 = vst.msk [vmem:[#allocation2 + $0x88] sm:$0xff] %vm270, %v215
      %289 = vst.msk [vmem:[#allocation2 + $0x90] sm:$0xff] %vm270, %v216
      %290 = vst.msk [vmem:[#allocation2 + $0x98] sm:$0xff] %vm270, %v217
      %291 = vst.msk [vmem:[#allocation2 + $0xa0] sm:$0xff] %vm270, %v218
      %292 = vst.msk [vmem:[#allocation2 + $0xa8] sm:$0xff] %vm270, %v219
      %293 = vst.msk [vmem:[#allocation2 + $0xb0] sm:$0xff] %vm270, %v220
      %294 = vst.msk [vmem:[#allocation2 + $0xb8] sm:$0xff] %vm270, %v221
      %295 = vst.msk [vmem:[#allocation2 + $0xc0] sm:$0xff] %vm270, %v222
      %296 = vst.msk [vmem:[#allocation2 + $0xc8] sm:$0xff] %vm270, %v223
      %297 = vst.msk [vmem:[#allocation2 + $0xd0] sm:$0xff] %vm270, %v224
      %298 = vst.msk [vmem:[#allocation2 + $0xd8] sm:$0xff] %vm270, %v225
      %299 = vst.msk [vmem:[#allocation2 + $0xe0] sm:$0xff] %vm270, %v226
      %300 = vst.msk [vmem:[#allocation2 + $0xe8] sm:$0xff] %vm270, %v227
      %301 = vst.msk [vmem:[#allocation2 + $0xf0] sm:$0xff] %vm270, %v228
      %302 = vst.msk [vmem:[#allocation2 + $0xf8] sm:$0xff] %vm270, %v229
      %303 = vst.msk [vmem:[#allocation2 + $0x100] sm:$0xff] %vm270, %v230
      %304 = vst.msk [vmem:[#allocation2 + $0x108] sm:$0xff] %vm270, %v231
      %305 = vst.msk [vmem:[#allocation2 + $0x110] sm:$0xff] %vm270, %v232
      %306 = vst.msk [vmem:[#allocation2 + $0x118] sm:$0xff] %vm270, %v233
      %307 = vst.msk [vmem:[#allocation2 + $0x120] sm:$0xff] %vm270, %v234
      %308 = vst.msk [vmem:[#allocation2 + $0x128] sm:$0xff] %vm270, %v235
      %309 = vst.msk [vmem:[#allocation2 + $0x130] sm:$0xff] %vm270, %v236
      %310 = vst.msk [vmem:[#allocation2 + $0x138] sm:$0xff] %vm270, %v237
      %311 = vst.msk [vmem:[#allocation2 + $0x140] sm:$0xff] %vm270, %v238
      %312 = vst.msk [vmem:[#allocation2 + $0x148] sm:$0xff] %vm270, %v239
      %313 = vst.msk [vmem:[#allocation2 + $0x150] sm:$0xff] %vm270, %v240
      %314 = vst.msk [vmem:[#allocation2 + $0x158] sm:$0xff] %vm270, %v241
      %315 = vst.msk [vmem:[#allocation2 + $0x160] sm:$0xff] %vm270, %v242
      %316 = vst.msk [vmem:[#allocation2 + $0x168] sm:$0xff] %vm270, %v243
      %317 = vst.msk [vmem:[#allocation2 + $0x170] sm:$0xff] %vm270, %v244
      %318 = vst.msk [vmem:[#allocation2 + $0x178] sm:$0xff] %vm270, %v245
      %319 = vst.msk [vmem:[#allocation2 + $0x180] sm:$0xff] %vm270, %v246
      %320 = vst.msk [vmem:[#allocation2 + $0x188] sm:$0xff] %vm270, %v247
      %321 = vst.msk [vmem:[#allocation2 + $0x190] sm:$0xff] %vm270, %v248
      %322 = vst.msk [vmem:[#allocation2 + $0x198] sm:$0xff] %vm270, %v249
      %323 = vst.msk [vmem:[#allocation2 + $0x1a0] sm:$0xff] %vm270, %v250
      %324 = vst.msk [vmem:[#allocation2 + $0x1a8] sm:$0xff] %vm270, %v251
      %325 = vst.msk [vmem:[#allocation2 + $0x1b0] sm:$0xff] %vm270, %v252
      %326 = vst.msk [vmem:[#allocation2 + $0x1b8] sm:$0xff] %vm270, %v253
      %327 = vst.msk [vmem:[#allocation2 + $0x1c0] sm:$0xff] %vm270, %v254
      %328 = vst.msk [vmem:[#allocation2 + $0x1c8] sm:$0xff] %vm270, %v255
      %329 = vst.msk [vmem:[#allocation2 + $0x1d0] sm:$0xff] %vm270, %v256
      %330 = vst.msk [vmem:[#allocation2 + $0x1d8] sm:$0xff] %vm270, %v257
      %331 = vst.msk [vmem:[#allocation2 + $0x1e0] sm:$0xff] %vm270, %v258
      %332 = vst.msk [vmem:[#allocation2 + $0x1e8] sm:$0xff] %vm270, %v259
      %333 = vst.msk [vmem:[#allocation2 + $0x1f0] sm:$0xff] %vm270, %v260
      %334 = vst.msk [vmem:[#allocation2 + $0x1f8] sm:$0xff] %vm270, %v261
      %335 = vst.msk [vmem:[#allocation2 + $0x200] sm:$0xff] %vm270, %v262
      %336 = vst.msk [vmem:[#allocation2 + $0x208] sm:$0xff] %vm270, %v263
      %337 = vst.msk [vmem:[#allocation2 + $0x210] sm:$0xff] %vm270, %v264
      %338 = vst.msk [vmem:[#allocation2 + $0x218] sm:$0xff] %vm270, %v265
      %339 = vst.msk [vmem:[#allocation2 + $0x220] sm:$0xff] %vm270, %v266
      %340 = vst.msk [vmem:[#allocation2 + $0x228] sm:$0xff] %vm270, %v267
      %341 = vst.msk [vmem:[#allocation2 + $0x230] sm:$0xff] %vm270, %v268
      %342 = vst.msk [vmem:[#allocation2 + $0x238] sm:$0xff] %vm270, %v269
      %v343 = vld [vmem:[%s192 + $0x1] sm:$0xff]
      %v344 = vld [vmem:[%s192 + $0x9] sm:$0xff]
      %v345 = vld [vmem:[%s192 + $0x11] sm:$0xff]
      %v346 = vld [vmem:[%s192 + $0x19] sm:$0xff]
      %v347 = vld [vmem:[%s192 + $0x29] sm:$0xff]
      %v348 = vld [vmem:[%s192 + $0x31] sm:$0xff]
      %v349 = vld [vmem:[%s192 + $0x39] sm:$0xff]
      %v350 = vld [vmem:[%s192 + $0x41] sm:$0xff]
      %v351 = vld [vmem:[%s192 + $0x51] sm:$0xff]
      %v352 = vld [vmem:[%s192 + $0x59] sm:$0xff]
      %v353 = vld [vmem:[%s192 + $0x61] sm:$0xff]
      %v354 = vld [vmem:[%s192 + $0x69] sm:$0xff]
      %v355 = vld [vmem:[%s192 + $0x79] sm:$0xff]
      %v356 = vld [vmem:[%s192 + $0x81] sm:$0xff]
      %v357 = vld [vmem:[%s192 + $0x89] sm:$0xff]
      %v358 = vld [vmem:[%s192 + $0x91] sm:$0xff]
      %v359 = vld [vmem:[%s192 + $0xa1] sm:$0xff]
      %v360 = vld [vmem:[%s192 + $0xa9] sm:$0xff]
      %v361 = vld [vmem:[%s192 + $0xb1] sm:$0xff]
      %v362 = vld [vmem:[%s192 + $0xb9] sm:$0xff]
      %v363 = vld [vmem:[%s192 + $0xc9] sm:$0xff]
      %v364 = vld [vmem:[%s192 + $0xd1] sm:$0xff]
      %v365 = vld [vmem:[%s192 + $0xd9] sm:$0xff]
      %v366 = vld [vmem:[%s192 + $0xe1] sm:$0xff]
      %v367 = vld [vmem:[%s192 + $0xf1] sm:$0xff]
      %v368 = vld [vmem:[%s192 + $0xf9] sm:$0xff]
      %v369 = vld [vmem:[%s192 + $0x101] sm:$0xff]
      %v370 = vld [vmem:[%s192 + $0x109] sm:$0xff]
      %v371 = vld [vmem:[%s192 + $0x119] sm:$0xff]
      %v372 = vld [vmem:[%s192 + $0x121] sm:$0xff]
      %v373 = vld [vmem:[%s192 + $0x129] sm:$0xff]
      %v374 = vld [vmem:[%s192 + $0x131] sm:$0xff]
      %v375 = vld [vmem:[%s192 + $0x141] sm:$0xff]
      %v376 = vld [vmem:[%s192 + $0x149] sm:$0xff]
      %v377 = vld [vmem:[%s192 + $0x151] sm:$0xff]
      %v378 = vld [vmem:[%s192 + $0x159] sm:$0xff]
      %v379 = vld [vmem:[%s192 + $0x169] sm:$0xff]
      %v380 = vld [vmem:[%s192 + $0x171] sm:$0xff]
      %v381 = vld [vmem:[%s192 + $0x179] sm:$0xff]
      %v382 = vld [vmem:[%s192 + $0x181] sm:$0xff]
      %v383 = vld [vmem:[%s192 + $0x191] sm:$0xff]
      %v384 = vld [vmem:[%s192 + $0x199] sm:$0xff]
      %v385 = vld [vmem:[%s192 + $0x1a1] sm:$0xff]
      %v386 = vld [vmem:[%s192 + $0x1a9] sm:$0xff]
      %v387 = vld [vmem:[%s192 + $0x1b9] sm:$0xff]
      %v388 = vld [vmem:[%s192 + $0x1c1] sm:$0xff]
      %v389 = vld [vmem:[%s192 + $0x1c9] sm:$0xff]
      %v390 = vld [vmem:[%s192 + $0x1d1] sm:$0xff]
      %v391 = vld [vmem:[%s192 + $0x1e1] sm:$0xff]
      %v392 = vld [vmem:[%s192 + $0x1e9] sm:$0xff]
      %v393 = vld [vmem:[%s192 + $0x1f1] sm:$0xff]
      %v394 = vld [vmem:[%s192 + $0x1f9] sm:$0xff]
      %v395 = vld [vmem:[%s192 + $0x209] sm:$0xff]
      %v396 = vld [vmem:[%s192 + $0x211] sm:$0xff]
      %v397 = vld [vmem:[%s192 + $0x219] sm:$0xff]
      %v398 = vld [vmem:[%s192 + $0x221] sm:$0xff]
      %v399 = vld [vmem:[%s192 + $0x231] sm:$0xff]
      %v400 = vld [vmem:[%s192 + $0x239] sm:$0xff]
      %v401 = vld [vmem:[%s192 + $0x241] sm:$0xff]
      %v402 = vld [vmem:[%s192 + $0x249] sm:$0xff]
      %v403 = vld [vmem:[%s192 + $0x259] sm:$0xff]
      %v404 = vld [vmem:[%s192 + $0x261] sm:$0xff]
      %v405 = vld [vmem:[%s192 + $0x269] sm:$0xff]
      %v406 = vld [vmem:[%s192 + $0x271] sm:$0xff]
      %v407 = vld [vmem:[%s192 + $0x281] sm:$0xff]
      %v408 = vld [vmem:[%s192 + $0x289] sm:$0xff]
      %v409 = vld [vmem:[%s192 + $0x291] sm:$0xff]
      %v410 = vld [vmem:[%s192 + $0x299] sm:$0xff]
      %v411 = vld [vmem:[%s192 + $0x2a9] sm:$0xff]
      %v412 = vld [vmem:[%s192 + $0x2b1] sm:$0xff]
      %v413 = vld [vmem:[%s192 + $0x2b9] sm:$0xff]
      %v414 = vld [vmem:[%s192 + $0x2c1] sm:$0xff]
      %487 = vrot.lane.b32.xlu0 %v343, 4
      %v488 = vpop.permute.xlu0 %487
      %489 = vrot.lane.b32.xlu0 %v344, 4
      %v490 = vpop.permute.xlu0 %489
      %491 = vrot.lane.b32.xlu0 %v345, 4
      %v492 = vpop.permute.xlu0 %491
      %493 = vrot.lane.b32.xlu0 %v346, 4
      %v494 = vpop.permute.xlu0 %493
      %495 = vrot.lane.b32.xlu0 %v347, 4
      %v496 = vpop.permute.xlu0 %495
      %497 = vrot.lane.b32.xlu0 %v348, 4
      %v498 = vpop.permute.xlu0 %497
      %499 = vrot.lane.b32.xlu0 %v349, 4
      %v500 = vpop.permute.xlu0 %499
      %501 = vrot.lane.b32.xlu0 %v350, 4
      %v502 = vpop.permute.xlu0 %501
      %503 = vrot.lane.b32.xlu0 %v351, 4
      %v504 = vpop.permute.xlu0 %503
      %505 = vrot.lane.b32.xlu0 %v352, 4
      %v506 = vpop.permute.xlu0 %505
      %507 = vrot.lane.b32.xlu0 %v353, 4
      %v508 = vpop.permute.xlu0 %507
      %509 = vrot.lane.b32.xlu0 %v354, 4
      %v510 = vpop.permute.xlu0 %509
      %511 = vrot.lane.b32.xlu0 %v355, 4
      %v512 = vpop.permute.xlu0 %511
      %513 = vrot.lane.b32.xlu0 %v356, 4
      %v514 = vpop.permute.xlu0 %513
      %515 = vrot.lane.b32.xlu0 %v357, 4
      %v516 = vpop.permute.xlu0 %515
      %517 = vrot.lane.b32.xlu0 %v358, 4
      %v518 = vpop.permute.xlu0 %517
      %519 = vrot.lane.b32.xlu0 %v359, 4
      %v520 = vpop.permute.xlu0 %519
      %521 = vrot.lane.b32.xlu0 %v360, 4
      %v522 = vpop.permute.xlu0 %521
      %523 = vrot.lane.b32.xlu0 %v361, 4
      %v524 = vpop.permute.xlu0 %523
      %525 = vrot.lane.b32.xlu0 %v362, 4
      %v526 = vpop.permute.xlu0 %525
      %527 = vrot.lane.b32.xlu0 %v363, 4
      %v528 = vpop.permute.xlu0 %527
      %529 = vrot.lane.b32.xlu0 %v364, 4
      %v530 = vpop.permute.xlu0 %529
      %531 = vrot.lane.b32.xlu0 %v365, 4
      %v532 = vpop.permute.xlu0 %531
      %533 = vrot.lane.b32.xlu0 %v366, 4
      %v534 = vpop.permute.xlu0 %533
      %535 = vrot.lane.b32.xlu0 %v367, 4
      %v536 = vpop.permute.xlu0 %535
      %537 = vrot.lane.b32.xlu0 %v368, 4
      %v538 = vpop.permute.xlu0 %537
      %539 = vrot.lane.b32.xlu0 %v369, 4
      %v540 = vpop.permute.xlu0 %539
      %541 = vrot.lane.b32.xlu0 %v370, 4
      %v542 = vpop.permute.xlu0 %541
      %543 = vrot.lane.b32.xlu0 %v371, 4
      %v544 = vpop.permute.xlu0 %543
      %545 = vrot.lane.b32.xlu0 %v372, 4
      %v546 = vpop.permute.xlu0 %545
      %547 = vrot.lane.b32.xlu0 %v373, 4
      %v548 = vpop.permute.xlu0 %547
      %549 = vrot.lane.b32.xlu0 %v374, 4
      %v550 = vpop.permute.xlu0 %549
      %551 = vrot.lane.b32.xlu0 %v375, 4
      %v552 = vpop.permute.xlu0 %551
      %553 = vrot.lane.b32.xlu0 %v376, 4
      %v554 = vpop.permute.xlu0 %553
      %555 = vrot.lane.b32.xlu0 %v377, 4
      %v556 = vpop.permute.xlu0 %555
      %557 = vrot.lane.b32.xlu0 %v378, 4
      %v558 = vpop.permute.xlu0 %557
      %559 = vrot.lane.b32.xlu0 %v379, 4
      %v560 = vpop.permute.xlu0 %559
      %561 = vrot.lane.b32.xlu0 %v380, 4
      %v562 = vpop.permute.xlu0 %561
      %563 = vrot.lane.b32.xlu0 %v381, 4
      %v564 = vpop.permute.xlu0 %563
      %565 = vrot.lane.b32.xlu0 %v382, 4
      %v566 = vpop.permute.xlu0 %565
      %567 = vrot.lane.b32.xlu0 %v383, 4
      %v568 = vpop.permute.xlu0 %567
      %569 = vrot.lane.b32.xlu0 %v384, 4
      %v570 = vpop.permute.xlu0 %569
      %571 = vrot.lane.b32.xlu0 %v385, 4
      %v572 = vpop.permute.xlu0 %571
      %573 = vrot.lane.b32.xlu0 %v386, 4
      %v574 = vpop.permute.xlu0 %573
      %575 = vrot.lane.b32.xlu0 %v387, 4
      %v576 = vpop.permute.xlu0 %575
      %577 = vrot.lane.b32.xlu0 %v388, 4
      %v578 = vpop.permute.xlu0 %577
      %579 = vrot.lane.b32.xlu0 %v389, 4
      %v580 = vpop.permute.xlu0 %579
      %581 = vrot.lane.b32.xlu0 %v390, 4
      %v582 = vpop.permute.xlu0 %581
      %583 = vrot.lane.b32.xlu0 %v391, 4
      %v584 = vpop.permute.xlu0 %583
      %585 = vrot.lane.b32.xlu0 %v392, 4
      %v586 = vpop.permute.xlu0 %585
      %587 = vrot.lane.b32.xlu0 %v393, 4
      %v588 = vpop.permute.xlu0 %587
      %589 = vrot.lane.b32.xlu0 %v394, 4
      %v590 = vpop.permute.xlu0 %589
      %591 = vrot.lane.b32.xlu0 %v395, 4
      %v592 = vpop.permute.xlu0 %591
      %593 = vrot.lane.b32.xlu0 %v396, 4
      %v594 = vpop.permute.xlu0 %593
      %595 = vrot.lane.b32.xlu0 %v397, 4
      %v596 = vpop.permute.xlu0 %595
      %597 = vrot.lane.b32.xlu0 %v398, 4
      %v598 = vpop.permute.xlu0 %597
      %599 = vrot.lane.b32.xlu0 %v399, 4
      %v600 = vpop.permute.xlu0 %599
      %601 = vrot.lane.b32.xlu0 %v400, 4
      %v602 = vpop.permute.xlu0 %601
      %603 = vrot.lane.b32.xlu0 %v401, 4
      %v604 = vpop.permute.xlu0 %603
      %605 = vrot.lane.b32.xlu0 %v402, 4
      %v606 = vpop.permute.xlu0 %605
      %607 = vrot.lane.b32.xlu0 %v403, 4
      %v608 = vpop.permute.xlu0 %607
      %609 = vrot.lane.b32.xlu0 %v404, 4
      %v610 = vpop.permute.xlu0 %609
      %611 = vrot.lane.b32.xlu0 %v405, 4
      %v612 = vpop.permute.xlu0 %611
      %613 = vrot.lane.b32.xlu0 %v406, 4
      %v614 = vpop.permute.xlu0 %613
      %615 = vrot.lane.b32.xlu0 %v407, 4
      %v616 = vpop.permute.xlu0 %615
      %617 = vrot.lane.b32.xlu0 %v408, 4
      %v618 = vpop.permute.xlu0 %617
      %619 = vrot.lane.b32.xlu0 %v409, 4
      %v620 = vpop.permute.xlu0 %619
      %621 = vrot.lane.b32.xlu0 %v410, 4
      %v622 = vpop.permute.xlu0 %621
      %623 = vrot.lane.b32.xlu0 %v411, 4
      %v624 = vpop.permute.xlu0 %623
      %625 = vrot.lane.b32.xlu0 %v412, 4
      %v626 = vpop.permute.xlu0 %625
      %627 = vrot.lane.b32.xlu0 %v413, 4
      %v628 = vpop.permute.xlu0 %627
      %629 = vrot.lane.b32.xlu0 %v414, 4
      %v630 = vpop.permute.xlu0 %629
      %vm703 = vcmask 64544
      %704 = vst.msk [vmem:[#allocation2] sm:$0xff] %vm703, %v488
      %705 = vst.msk [vmem:[#allocation2 + $0x8] sm:$0xff] %vm703, %v490
      %706 = vst.msk [vmem:[#allocation2 + $0x10] sm:$0xff] %vm703, %v492
      %707 = vst.msk [vmem:[#allocation2 + $0x18] sm:$0xff] %vm703, %v494
      %708 = vst.msk [vmem:[#allocation2 + $0x20] sm:$0xff] %vm703, %v496
      %709 = vst.msk [vmem:[#allocation2 + $0x28] sm:$0xff] %vm703, %v498
      %710 = vst.msk [vmem:[#allocation2 + $0x30] sm:$0xff] %vm703, %v500
      %711 = vst.msk [vmem:[#allocation2 + $0x38] sm:$0xff] %vm703, %v502
      %712 = vst.msk [vmem:[#allocation2 + $0x40] sm:$0xff] %vm703, %v504
      %713 = vst.msk [vmem:[#allocation2 + $0x48] sm:$0xff] %vm703, %v506
      %714 = vst.msk [vmem:[#allocation2 + $0x50] sm:$0xff] %vm703, %v508
      %715 = vst.msk [vmem:[#allocation2 + $0x58] sm:$0xff] %vm703, %v510
      %716 = vst.msk [vmem:[#allocation2 + $0x60] sm:$0xff] %vm703, %v512
      %717 = vst.msk [vmem:[#allocation2 + $0x68] sm:$0xff] %vm703, %v514
      %718 = vst.msk [vmem:[#allocation2 + $0x70] sm:$0xff] %vm703, %v516
      %719 = vst.msk [vmem:[#allocation2 + $0x78] sm:$0xff] %vm703, %v518
      %720 = vst.msk [vmem:[#allocation2 + $0x80] sm:$0xff] %vm703, %v520
      %721 = vst.msk [vmem:[#allocation2 + $0x88] sm:$0xff] %vm703, %v522
      %722 = vst.msk [vmem:[#allocation2 + $0x90] sm:$0xff] %vm703, %v524
      %723 = vst.msk [vmem:[#allocation2 + $0x98] sm:$0xff] %vm703, %v526
      %724 = vst.msk [vmem:[#allocation2 + $0xa0] sm:$0xff] %vm703, %v528
      %725 = vst.msk [vmem:[#allocation2 + $0xa8] sm:$0xff] %vm703, %v530
      %726 = vst.msk [vmem:[#allocation2 + $0xb0] sm:$0xff] %vm703, %v532
      %727 = vst.msk [vmem:[#allocation2 + $0xb8] sm:$0xff] %vm703, %v534
      %728 = vst.msk [vmem:[#allocation2 + $0xc0] sm:$0xff] %vm703, %v536
      %729 = vst.msk [vmem:[#allocation2 + $0xc8] sm:$0xff] %vm703, %v538
      %730 = vst.msk [vmem:[#allocation2 + $0xd0] sm:$0xff] %vm703, %v540
      %731 = vst.msk [vmem:[#allocation2 + $0xd8] sm:$0xff] %vm703, %v542
      %732 = vst.msk [vmem:[#allocation2 + $0xe0] sm:$0xff] %vm703, %v544
      %733 = vst.msk [vmem:[#allocation2 + $0xe8] sm:$0xff] %vm703, %v546
      %734 = vst.msk [vmem:[#allocation2 + $0xf0] sm:$0xff] %vm703, %v548
      %735 = vst.msk [vmem:[#allocation2 + $0xf8] sm:$0xff] %vm703, %v550
      %736 = vst.msk [vmem:[#allocation2 + $0x100] sm:$0xff] %vm703, %v552
      %737 = vst.msk [vmem:[#allocation2 + $0x108] sm:$0xff] %vm703, %v554
      %738 = vst.msk [vmem:[#allocation2 + $0x110] sm:$0xff] %vm703, %v556
      %739 = vst.msk [vmem:[#allocation2 + $0x118] sm:$0xff] %vm703, %v558
      %740 = vst.msk [vmem:[#allocation2 + $0x120] sm:$0xff] %vm703, %v560
      %741 = vst.msk [vmem:[#allocation2 + $0x128] sm:$0xff] %vm703, %v562
      %742 = vst.msk [vmem:[#allocation2 + $0x130] sm:$0xff] %vm703, %v564
      %743 = vst.msk [vmem:[#allocation2 + $0x138] sm:$0xff] %vm703, %v566
      %744 = vst.msk [vmem:[#allocation2 + $0x140] sm:$0xff] %vm703, %v568
      %745 = vst.msk [vmem:[#allocation2 + $0x148] sm:$0xff] %vm703, %v570
      %746 = vst.msk [vmem:[#allocation2 + $0x150] sm:$0xff] %vm703, %v572
      %747 = vst.msk [vmem:[#allocation2 + $0x158] sm:$0xff] %vm703, %v574
      %748 = vst.msk [vmem:[#allocation2 + $0x160] sm:$0xff] %vm703, %v576
      %749 = vst.msk [vmem:[#allocation2 + $0x168] sm:$0xff] %vm703, %v578
      %750 = vst.msk [vmem:[#allocation2 + $0x170] sm:$0xff] %vm703, %v580
      %751 = vst.msk [vmem:[#allocation2 + $0x178] sm:$0xff] %vm703, %v582
      %752 = vst.msk [vmem:[#allocation2 + $0x180] sm:$0xff] %vm703, %v584
      %753 = vst.msk [vmem:[#allocation2 + $0x188] sm:$0xff] %vm703, %v586
      %754 = vst.msk [vmem:[#allocation2 + $0x190] sm:$0xff] %vm703, %v588
      %755 = vst.msk [vmem:[#allocation2 + $0x198] sm:$0xff] %vm703, %v590
      %756 = vst.msk [vmem:[#allocation2 + $0x1a0] sm:$0xff] %vm703, %v592
      %757 = vst.msk [vmem:[#allocation2 + $0x1a8] sm:$0xff] %vm703, %v594
      %758 = vst.msk [vmem:[#allocation2 + $0x1b0] sm:$0xff] %vm703, %v596
      %759 = vst.msk [vmem:[#allocation2 + $0x1b8] sm:$0xff] %vm703, %v598
      %760 = vst.msk [vmem:[#allocation2 + $0x1c0] sm:$0xff] %vm703, %v600
      %761 = vst.msk [vmem:[#allocation2 + $0x1c8] sm:$0xff] %vm703, %v602
      %762 = vst.msk [vmem:[#allocation2 + $0x1d0] sm:$0xff] %vm703, %v604
      %763 = vst.msk [vmem:[#allocation2 + $0x1d8] sm:$0xff] %vm703, %v606
      %764 = vst.msk [vmem:[#allocation2 + $0x1e0] sm:$0xff] %vm703, %v608
      %765 = vst.msk [vmem:[#allocation2 + $0x1e8] sm:$0xff] %vm703, %v610
      %766 = vst.msk [vmem:[#allocation2 + $0x1f0] sm:$0xff] %vm703, %v612
      %767 = vst.msk [vmem:[#allocation2 + $0x1f8] sm:$0xff] %vm703, %v614
      %768 = vst.msk [vmem:[#allocation2 + $0x200] sm:$0xff] %vm703, %v616
      %769 = vst.msk [vmem:[#allocation2 + $0x208] sm:$0xff] %vm703, %v618
      %770 = vst.msk [vmem:[#allocation2 + $0x210] sm:$0xff] %vm703, %v620
      %771 = vst.msk [vmem:[#allocation2 + $0x218] sm:$0xff] %vm703, %v622
      %772 = vst.msk [vmem:[#allocation2 + $0x220] sm:$0xff] %vm703, %v624
      %773 = vst.msk [vmem:[#allocation2 + $0x228] sm:$0xff] %vm703, %v626
      %774 = vst.msk [vmem:[#allocation2 + $0x230] sm:$0xff] %vm703, %v628
      %775 = vst.msk [vmem:[#allocation2 + $0x238] sm:$0xff] %vm703, %v630
      %v776 = vld [vmem:[%s192 + $0x2] sm:$0xff]
      %v777 = vld [vmem:[%s192 + $0xa] sm:$0xff]
      %v778 = vld [vmem:[%s192 + $0x12] sm:$0xff]
      %v779 = vld [vmem:[%s192 + $0x1a] sm:$0xff]
      %v780 = vld [vmem:[%s192 + $0x2a] sm:$0xff]
      %v781 = vld [vmem:[%s192 + $0x32] sm:$0xff]
      %v782 = vld [vmem:[%s192 + $0x3a] sm:$0xff]
      %v783 = vld [vmem:[%s192 + $0x42] sm:$0xff]
      %v784 = vld [vmem:[%s192 + $0x52] sm:$0xff]
      %v785 = vld [vmem:[%s192 + $0x5a] sm:$0xff]
      %v786 = vld [vmem:[%s192 + $0x62] sm:$0xff]
      %v787 = vld [vmem:[%s192 + $0x6a] sm:$0xff]
      %v788 = vld [vmem:[%s192 + $0x7a] sm:$0xff]
      %v789 = vld [vmem:[%s192 + $0x82] sm:$0xff]
      %v790 = vld [vmem:[%s192 + $0x8a] sm:$0xff]
      %v791 = vld [vmem:[%s192 + $0x92] sm:$0xff]
      %v792 = vld [vmem:[%s192 + $0xa2] sm:$0xff]
      %v793 = vld [vmem:[%s192 + $0xaa] sm:$0xff]
      %v794 = vld [vmem:[%s192 + $0xb2] sm:$0xff]
      %v795 = vld [vmem:[%s192 + $0xba] sm:$0xff]
      %v796 = vld [vmem:[%s192 + $0xca] sm:$0xff]
      %v797 = vld [vmem:[%s192 + $0xd2] sm:$0xff]
      %v798 = vld [vmem:[%s192 + $0xda] sm:$0xff]
      %v799 = vld [vmem:[%s192 + $0xe2] sm:$0xff]
      %v800 = vld [vmem:[%s192 + $0xf2] sm:$0xff]
      %v801 = vld [vmem:[%s192 + $0xfa] sm:$0xff]
      %v802 = vld [vmem:[%s192 + $0x102] sm:$0xff]
      %v803 = vld [vmem:[%s192 + $0x10a] sm:$0xff]
      %v804 = vld [vmem:[%s192 + $0x11a] sm:$0xff]
      %v805 = vld [vmem:[%s192 + $0x122] sm:$0xff]
      %v806 = vld [vmem:[%s192 + $0x12a] sm:$0xff]
      %v807 = vld [vmem:[%s192 + $0x132] sm:$0xff]
      %v808 = vld [vmem:[%s192 + $0x142] sm:$0xff]
      %v809 = vld [vmem:[%s192 + $0x14a] sm:$0xff]
      %v810 = vld [vmem:[%s192 + $0x152] sm:$0xff]
      %v811 = vld [vmem:[%s192 + $0x15a] sm:$0xff]
      %v812 = vld [vmem:[%s192 + $0x16a] sm:$0xff]
      %v813 = vld [vmem:[%s192 + $0x172] sm:$0xff]
      %v814 = vld [vmem:[%s192 + $0x17a] sm:$0xff]
      %v815 = vld [vmem:[%s192 + $0x182] sm:$0xff]
      %v816 = vld [vmem:[%s192 + $0x192] sm:$0xff]
      %v817 = vld [vmem:[%s192 + $0x19a] sm:$0xff]
      %v818 = vld [vmem:[%s192 + $0x1a2] sm:$0xff]
      %v819 = vld [vmem:[%s192 + $0x1aa] sm:$0xff]
      %v820 = vld [vmem:[%s192 + $0x1ba] sm:$0xff]
      %v821 = vld [vmem:[%s192 + $0x1c2] sm:$0xff]
      %v822 = vld [vmem:[%s192 + $0x1ca] sm:$0xff]
      %v823 = vld [vmem:[%s192 + $0x1d2] sm:$0xff]
      %v824 = vld [vmem:[%s192 + $0x1e2] sm:$0xff]
      %v825 = vld [vmem:[%s192 + $0x1ea] sm:$0xff]
      %v826 = vld [vmem:[%s192 + $0x1f2] sm:$0xff]
      %v827 = vld [vmem:[%s192 + $0x1fa] sm:$0xff]
      %v828 = vld [vmem:[%s192 + $0x20a] sm:$0xff]
      %v829 = vld [vmem:[%s192 + $0x212] sm:$0xff]
      %v830 = vld [vmem:[%s192 + $0x21a] sm:$0xff]
      %v831 = vld [vmem:[%s192 + $0x222] sm:$0xff]
      %v832 = vld [vmem:[%s192 + $0x232] sm:$0xff]
      %v833 = vld [vmem:[%s192 + $0x23a] sm:$0xff]
      %v834 = vld [vmem:[%s192 + $0x242] sm:$0xff]
      %v835 = vld [vmem:[%s192 + $0x24a] sm:$0xff]
      %v836 = vld [vmem:[%s192 + $0x25a] sm:$0xff]
      %v837 = vld [vmem:[%s192 + $0x262] sm:$0xff]
      %v838 = vld [vmem:[%s192 + $0x26a] sm:$0xff]
      %v839 = vld [vmem:[%s192 + $0x272] sm:$0xff]
      %v840 = vld [vmem:[%s192 + $0x282] sm:$0xff]
      %v841 = vld [vmem:[%s192 + $0x28a] sm:$0xff]
      %v842 = vld [vmem:[%s192 + $0x292] sm:$0xff]
      %v843 = vld [vmem:[%s192 + $0x29a] sm:$0xff]
      %v844 = vld [vmem:[%s192 + $0x2aa] sm:$0xff]
      %v845 = vld [vmem:[%s192 + $0x2b2] sm:$0xff]
      %v846 = vld [vmem:[%s192 + $0x2ba] sm:$0xff]
      %v847 = vld [vmem:[%s192 + $0x2c2] sm:$0xff]
      %920 = vrot.lane.b32.xlu0 %v776, 8
      %v921 = vpop.permute.xlu0 %920
      %922 = vrot.lane.b32.xlu0 %v777, 8
      %v923 = vpop.permute.xlu0 %922
      %924 = vrot.lane.b32.xlu0 %v778, 8
      %v925 = vpop.permute.xlu0 %924
      %926 = vrot.lane.b32.xlu0 %v779, 8
      %v927 = vpop.permute.xlu0 %926
      %928 = vrot.lane.b32.xlu0 %v780, 8
      %v929 = vpop.permute.xlu0 %928
      %930 = vrot.lane.b32.xlu0 %v781, 8
      %v931 = vpop.permute.xlu0 %930
      %932 = vrot.lane.b32.xlu0 %v782, 8
      %v933 = vpop.permute.xlu0 %932
      %934 = vrot.lane.b32.xlu0 %v783, 8
      %v935 = vpop.permute.xlu0 %934
      %936 = vrot.lane.b32.xlu0 %v784, 8
      %v937 = vpop.permute.xlu0 %936
      %938 = vrot.lane.b32.xlu0 %v785, 8
      %v939 = vpop.permute.xlu0 %938
      %940 = vrot.lane.b32.xlu0 %v786, 8
      %v941 = vpop.permute.xlu0 %940
      %942 = vrot.lane.b32.xlu0 %v787, 8
      %v943 = vpop.permute.xlu0 %942
      %944 = vrot.lane.b32.xlu0 %v788, 8
      %v945 = vpop.permute.xlu0 %944
      %946 = vrot.lane.b32.xlu0 %v789, 8
      %v947 = vpop.permute.xlu0 %946
      %948 = vrot.lane.b32.xlu0 %v790, 8
      %v949 = vpop.permute.xlu0 %948
      %950 = vrot.lane.b32.xlu0 %v791, 8
      %v951 = vpop.permute.xlu0 %950
      %952 = vrot.lane.b32.xlu0 %v792, 8
      %v953 = vpop.permute.xlu0 %952
      %954 = vrot.lane.b32.xlu0 %v793, 8
      %v955 = vpop.permute.xlu0 %954
      %956 = vrot.lane.b32.xlu0 %v794, 8
      %v957 = vpop.permute.xlu0 %956
      %958 = vrot.lane.b32.xlu0 %v795, 8
      %v959 = vpop.permute.xlu0 %958
      %960 = vrot.lane.b32.xlu0 %v796, 8
      %v961 = vpop.permute.xlu0 %960
      %962 = vrot.lane.b32.xlu0 %v797, 8
      %v963 = vpop.permute.xlu0 %962
      %964 = vrot.lane.b32.xlu0 %v798, 8
      %v965 = vpop.permute.xlu0 %964
      %966 = vrot.lane.b32.xlu0 %v799, 8
      %v967 = vpop.permute.xlu0 %966
      %968 = vrot.lane.b32.xlu0 %v800, 8
      %v969 = vpop.permute.xlu0 %968
      %970 = vrot.lane.b32.xlu0 %v801, 8
      %v971 = vpop.permute.xlu0 %970
      %972 = vrot.lane.b32.xlu0 %v802, 8
      %v973 = vpop.permute.xlu0 %972
      %974 = vrot.lane.b32.xlu0 %v803, 8
      %v975 = vpop.permute.xlu0 %974
      %976 = vrot.lane.b32.xlu0 %v804, 8
      %v977 = vpop.permute.xlu0 %976
      %978 = vrot.lane.b32.xlu0 %v805, 8
      %v979 = vpop.permute.xlu0 %978
      %980 = vrot.lane.b32.xlu0 %v806, 8
      %v981 = vpop.permute.xlu0 %980
      %982 = vrot.lane.b32.xlu0 %v807, 8
      %v983 = vpop.permute.xlu0 %982
      %984 = vrot.lane.b32.xlu0 %v808, 8
      %v985 = vpop.permute.xlu0 %984
      %986 = vrot.lane.b32.xlu0 %v809, 8
      %v987 = vpop.permute.xlu0 %986
      %988 = vrot.lane.b32.xlu0 %v810, 8
      %v989 = vpop.permute.xlu0 %988
      %990 = vrot.lane.b32.xlu0 %v811, 8
      %v991 = vpop.permute.xlu0 %990
      %992 = vrot.lane.b32.xlu0 %v812, 8
      %v993 = vpop.permute.xlu0 %992
      %994 = vrot.lane.b32.xlu0 %v813, 8
      %v995 = vpop.permute.xlu0 %994
      %996 = vrot.lane.b32.xlu0 %v814, 8
      %v997 = vpop.permute.xlu0 %996
      %998 = vrot.lane.b32.xlu0 %v815, 8
      %v999 = vpop.permute.xlu0 %998
      %1000 = vrot.lane.b32.xlu0 %v816, 8
      %v1001 = vpop.permute.xlu0 %1000
      %1002 = vrot.lane.b32.xlu0 %v817, 8
      %v1003 = vpop.permute.xlu0 %1002
      %1004 = vrot.lane.b32.xlu0 %v818, 8
      %v1005 = vpop.permute.xlu0 %1004
      %1006 = vrot.lane.b32.xlu0 %v819, 8
      %v1007 = vpop.permute.xlu0 %1006
      %1008 = vrot.lane.b32.xlu0 %v820, 8
      %v1009 = vpop.permute.xlu0 %1008
      %1010 = vrot.lane.b32.xlu0 %v821, 8
      %v1011 = vpop.permute.xlu0 %1010
      %1012 = vrot.lane.b32.xlu0 %v822, 8
      %v1013 = vpop.permute.xlu0 %1012
      %1014 = vrot.lane.b32.xlu0 %v823, 8
      %v1015 = vpop.permute.xlu0 %1014
      %1016 = vrot.lane.b32.xlu0 %v824, 8
      %v1017 = vpop.permute.xlu0 %1016
      %1018 = vrot.lane.b32.xlu0 %v825, 8
      %v1019 = vpop.permute.xlu0 %1018
      %1020 = vrot.lane.b32.xlu0 %v826, 8
      %v1021 = vpop.permute.xlu0 %1020
      %1022 = vrot.lane.b32.xlu0 %v827, 8
      %v1023 = vpop.permute.xlu0 %1022
      %1024 = vrot.lane.b32.xlu0 %v828, 8
      %v1025 = vpop.permute.xlu0 %1024
      %1026 = vrot.lane.b32.xlu0 %v829, 8
      %v1027 = vpop.permute.xlu0 %1026
      %1028 = vrot.lane.b32.xlu0 %v830, 8
      %v1029 = vpop.permute.xlu0 %1028
      %1030 = vrot.lane.b32.xlu0 %v831, 8
      %v1031 = vpop.permute.xlu0 %1030
      %1032 = vrot.lane.b32.xlu0 %v832, 8
      %v1033 = vpop.permute.xlu0 %1032
      %1034 = vrot.lane.b32.xlu0 %v833, 8
      %v1035 = vpop.permute.xlu0 %1034
      %1036 = vrot.lane.b32.xlu0 %v834, 8
      %v1037 = vpop.permute.xlu0 %1036
      %1038 = vrot.lane.b32.xlu0 %v835, 8
      %v1039 = vpop.permute.xlu0 %1038
      %1040 = vrot.lane.b32.xlu0 %v836, 8
      %v1041 = vpop.permute.xlu0 %1040
      %1042 = vrot.lane.b32.xlu0 %v837, 8
      %v1043 = vpop.permute.xlu0 %1042
      %1044 = vrot.lane.b32.xlu0 %v838, 8
      %v1045 = vpop.permute.xlu0 %1044
      %1046 = vrot.lane.b32.xlu0 %v839, 8
      %v1047 = vpop.permute.xlu0 %1046
      %1048 = vrot.lane.b32.xlu0 %v840, 8
      %v1049 = vpop.permute.xlu0 %1048
      %1050 = vrot.lane.b32.xlu0 %v841, 8
      %v1051 = vpop.permute.xlu0 %1050
      %1052 = vrot.lane.b32.xlu0 %v842, 8
      %v1053 = vpop.permute.xlu0 %1052
      %1054 = vrot.lane.b32.xlu0 %v843, 8
      %v1055 = vpop.permute.xlu0 %1054
      %1056 = vrot.lane.b32.xlu0 %v844, 8
      %v1057 = vpop.permute.xlu0 %1056
      %1058 = vrot.lane.b32.xlu0 %v845, 8
      %v1059 = vpop.permute.xlu0 %1058
      %1060 = vrot.lane.b32.xlu0 %v846, 8
      %v1061 = vpop.permute.xlu0 %1060
      %1062 = vrot.lane.b32.xlu0 %v847, 8
      %v1063 = vpop.permute.xlu0 %1062
      %vm1136 = vcmask 97344
      %1137 = vst.msk [vmem:[#allocation2] sm:$0xff] %vm1136, %v921
      %1138 = vst.msk [vmem:[#allocation2 + $0x8] sm:$0xff] %vm1136, %v923
      %1139 = vst.msk [vmem:[#allocation2 + $0x10] sm:$0xff] %vm1136, %v925
      %1140 = vst.msk [vmem:[#allocation2 + $0x18] sm:$0xff] %vm1136, %v927
      %1141 = vst.msk [vmem:[#allocation2 + $0x20] sm:$0xff] %vm1136, %v929
      %1142 = vst.msk [vmem:[#allocation2 + $0x28] sm:$0xff] %vm1136, %v931
      %1143 = vst.msk [vmem:[#allocation2 + $0x30] sm:$0xff] %vm1136, %v933
      %1144 = vst.msk [vmem:[#allocation2 + $0x38] sm:$0xff] %vm1136, %v935
      %1145 = vst.msk [vmem:[#allocation2 + $0x40] sm:$0xff] %vm1136, %v937
      %1146 = vst.msk [vmem:[#allocation2 + $0x48] sm:$0xff] %vm1136, %v939
      %1147 = vst.msk [vmem:[#allocation2 + $0x50] sm:$0xff] %vm1136, %v941
      %1148 = vst.msk [vmem:[#allocation2 + $0x58] sm:$0xff] %vm1136, %v943
      %1149 = vst.msk [vmem:[#allocation2 + $0x60] sm:$0xff] %vm1136, %v945
      %1150 = vst.msk [vmem:[#allocation2 + $0x68] sm:$0xff] %vm1136, %v947
      %1151 = vst.msk [vmem:[#allocation2 + $0x70] sm:$0xff] %vm1136, %v949
      %1152 = vst.msk [vmem:[#allocation2 + $0x78] sm:$0xff] %vm1136, %v951
      %1153 = vst.msk [vmem:[#allocation2 + $0x80] sm:$0xff] %vm1136, %v953
      %1154 = vst.msk [vmem:[#allocation2 + $0x88] sm:$0xff] %vm1136, %v955
      %1155 = vst.msk [vmem:[#allocation2 + $0x90] sm:$0xff] %vm1136, %v957
      %1156 = vst.msk [vmem:[#allocation2 + $0x98] sm:$0xff] %vm1136, %v959
      %1157 = vst.msk [vmem:[#allocation2 + $0xa0] sm:$0xff] %vm1136, %v961
      %1158 = vst.msk [vmem:[#allocation2 + $0xa8] sm:$0xff] %vm1136, %v963
      %1159 = vst.msk [vmem:[#allocation2 + $0xb0] sm:$0xff] %vm1136, %v965
      %1160 = vst.msk [vmem:[#allocation2 + $0xb8] sm:$0xff] %vm1136, %v967
      %1161 = vst.msk [vmem:[#allocation2 + $0xc0] sm:$0xff] %vm1136, %v969
      %1162 = vst.msk [vmem:[#allocation2 + $0xc8] sm:$0xff] %vm1136, %v971
      %1163 = vst.msk [vmem:[#allocation2 + $0xd0] sm:$0xff] %vm1136, %v973
      %1164 = vst.msk [vmem:[#allocation2 + $0xd8] sm:$0xff] %vm1136, %v975
      %1165 = vst.msk [vmem:[#allocation2 + $0xe0] sm:$0xff] %vm1136, %v977
      %1166 = vst.msk [vmem:[#allocation2 + $0xe8] sm:$0xff] %vm1136, %v979
      %1167 = vst.msk [vmem:[#allocation2 + $0xf0] sm:$0xff] %vm1136, %v981
      %1168 = vst.msk [vmem:[#allocation2 + $0xf8] sm:$0xff] %vm1136, %v983
      %1169 = vst.msk [vmem:[#allocation2 + $0x100] sm:$0xff] %vm1136, %v985
      %1170 = vst.msk [vmem:[#allocation2 + $0x108] sm:$0xff] %vm1136, %v987
      %1171 = vst.msk [vmem:[#allocation2 + $0x110] sm:$0xff] %vm1136, %v989
      %1172 = vst.msk [vmem:[#allocation2 + $0x118] sm:$0xff] %vm1136, %v991
      %1173 = vst.msk [vmem:[#allocation2 + $0x120] sm:$0xff] %vm1136, %v993
      %1174 = vst.msk [vmem:[#allocation2 + $0x128] sm:$0xff] %vm1136, %v995
      %1175 = vst.msk [vmem:[#allocation2 + $0x130] sm:$0xff] %vm1136, %v997
      %1176 = vst.msk [vmem:[#allocation2 + $0x138] sm:$0xff] %vm1136, %v999
      %1177 = vst.msk [vmem:[#allocation2 + $0x140] sm:$0xff] %vm1136, %v1001
      %1178 = vst.msk [vmem:[#allocation2 + $0x148] sm:$0xff] %vm1136, %v1003
      %1179 = vst.msk [vmem:[#allocation2 + $0x150] sm:$0xff] %vm1136, %v1005
      %1180 = vst.msk [vmem:[#allocation2 + $0x158] sm:$0xff] %vm1136, %v1007
      %1181 = vst.msk [vmem:[#allocation2 + $0x160] sm:$0xff] %vm1136, %v1009
      %1182 = vst.msk [vmem:[#allocation2 + $0x168] sm:$0xff] %vm1136, %v1011
      %1183 = vst.msk [vmem:[#allocation2 + $0x170] sm:$0xff] %vm1136, %v1013
      %1184 = vst.msk [vmem:[#allocation2 + $0x178] sm:$0xff] %vm1136, %v1015
      %1185 = vst.msk [vmem:[#allocation2 + $0x180] sm:$0xff] %vm1136, %v1017
      %1186 = vst.msk [vmem:[#allocation2 + $0x188] sm:$0xff] %vm1136, %v1019
      %1187 = vst.msk [vmem:[#allocation2 + $0x190] sm:$0xff] %vm1136, %v1021
      %1188 = vst.msk [vmem:[#allocation2 + $0x198] sm:$0xff] %vm1136, %v1023
      %1189 = vst.msk [vmem:[#allocation2 + $0x1a0] sm:$0xff] %vm1136, %v1025
      %1190 = vst.msk [vmem:[#allocation2 + $0x1a8] sm:$0xff] %vm1136, %v1027
      %1191 = vst.msk [vmem:[#allocation2 + $0x1b0] sm:$0xff] %vm1136, %v1029
      %1192 = vst.msk [vmem:[#allocation2 + $0x1b8] sm:$0xff] %vm1136, %v1031
      %1193 = vst.msk [vmem:[#allocation2 + $0x1c0] sm:$0xff] %vm1136, %v1033
      %1194 = vst.msk [vmem:[#allocation2 + $0x1c8] sm:$0xff] %vm1136, %v1035
      %1195 = vst.msk [vmem:[#allocation2 + $0x1d0] sm:$0xff] %vm1136, %v1037
      %1196 = vst.msk [vmem:[#allocation2 + $0x1d8] sm:$0xff] %vm1136, %v1039
      %1197 = vst.msk [vmem:[#allocation2 + $0x1e0] sm:$0xff] %vm1136, %v1041
      %1198 = vst.msk [vmem:[#allocation2 + $0x1e8] sm:$0xff] %vm1136, %v1043
      %1199 = vst.msk [vmem:[#allocation2 + $0x1f0] sm:$0xff] %vm1136, %v1045
      %1200 = vst.msk [vmem:[#allocation2 + $0x1f8] sm:$0xff] %vm1136, %v1047
      %1201 = vst.msk [vmem:[#allocation2 + $0x200] sm:$0xff] %vm1136, %v1049
      %1202 = vst.msk [vmem:[#allocation2 + $0x208] sm:$0xff] %vm1136, %v1051
      %1203 = vst.msk [vmem:[#allocation2 + $0x210] sm:$0xff] %vm1136, %v1053
      %1204 = vst.msk [vmem:[#allocation2 + $0x218] sm:$0xff] %vm1136, %v1055
      %1205 = vst.msk [vmem:[#allocation2 + $0x220] sm:$0xff] %vm1136, %v1057
      %1206 = vst.msk [vmem:[#allocation2 + $0x228] sm:$0xff] %vm1136, %v1059
      %1207 = vst.msk [vmem:[#allocation2 + $0x230] sm:$0xff] %vm1136, %v1061
      %1208 = vst.msk [vmem:[#allocation2 + $0x238] sm:$0xff] %vm1136, %v1063
      %s1209 = scalar_lea.vmem %s192, 40
      %v1210 = vld [vmem:[%s1209] sm:$0xff]
      %v1211 = vld [vmem:[%s1209 + $0x8] sm:$0xff]
      %v1212 = vld [vmem:[%s1209 + $0x10] sm:$0xff]
      %v1213 = vld [vmem:[%s1209 + $0x18] sm:$0xff]
      %v1214 = vld [vmem:[%s1209 + $0x28] sm:$0xff]
      %v1215 = vld [vmem:[%s1209 + $0x30] sm:$0xff]
      %v1216 = vld [vmem:[%s1209 + $0x38] sm:$0xff]
      %v1217 = vld [vmem:[%s1209 + $0x40] sm:$0xff]
      %v1218 = vld [vmem:[%s1209 + $0x50] sm:$0xff]
      %v1219 = vld [vmem:[%s1209 + $0x58] sm:$0xff]
      %v1220 = vld [vmem:[%s1209 + $0x60] sm:$0xff]
      %v1221 = vld [vmem:[%s1209 + $0x68] sm:$0xff]
      %v1222 = vld [vmem:[%s1209 + $0x78] sm:$0xff]
      %v1223 = vld [vmem:[%s1209 + $0x80] sm:$0xff]
      %v1224 = vld [vmem:[%s1209 + $0x88] sm:$0xff]
      %v1225 = vld [vmem:[%s1209 + $0x90] sm:$0xff]
      %v1226 = vld [vmem:[%s1209 + $0xa0] sm:$0xff]
      %v1227 = vld [vmem:[%s1209 + $0xa8] sm:$0xff]
      %v1228 = vld [vmem:[%s1209 + $0xb0] sm:$0xff]
      %v1229 = vld [vmem:[%s1209 + $0xb8] sm:$0xff]
      %v1230 = vld [vmem:[%s1209 + $0xc8] sm:$0xff]
      %v1231 = vld [vmem:[%s1209 + $0xd0] sm:$0xff]
      %v1232 = vld [vmem:[%s1209 + $0xd8] sm:$0xff]
      %v1233 = vld [vmem:[%s1209 + $0xe0] sm:$0xff]
      %v1234 = vld [vmem:[%s1209 + $0xf0] sm:$0xff]
      %v1235 = vld [vmem:[%s1209 + $0xf8] sm:$0xff]
      %v1236 = vld [vmem:[%s1209 + $0x100] sm:$0xff]
      %v1237 = vld [vmem:[%s1209 + $0x108] sm:$0xff]
      %v1238 = vld [vmem:[%s1209 + $0x118] sm:$0xff]
      %v1239 = vld [vmem:[%s1209 + $0x120] sm:$0xff]
      %v1240 = vld [vmem:[%s1209 + $0x128] sm:$0xff]
      %v1241 = vld [vmem:[%s1209 + $0x130] sm:$0xff]
      %v1242 = vld [vmem:[%s1209 + $0x140] sm:$0xff]
      %v1243 = vld [vmem:[%s1209 + $0x148] sm:$0xff]
      %v1244 = vld [vmem:[%s1209 + $0x150] sm:$0xff]
      %v1245 = vld [vmem:[%s1209 + $0x158] sm:$0xff]
      %v1246 = vld [vmem:[%s1209 + $0x168] sm:$0xff]
      %v1247 = vld [vmem:[%s1209 + $0x170] sm:$0xff]
      %v1248 = vld [vmem:[%s1209 + $0x178] sm:$0xff]
      %v1249 = vld [vmem:[%s1209 + $0x180] sm:$0xff]
      %v1250 = vld [vmem:[%s1209 + $0x190] sm:$0xff]
      %v1251 = vld [vmem:[%s1209 + $0x198] sm:$0xff]
      %v1252 = vld [vmem:[%s1209 + $0x1a0] sm:$0xff]
      %v1253 = vld [vmem:[%s1209 + $0x1a8] sm:$0xff]
      %v1254 = vld [vmem:[%s1209 + $0x1b8] sm:$0xff]
      %v1255 = vld [vmem:[%s1209 + $0x1c0] sm:$0xff]
      %v1256 = vld [vmem:[%s1209 + $0x1c8] sm:$0xff]
      %v1257 = vld [vmem:[%s1209 + $0x1d0] sm:$0xff]
      %v1258 = vld [vmem:[%s1209 + $0x1e0] sm:$0xff]
      %v1259 = vld [vmem:[%s1209 + $0x1e8] sm:$0xff]
      %v1260 = vld [vmem:[%s1209 + $0x1f0] sm:$0xff]
      %v1261 = vld [vmem:[%s1209 + $0x1f8] sm:$0xff]
      %v1262 = vld [vmem:[%s1209 + $0x208] sm:$0xff]
      %v1263 = vld [vmem:[%s1209 + $0x210] sm:$0xff]
      %v1264 = vld [vmem:[%s1209 + $0x218] sm:$0xff]
      %v1265 = vld [vmem:[%s1209 + $0x220] sm:$0xff]
      %v1266 = vld [vmem:[%s1209 + $0x230] sm:$0xff]
      %v1267 = vld [vmem:[%s1209 + $0x238] sm:$0xff]
      %v1268 = vld [vmem:[%s1209 + $0x240] sm:$0xff]
      %v1269 = vld [vmem:[%s1209 + $0x248] sm:$0xff]
      %v1270 = vld [vmem:[%s1209 + $0x258] sm:$0xff]
      %v1271 = vld [vmem:[%s1209 + $0x260] sm:$0xff]
      %v1272 = vld [vmem:[%s1209 + $0x268] sm:$0xff]
      %v1273 = vld [vmem:[%s1209 + $0x270] sm:$0xff]
      %v1274 = vld [vmem:[%s1209 + $0x280] sm:$0xff]
      %v1275 = vld [vmem:[%s1209 + $0x288] sm:$0xff]
      %v1276 = vld [vmem:[%s1209 + $0x290] sm:$0xff]
      %v1277 = vld [vmem:[%s1209 + $0x298] sm:$0xff]
      %v1278 = vld [vmem:[%s1209 + $0x2a8] sm:$0xff]
      %v1279 = vld [vmem:[%s1209 + $0x2b0] sm:$0xff]
      %v1280 = vld [vmem:[%s1209 + $0x2b8] sm:$0xff]
      %v1281 = vld [vmem:[%s1209 + $0x2c0] sm:$0xff]
      %1354 = vrot.lane.b32.xlu0 %v1210, 12
      %v1355 = vpop.permute.xlu0 %1354
      %1356 = vrot.lane.b32.xlu0 %v1211, 12
      %v1357 = vpop.permute.xlu0 %1356
      %1358 = vrot.lane.b32.xlu0 %v1212, 12
      %v1359 = vpop.permute.xlu0 %1358
      %1360 = vrot.lane.b32.xlu0 %v1213, 12
      %v1361 = vpop.permute.xlu0 %1360
      %1362 = vrot.lane.b32.xlu0 %v1214, 12
      %v1363 = vpop.permute.xlu0 %1362
      %1364 = vrot.lane.b32.xlu0 %v1215, 12
      %v1365 = vpop.permute.xlu0 %1364
      %1366 = vrot.lane.b32.xlu0 %v1216, 12
      %v1367 = vpop.permute.xlu0 %1366
      %1368 = vrot.lane.b32.xlu0 %v1217, 12
      %v1369 = vpop.permute.xlu0 %1368
      %1370 = vrot.lane.b32.xlu0 %v1218, 12
      %v1371 = vpop.permute.xlu0 %1370
      %1372 = vrot.lane.b32.xlu0 %v1219, 12
      %v1373 = vpop.permute.xlu0 %1372
      %1374 = vrot.lane.b32.xlu0 %v1220, 12
      %v1375 = vpop.permute.xlu0 %1374
      %1376 = vrot.lane.b32.xlu0 %v1221, 12
      %v1377 = vpop.permute.xlu0 %1376
      %1378 = vrot.lane.b32.xlu0 %v1222, 12
      %v1379 = vpop.permute.xlu0 %1378
      %1380 = vrot.lane.b32.xlu0 %v1223, 12
      %v1381 = vpop.permute.xlu0 %1380
      %1382 = vrot.lane.b32.xlu0 %v1224, 12
      %v1383 = vpop.permute.xlu0 %1382
      %1384 = vrot.lane.b32.xlu0 %v1225, 12
      %v1385 = vpop.permute.xlu0 %1384
      %1386 = vrot.lane.b32.xlu0 %v1226, 12
      %v1387 = vpop.permute.xlu0 %1386
      %1388 = vrot.lane.b32.xlu0 %v1227, 12
      %v1389 = vpop.permute.xlu0 %1388
      %1390 = vrot.lane.b32.xlu0 %v1228, 12
      %v1391 = vpop.permute.xlu0 %1390
      %1392 = vrot.lane.b32.xlu0 %v1229, 12
      %v1393 = vpop.permute.xlu0 %1392
      %1394 = vrot.lane.b32.xlu0 %v1230, 12
      %v1395 = vpop.permute.xlu0 %1394
      %1396 = vrot.lane.b32.xlu0 %v1231, 12
      %v1397 = vpop.permute.xlu0 %1396
      %1398 = vrot.lane.b32.xlu0 %v1232, 12
      %v1399 = vpop.permute.xlu0 %1398
      %1400 = vrot.lane.b32.xlu0 %v1233, 12
      %v1401 = vpop.permute.xlu0 %1400
      %1402 = vrot.lane.b32.xlu0 %v1234, 12
      %v1403 = vpop.permute.xlu0 %1402
      %1404 = vrot.lane.b32.xlu0 %v1235, 12
      %v1405 = vpop.permute.xlu0 %1404
      %1406 = vrot.lane.b32.xlu0 %v1236, 12
      %v1407 = vpop.permute.xlu0 %1406
      %1408 = vrot.lane.b32.xlu0 %v1237, 12
      %v1409 = vpop.permute.xlu0 %1408
      %1410 = vrot.lane.b32.xlu0 %v1238, 12
      %v1411 = vpop.permute.xlu0 %1410
      %1412 = vrot.lane.b32.xlu0 %v1239, 12
      %v1413 = vpop.permute.xlu0 %1412
      %1414 = vrot.lane.b32.xlu0 %v1240, 12
      %v1415 = vpop.permute.xlu0 %1414
      %1416 = vrot.lane.b32.xlu0 %v1241, 12
      %v1417 = vpop.permute.xlu0 %1416
      %1418 = vrot.lane.b32.xlu0 %v1242, 12
      %v1419 = vpop.permute.xlu0 %1418
      %1420 = vrot.lane.b32.xlu0 %v1243, 12
      %v1421 = vpop.permute.xlu0 %1420
      %1422 = vrot.lane.b32.xlu0 %v1244, 12
      %v1423 = vpop.permute.xlu0 %1422
      %1424 = vrot.lane.b32.xlu0 %v1245, 12
      %v1425 = vpop.permute.xlu0 %1424
      %1426 = vrot.lane.b32.xlu0 %v1246, 12
      %v1427 = vpop.permute.xlu0 %1426
      %1428 = vrot.lane.b32.xlu0 %v1247, 12
      %v1429 = vpop.permute.xlu0 %1428
      %1430 = vrot.lane.b32.xlu0 %v1248, 12
      %v1431 = vpop.permute.xlu0 %1430
      %1432 = vrot.lane.b32.xlu0 %v1249, 12
      %v1433 = vpop.permute.xlu0 %1432
      %1434 = vrot.lane.b32.xlu0 %v1250, 12
      %v1435 = vpop.permute.xlu0 %1434
      %1436 = vrot.lane.b32.xlu0 %v1251, 12
      %v1437 = vpop.permute.xlu0 %1436
      %1438 = vrot.lane.b32.xlu0 %v1252, 12
      %v1439 = vpop.permute.xlu0 %1438
      %1440 = vrot.lane.b32.xlu0 %v1253, 12
      %v1441 = vpop.permute.xlu0 %1440
      %1442 = vrot.lane.b32.xlu0 %v1254, 12
      %v1443 = vpop.permute.xlu0 %1442
      %1444 = vrot.lane.b32.xlu0 %v1255, 12
      %v1445 = vpop.permute.xlu0 %1444
      %1446 = vrot.lane.b32.xlu0 %v1256, 12
      %v1447 = vpop.permute.xlu0 %1446
      %1448 = vrot.lane.b32.xlu0 %v1257, 12
      %v1449 = vpop.permute.xlu0 %1448
      %1450 = vrot.lane.b32.xlu0 %v1258, 12
      %v1451 = vpop.permute.xlu0 %1450
      %1452 = vrot.lane.b32.xlu0 %v1259, 12
      %v1453 = vpop.permute.xlu0 %1452
      %1454 = vrot.lane.b32.xlu0 %v1260, 12
      %v1455 = vpop.permute.xlu0 %1454
      %1456 = vrot.lane.b32.xlu0 %v1261, 12
      %v1457 = vpop.permute.xlu0 %1456
      %1458 = vrot.lane.b32.xlu0 %v1262, 12
      %v1459 = vpop.permute.xlu0 %1458
      %1460 = vrot.lane.b32.xlu0 %v1263, 12
      %v1461 = vpop.permute.xlu0 %1460
      %1462 = vrot.lane.b32.xlu0 %v1264, 12
      %v1463 = vpop.permute.xlu0 %1462
      %1464 = vrot.lane.b32.xlu0 %v1265, 12
      %v1465 = vpop.permute.xlu0 %1464
      %1466 = vrot.lane.b32.xlu0 %v1266, 12
      %v1467 = vpop.permute.xlu0 %1466
      %1468 = vrot.lane.b32.xlu0 %v1267, 12
      %v1469 = vpop.permute.xlu0 %1468
      %1470 = vrot.lane.b32.xlu0 %v1268, 12
      %v1471 = vpop.permute.xlu0 %1470
      %1472 = vrot.lane.b32.xlu0 %v1269, 12
      %v1473 = vpop.permute.xlu0 %1472
      %1474 = vrot.lane.b32.xlu0 %v1270, 12
      %v1475 = vpop.permute.xlu0 %1474
      %1476 = vrot.lane.b32.xlu0 %v1271, 12
      %v1477 = vpop.permute.xlu0 %1476
      %1478 = vrot.lane.b32.xlu0 %v1272, 12
      %v1479 = vpop.permute.xlu0 %1478
      %1480 = vrot.lane.b32.xlu0 %v1273, 12
      %v1481 = vpop.permute.xlu0 %1480
      %1482 = vrot.lane.b32.xlu0 %v1274, 12
      %v1483 = vpop.permute.xlu0 %1482
      %1484 = vrot.lane.b32.xlu0 %v1275, 12
      %v1485 = vpop.permute.xlu0 %1484
      %1486 = vrot.lane.b32.xlu0 %v1276, 12
      %v1487 = vpop.permute.xlu0 %1486
      %1488 = vrot.lane.b32.xlu0 %v1277, 12
      %v1489 = vpop.permute.xlu0 %1488
      %1490 = vrot.lane.b32.xlu0 %v1278, 12
      %v1491 = vpop.permute.xlu0 %1490
      %1492 = vrot.lane.b32.xlu0 %v1279, 12
      %v1493 = vpop.permute.xlu0 %1492
      %1494 = vrot.lane.b32.xlu0 %v1280, 12
      %v1495 = vpop.permute.xlu0 %1494
      %1496 = vrot.lane.b32.xlu0 %v1281, 12
      %v1497 = vpop.permute.xlu0 %1496
      %vm1570 = vcmask 130144
      %1571 = vst.msk [vmem:[#allocation2] sm:$0xff] %vm1570, %v1355
      %1572 = vst.msk [vmem:[#allocation2 + $0x8] sm:$0xff] %vm1570, %v1357
      %1573 = vst.msk [vmem:[#allocation2 + $0x10] sm:$0xff] %vm1570, %v1359
      %1574 = vst.msk [vmem:[#allocation2 + $0x18] sm:$0xff] %vm1570, %v1361
      %1575 = vst.msk [vmem:[#allocation2 + $0x20] sm:$0xff] %vm1570, %v1363
      %1576 = vst.msk [vmem:[#allocation2 + $0x28] sm:$0xff] %vm1570, %v1365
      %1577 = vst.msk [vmem:[#allocation2 + $0x30] sm:$0xff] %vm1570, %v1367
      %1578 = vst.msk [vmem:[#allocation2 + $0x38] sm:$0xff] %vm1570, %v1369
      %1579 = vst.msk [vmem:[#allocation2 + $0x40] sm:$0xff] %vm1570, %v1371
      %1580 = vst.msk [vmem:[#allocation2 + $0x48] sm:$0xff] %vm1570, %v1373
      %1581 = vst.msk [vmem:[#allocation2 + $0x50] sm:$0xff] %vm1570, %v1375
      %1582 = vst.msk [vmem:[#allocation2 + $0x58] sm:$0xff] %vm1570, %v1377
      %1583 = vst.msk [vmem:[#allocation2 + $0x60] sm:$0xff] %vm1570, %v1379
      %1584 = vst.msk [vmem:[#allocation2 + $0x68] sm:$0xff] %vm1570, %v1381
      %1585 = vst.msk [vmem:[#allocation2 + $0x70] sm:$0xff] %vm1570, %v1383
      %1586 = vst.msk [vmem:[#allocation2 + $0x78] sm:$0xff] %vm1570, %v1385
      %1587 = vst.msk [vmem:[#allocation2 + $0x80] sm:$0xff] %vm1570, %v1387
      %1588 = vst.msk [vmem:[#allocation2 + $0x88] sm:$0xff] %vm1570, %v1389
      %1589 = vst.msk [vmem:[#allocation2 + $0x90] sm:$0xff] %vm1570, %v1391
      %1590 = vst.msk [vmem:[#allocation2 + $0x98] sm:$0xff] %vm1570, %v1393
      %1591 = vst.msk [vmem:[#allocation2 + $0xa0] sm:$0xff] %vm1570, %v1395
      %1592 = vst.msk [vmem:[#allocation2 + $0xa8] sm:$0xff] %vm1570, %v1397
      %1593 = vst.msk [vmem:[#allocation2 + $0xb0] sm:$0xff] %vm1570, %v1399
      %1594 = vst.msk [vmem:[#allocation2 + $0xb8] sm:$0xff] %vm1570, %v1401
      %1595 = vst.msk [vmem:[#allocation2 + $0xc0] sm:$0xff] %vm1570, %v1403
      %1596 = vst.msk [vmem:[#allocation2 + $0xc8] sm:$0xff] %vm1570, %v1405
      %1597 = vst.msk [vmem:[#allocation2 + $0xd0] sm:$0xff] %vm1570, %v1407
      %1598 = vst.msk [vmem:[#allocation2 + $0xd8] sm:$0xff] %vm1570, %v1409
      %1599 = vst.msk [vmem:[#allocation2 + $0xe0] sm:$0xff] %vm1570, %v1411
      %1600 = vst.msk [vmem:[#allocation2 + $0xe8] sm:$0xff] %vm1570, %v1413
      %1601 = vst.msk [vmem:[#allocation2 + $0xf0] sm:$0xff] %vm1570, %v1415
      %1602 = vst.msk [vmem:[#allocation2 + $0xf8] sm:$0xff] %vm1570, %v1417
      %1603 = vst.msk [vmem:[#allocation2 + $0x100] sm:$0xff] %vm1570, %v1419
      %1604 = vst.msk [vmem:[#allocation2 + $0x108] sm:$0xff] %vm1570, %v1421
      %1605 = vst.msk [vmem:[#allocation2 + $0x110] sm:$0xff] %vm1570, %v1423
      %1606 = vst.msk [vmem:[#allocation2 + $0x118] sm:$0xff] %vm1570, %v1425
      %1607 = vst.msk [vmem:[#allocation2 + $0x120] sm:$0xff] %vm1570, %v1427
      %1608 = vst.msk [vmem:[#allocation2 + $0x128] sm:$0xff] %vm1570, %v1429
      %1609 = vst.msk [vmem:[#allocation2 + $0x130] sm:$0xff] %vm1570, %v1431
      %1610 = vst.msk [vmem:[#allocation2 + $0x138] sm:$0xff] %vm1570, %v1433
      %1611 = vst.msk [vmem:[#allocation2 + $0x140] sm:$0xff] %vm1570, %v1435
      %1612 = vst.msk [vmem:[#allocation2 + $0x148] sm:$0xff] %vm1570, %v1437
      %1613 = vst.msk [vmem:[#allocation2 + $0x150] sm:$0xff] %vm1570, %v1439
      %1614 = vst.msk [vmem:[#allocation2 + $0x158] sm:$0xff] %vm1570, %v1441
      %1615 = vst.msk [vmem:[#allocation2 + $0x160] sm:$0xff] %vm1570, %v1443
      %1616 = vst.msk [vmem:[#allocation2 + $0x168] sm:$0xff] %vm1570, %v1445
      %1617 = vst.msk [vmem:[#allocation2 + $0x170] sm:$0xff] %vm1570, %v1447
      %1618 = vst.msk [vmem:[#allocation2 + $0x178] sm:$0xff] %vm1570, %v1449
      %1619 = vst.msk [vmem:[#allocation2 + $0x180] sm:$0xff] %vm1570, %v1451
      %1620 = vst.msk [vmem:[#allocation2 + $0x188] sm:$0xff] %vm1570, %v1453
      %1621 = vst.msk [vmem:[#allocation2 + $0x190] sm:$0xff] %vm1570, %v1455
      %1622 = vst.msk [vmem:[#allocation2 + $0x198] sm:$0xff] %vm1570, %v1457
      %1623 = vst.msk [vmem:[#allocation2 + $0x1a0] sm:$0xff] %vm1570, %v1459
      %1624 = vst.msk [vmem:[#allocation2 + $0x1a8] sm:$0xff] %vm1570, %v1461
      %1625 = vst.msk [vmem:[#allocation2 + $0x1b0] sm:$0xff] %vm1570, %v1463
      %1626 = vst.msk [vmem:[#allocation2 + $0x1b8] sm:$0xff] %vm1570, %v1465
      %1627 = vst.msk [vmem:[#allocation2 + $0x1c0] sm:$0xff] %vm1570, %v1467
      %1628 = vst.msk [vmem:[#allocation2 + $0x1c8] sm:$0xff] %vm1570, %v1469
      %1629 = vst.msk [vmem:[#allocation2 + $0x1d0] sm:$0xff] %vm1570, %v1471
      %1630 = vst.msk [vmem:[#allocation2 + $0x1d8] sm:$0xff] %vm1570, %v1473
      %1631 = vst.msk [vmem:[#allocation2 + $0x1e0] sm:$0xff] %vm1570, %v1475
      %1632 = vst.msk [vmem:[#allocation2 + $0x1e8] sm:$0xff] %vm1570, %v1477
      %1633 = vst.msk [vmem:[#allocation2 + $0x1f0] sm:$0xff] %vm1570, %v1479
      %1634 = vst.msk [vmem:[#allocation2 + $0x1f8] sm:$0xff] %vm1570, %v1481
      %1635 = vst.msk [vmem:[#allocation2 + $0x200] sm:$0xff] %vm1570, %v1483
      %1636 = vst.msk [vmem:[#allocation2 + $0x208] sm:$0xff] %vm1570, %v1485
      %1637 = vst.msk [vmem:[#allocation2 + $0x210] sm:$0xff] %vm1570, %v1487
      %1638 = vst.msk [vmem:[#allocation2 + $0x218] sm:$0xff] %vm1570, %v1489
      %1639 = vst.msk [vmem:[#allocation2 + $0x220] sm:$0xff] %vm1570, %v1491
      %1640 = vst.msk [vmem:[#allocation2 + $0x228] sm:$0xff] %vm1570, %v1493
      %1641 = vst.msk [vmem:[#allocation2 + $0x230] sm:$0xff] %vm1570, %v1495
      %1642 = vst.msk [vmem:[#allocation2 + $0x238] sm:$0xff] %vm1570, %v1497
      %v1643 = vld [vmem:[%s1209 + $0x1] sm:$0xff]
      %v1644 = vld [vmem:[%s1209 + $0x9] sm:$0xff]
      %v1645 = vld [vmem:[%s1209 + $0x11] sm:$0xff]
      %v1646 = vld [vmem:[%s1209 + $0x19] sm:$0xff]
      %v1647 = vld [vmem:[%s1209 + $0x29] sm:$0xff]
      %v1648 = vld [vmem:[%s1209 + $0x31] sm:$0xff]
      %v1649 = vld [vmem:[%s1209 + $0x39] sm:$0xff]
      %v1650 = vld [vmem:[%s1209 + $0x41] sm:$0xff]
      %v1651 = vld [vmem:[%s1209 + $0x51] sm:$0xff]
      %v1652 = vld [vmem:[%s1209 + $0x59] sm:$0xff]
      %v1653 = vld [vmem:[%s1209 + $0x61] sm:$0xff]
      %v1654 = vld [vmem:[%s1209 + $0x69] sm:$0xff]
      %v1655 = vld [vmem:[%s1209 + $0x79] sm:$0xff]
      %v1656 = vld [vmem:[%s1209 + $0x81] sm:$0xff]
      %v1657 = vld [vmem:[%s1209 + $0x89] sm:$0xff]
      %v1658 = vld [vmem:[%s1209 + $0x91] sm:$0xff]
      %v1659 = vld [vmem:[%s1209 + $0xa1] sm:$0xff]
      %v1660 = vld [vmem:[%s1209 + $0xa9] sm:$0xff]
      %v1661 = vld [vmem:[%s1209 + $0xb1] sm:$0xff]
      %v1662 = vld [vmem:[%s1209 + $0xb9] sm:$0xff]
      %v1663 = vld [vmem:[%s1209 + $0xc9] sm:$0xff]
      %v1664 = vld [vmem:[%s1209 + $0xd1] sm:$0xff]
      %v1665 = vld [vmem:[%s1209 + $0xd9] sm:$0xff]
      %v1666 = vld [vmem:[%s1209 + $0xe1] sm:$0xff]
      %v1667 = vld [vmem:[%s1209 + $0xf1] sm:$0xff]
      %v1668 = vld [vmem:[%s1209 + $0xf9] sm:$0xff]
      %v1669 = vld [vmem:[%s1209 + $0x101] sm:$0xff]
      %v1670 = vld [vmem:[%s1209 + $0x109] sm:$0xff]
      %v1671 = vld [vmem:[%s1209 + $0x119] sm:$0xff]
      %v1672 = vld [vmem:[%s1209 + $0x121] sm:$0xff]
      %v1673 = vld [vmem:[%s1209 + $0x129] sm:$0xff]
      %v1674 = vld [vmem:[%s1209 + $0x131] sm:$0xff]
      %v1675 = vld [vmem:[%s1209 + $0x141] sm:$0xff]
      %v1676 = vld [vmem:[%s1209 + $0x149] sm:$0xff]
      %v1677 = vld [vmem:[%s1209 + $0x151] sm:$0xff]
      %v1678 = vld [vmem:[%s1209 + $0x159] sm:$0xff]
      %v1679 = vld [vmem:[%s1209 + $0x169] sm:$0xff]
      %v1680 = vld [vmem:[%s1209 + $0x171] sm:$0xff]
      %v1681 = vld [vmem:[%s1209 + $0x179] sm:$0xff]
      %v1682 = vld [vmem:[%s1209 + $0x181] sm:$0xff]
      %v1683 = vld [vmem:[%s1209 + $0x191] sm:$0xff]
      %v1684 = vld [vmem:[%s1209 + $0x199] sm:$0xff]
      %v1685 = vld [vmem:[%s1209 + $0x1a1] sm:$0xff]
      %v1686 = vld [vmem:[%s1209 + $0x1a9] sm:$0xff]
      %v1687 = vld [vmem:[%s1209 + $0x1b9] sm:$0xff]
      %v1688 = vld [vmem:[%s1209 + $0x1c1] sm:$0xff]
      %v1689 = vld [vmem:[%s1209 + $0x1c9] sm:$0xff]
      %v1690 = vld [vmem:[%s1209 + $0x1d1] sm:$0xff]
      %v1691 = vld [vmem:[%s1209 + $0x1e1] sm:$0xff]
      %v1692 = vld [vmem:[%s1209 + $0x1e9] sm:$0xff]
      %v1693 = vld [vmem:[%s1209 + $0x1f1] sm:$0xff]
      %v1694 = vld [vmem:[%s1209 + $0x1f9] sm:$0xff]
      %v1695 = vld [vmem:[%s1209 + $0x209] sm:$0xff]
      %v1696 = vld [vmem:[%s1209 + $0x211] sm:$0xff]
      %v1697 = vld [vmem:[%s1209 + $0x219] sm:$0xff]
      %v1698 = vld [vmem:[%s1209 + $0x221] sm:$0xff]
      %v1699 = vld [vmem:[%s1209 + $0x231] sm:$0xff]
      %v1700 = vld [vmem:[%s1209 + $0x239] sm:$0xff]
      %v1701 = vld [vmem:[%s1209 + $0x241] sm:$0xff]
      %v1702 = vld [vmem:[%s1209 + $0x249] sm:$0xff]
      %v1703 = vld [vmem:[%s1209 + $0x259] sm:$0xff]
      %v1704 = vld [vmem:[%s1209 + $0x261] sm:$0xff]
      %v1705 = vld [vmem:[%s1209 + $0x269] sm:$0xff]
      %v1706 = vld [vmem:[%s1209 + $0x271] sm:$0xff]
      %v1707 = vld [vmem:[%s1209 + $0x281] sm:$0xff]
      %v1708 = vld [vmem:[%s1209 + $0x289] sm:$0xff]
      %v1709 = vld [vmem:[%s1209 + $0x291] sm:$0xff]
      %v1710 = vld [vmem:[%s1209 + $0x299] sm:$0xff]
      %v1711 = vld [vmem:[%s1209 + $0x2a9] sm:$0xff]
      %v1712 = vld [vmem:[%s1209 + $0x2b1] sm:$0xff]
      %v1713 = vld [vmem:[%s1209 + $0x2b9] sm:$0xff]
      %v1714 = vld [vmem:[%s1209 + $0x2c1] sm:$0xff]
      %1787 = vrot.lane.b32.xlu0 %v1643, 16
      %v1788 = vpop.permute.xlu0 %1787
      %1789 = vrot.lane.b32.xlu0 %v1644, 16
      %v1790 = vpop.permute.xlu0 %1789
      %1791 = vrot.lane.b32.xlu0 %v1645, 16
      %v1792 = vpop.permute.xlu0 %1791
      %1793 = vrot.lane.b32.xlu0 %v1646, 16
      %v1794 = vpop.permute.xlu0 %1793
      %1795 = vrot.lane.b32.xlu0 %v1647, 16
      %v1796 = vpop.permute.xlu0 %1795
      %1797 = vrot.lane.b32.xlu0 %v1648, 16
      %v1798 = vpop.permute.xlu0 %1797
      %1799 = vrot.lane.b32.xlu0 %v1649, 16
      %v1800 = vpop.permute.xlu0 %1799
      %1801 = vrot.lane.b32.xlu0 %v1650, 16
      %v1802 = vpop.permute.xlu0 %1801
      %1803 = vrot.lane.b32.xlu0 %v1651, 16
      %v1804 = vpop.permute.xlu0 %1803
      %1805 = vrot.lane.b32.xlu0 %v1652, 16
      %v1806 = vpop.permute.xlu0 %1805
      %1807 = vrot.lane.b32.xlu0 %v1653, 16
      %v1808 = vpop.permute.xlu0 %1807
      %1809 = vrot.lane.b32.xlu0 %v1654, 16
      %v1810 = vpop.permute.xlu0 %1809
      %1811 = vrot.lane.b32.xlu0 %v1655, 16
      %v1812 = vpop.permute.xlu0 %1811
      %1813 = vrot.lane.b32.xlu0 %v1656, 16
      %v1814 = vpop.permute.xlu0 %1813
      %1815 = vrot.lane.b32.xlu0 %v1657, 16
      %v1816 = vpop.permute.xlu0 %1815
      %1817 = vrot.lane.b32.xlu0 %v1658, 16
      %v1818 = vpop.permute.xlu0 %1817
      %1819 = vrot.lane.b32.xlu0 %v1659, 16
      %v1820 = vpop.permute.xlu0 %1819
      %1821 = vrot.lane.b32.xlu0 %v1660, 16
      %v1822 = vpop.permute.xlu0 %1821
      %1823 = vrot.lane.b32.xlu0 %v1661, 16
      %v1824 = vpop.permute.xlu0 %1823
      %1825 = vrot.lane.b32.xlu0 %v1662, 16
      %v1826 = vpop.permute.xlu0 %1825
      %1827 = vrot.lane.b32.xlu0 %v1663, 16
      %v1828 = vpop.permute.xlu0 %1827
      %1829 = vrot.lane.b32.xlu0 %v1664, 16
      %v1830 = vpop.permute.xlu0 %1829
      %1831 = vrot.lane.b32.xlu0 %v1665, 16
      %v1832 = vpop.permute.xlu0 %1831
      %1833 = vrot.lane.b32.xlu0 %v1666, 16
      %v1834 = vpop.permute.xlu0 %1833
      %1835 = vrot.lane.b32.xlu0 %v1667, 16
      %v1836 = vpop.permute.xlu0 %1835
      %1837 = vrot.lane.b32.xlu0 %v1668, 16
      %v1838 = vpop.permute.xlu0 %1837
      %1839 = vrot.lane.b32.xlu0 %v1669, 16
      %v1840 = vpop.permute.xlu0 %1839
      %1841 = vrot.lane.b32.xlu0 %v1670, 16
      %v1842 = vpop.permute.xlu0 %1841
      %1843 = vrot.lane.b32.xlu0 %v1671, 16
      %v1844 = vpop.permute.xlu0 %1843
      %1845 = vrot.lane.b32.xlu0 %v1672, 16
      %v1846 = vpop.permute.xlu0 %1845
      %1847 = vrot.lane.b32.xlu0 %v1673, 16
      %v1848 = vpop.permute.xlu0 %1847
      %1849 = vrot.lane.b32.xlu0 %v1674, 16
      %v1850 = vpop.permute.xlu0 %1849
      %1851 = vrot.lane.b32.xlu0 %v1675, 16
      %v1852 = vpop.permute.xlu0 %1851
      %1853 = vrot.lane.b32.xlu0 %v1676, 16
      %v1854 = vpop.permute.xlu0 %1853
      %1855 = vrot.lane.b32.xlu0 %v1677, 16
      %v1856 = vpop.permute.xlu0 %1855
      %1857 = vrot.lane.b32.xlu0 %v1678, 16
      %v1858 = vpop.permute.xlu0 %1857
      %1859 = vrot.lane.b32.xlu0 %v1679, 16
      %v1860 = vpop.permute.xlu0 %1859
      %1861 = vrot.lane.b32.xlu0 %v1680, 16
      %v1862 = vpop.permute.xlu0 %1861
      %1863 = vrot.lane.b32.xlu0 %v1681, 16
      %v1864 = vpop.permute.xlu0 %1863
      %1865 = vrot.lane.b32.xlu0 %v1682, 16
      %v1866 = vpop.permute.xlu0 %1865
      %1867 = vrot.lane.b32.xlu0 %v1683, 16
      %v1868 = vpop.permute.xlu0 %1867
      %1869 = vrot.lane.b32.xlu0 %v1684, 16
      %v1870 = vpop.permute.xlu0 %1869
      %1871 = vrot.lane.b32.xlu0 %v1685, 16
      %v1872 = vpop.permute.xlu0 %1871
      %1873 = vrot.lane.b32.xlu0 %v1686, 16
      %v1874 = vpop.permute.xlu0 %1873
      %1875 = vrot.lane.b32.xlu0 %v1687, 16
      %v1876 = vpop.permute.xlu0 %1875
      %1877 = vrot.lane.b32.xlu0 %v1688, 16
      %v1878 = vpop.permute.xlu0 %1877
      %1879 = vrot.lane.b32.xlu0 %v1689, 16
      %v1880 = vpop.permute.xlu0 %1879
      %1881 = vrot.lane.b32.xlu0 %v1690, 16
      %v1882 = vpop.permute.xlu0 %1881
      %1883 = vrot.lane.b32.xlu0 %v1691, 16
      %v1884 = vpop.permute.xlu0 %1883
      %1885 = vrot.lane.b32.xlu0 %v1692, 16
      %v1886 = vpop.permute.xlu0 %1885
      %1887 = vrot.lane.b32.xlu0 %v1693, 16
      %v1888 = vpop.permute.xlu0 %1887
      %1889 = vrot.lane.b32.xlu0 %v1694, 16
      %v1890 = vpop.permute.xlu0 %1889
      %1891 = vrot.lane.b32.xlu0 %v1695, 16
      %v1892 = vpop.permute.xlu0 %1891
      %1893 = vrot.lane.b32.xlu0 %v1696, 16
      %v1894 = vpop.permute.xlu0 %1893
      %1895 = vrot.lane.b32.xlu0 %v1697, 16
      %v1896 = vpop.permute.xlu0 %1895
      %1897 = vrot.lane.b32.xlu0 %v1698, 16
      %v1898 = vpop.permute.xlu0 %1897
      %1899 = vrot.lane.b32.xlu0 %v1699, 16
      %v1900 = vpop.permute.xlu0 %1899
      %1901 = vrot.lane.b32.xlu0 %v1700, 16
      %v1902 = vpop.permute.xlu0 %1901
      %1903 = vrot.lane.b32.xlu0 %v1701, 16
      %v1904 = vpop.permute.xlu0 %1903
      %1905 = vrot.lane.b32.xlu0 %v1702, 16
      %v1906 = vpop.permute.xlu0 %1905
      %1907 = vrot.lane.b32.xlu0 %v1703, 16
      %v1908 = vpop.permute.xlu0 %1907
      %1909 = vrot.lane.b32.xlu0 %v1704, 16
      %v1910 = vpop.permute.xlu0 %1909
      %1911 = vrot.lane.b32.xlu0 %v1705, 16
      %v1912 = vpop.permute.xlu0 %1911
      %1913 = vrot.lane.b32.xlu0 %v1706, 16
      %v1914 = vpop.permute.xlu0 %1913
      %1915 = vrot.lane.b32.xlu0 %v1707, 16
      %v1916 = vpop.permute.xlu0 %1915
      %1917 = vrot.lane.b32.xlu0 %v1708, 16
      %v1918 = vpop.permute.xlu0 %1917
      %1919 = vrot.lane.b32.xlu0 %v1709, 16
      %v1920 = vpop.permute.xlu0 %1919
      %1921 = vrot.lane.b32.xlu0 %v1710, 16
      %v1922 = vpop.permute.xlu0 %1921
      %1923 = vrot.lane.b32.xlu0 %v1711, 16
      %v1924 = vpop.permute.xlu0 %1923
      %1925 = vrot.lane.b32.xlu0 %v1712, 16
      %v1926 = vpop.permute.xlu0 %1925
      %1927 = vrot.lane.b32.xlu0 %v1713, 16
      %v1928 = vpop.permute.xlu0 %1927
      %1929 = vrot.lane.b32.xlu0 %v1714, 16
      %v1930 = vpop.permute.xlu0 %1929
      %vm2003 = vcmask 162944
      %2004 = vst.msk [vmem:[#allocation2] sm:$0xff] %vm2003, %v1788
      %2005 = vst.msk [vmem:[#allocation2 + $0x8] sm:$0xff] %vm2003, %v1790
      %2006 = vst.msk [vmem:[#allocation2 + $0x10] sm:$0xff] %vm2003, %v1792
      %2007 = vst.msk [vmem:[#allocation2 + $0x18] sm:$0xff] %vm2003, %v1794
      %2008 = vst.msk [vmem:[#allocation2 + $0x20] sm:$0xff] %vm2003, %v1796
      %2009 = vst.msk [vmem:[#allocation2 + $0x28] sm:$0xff] %vm2003, %v1798
      %2010 = vst.msk [vmem:[#allocation2 + $0x30] sm:$0xff] %vm2003, %v1800
      %2011 = vst.msk [vmem:[#allocation2 + $0x38] sm:$0xff] %vm2003, %v1802
      %2012 = vst.msk [vmem:[#allocation2 + $0x40] sm:$0xff] %vm2003, %v1804
      %2013 = vst.msk [vmem:[#allocation2 + $0x48] sm:$0xff] %vm2003, %v1806
      %2014 = vst.msk [vmem:[#allocation2 + $0x50] sm:$0xff] %vm2003, %v1808
      %2015 = vst.msk [vmem:[#allocation2 + $0x58] sm:$0xff] %vm2003, %v1810
      %2016 = vst.msk [vmem:[#allocation2 + $0x60] sm:$0xff] %vm2003, %v1812
      %2017 = vst.msk [vmem:[#allocation2 + $0x68] sm:$0xff] %vm2003, %v1814
      %2018 = vst.msk [vmem:[#allocation2 + $0x70] sm:$0xff] %vm2003, %v1816
      %2019 = vst.msk [vmem:[#allocation2 + $0x78] sm:$0xff] %vm2003, %v1818
      %2020 = vst.msk [vmem:[#allocation2 + $0x80] sm:$0xff] %vm2003, %v1820
      %2021 = vst.msk [vmem:[#allocation2 + $0x88] sm:$0xff] %vm2003, %v1822
      %2022 = vst.msk [vmem:[#allocation2 + $0x90] sm:$0xff] %vm2003, %v1824
      %2023 = vst.msk [vmem:[#allocation2 + $0x98] sm:$0xff] %vm2003, %v1826
      %2024 = vst.msk [vmem:[#allocation2 + $0xa0] sm:$0xff] %vm2003, %v1828
      %2025 = vst.msk [vmem:[#allocation2 + $0xa8] sm:$0xff] %vm2003, %v1830
      %2026 = vst.msk [vmem:[#allocation2 + $0xb0] sm:$0xff] %vm2003, %v1832
      %2027 = vst.msk [vmem:[#allocation2 + $0xb8] sm:$0xff] %vm2003, %v1834
      %2028 = vst.msk [vmem:[#allocation2 + $0xc0] sm:$0xff] %vm2003, %v1836
      %2029 = vst.msk [vmem:[#allocation2 + $0xc8] sm:$0xff] %vm2003, %v1838
      %2030 = vst.msk [vmem:[#allocation2 + $0xd0] sm:$0xff] %vm2003, %v1840
      %2031 = vst.msk [vmem:[#allocation2 + $0xd8] sm:$0xff] %vm2003, %v1842
      %2032 = vst.msk [vmem:[#allocation2 + $0xe0] sm:$0xff] %vm2003, %v1844
      %2033 = vst.msk [vmem:[#allocation2 + $0xe8] sm:$0xff] %vm2003, %v1846
      %2034 = vst.msk [vmem:[#allocation2 + $0xf0] sm:$0xff] %vm2003, %v1848
      %2035 = vst.msk [vmem:[#allocation2 + $0xf8] sm:$0xff] %vm2003, %v1850
      %2036 = vst.msk [vmem:[#allocation2 + $0x100] sm:$0xff] %vm2003, %v1852
      %2037 = vst.msk [vmem:[#allocation2 + $0x108] sm:$0xff] %vm2003, %v1854
      %2038 = vst.msk [vmem:[#allocation2 + $0x110] sm:$0xff] %vm2003, %v1856
      %2039 = vst.msk [vmem:[#allocation2 + $0x118] sm:$0xff] %vm2003, %v1858
      %2040 = vst.msk [vmem:[#allocation2 + $0x120] sm:$0xff] %vm2003, %v1860
      %2041 = vst.msk [vmem:[#allocation2 + $0x128] sm:$0xff] %vm2003, %v1862
      %2042 = vst.msk [vmem:[#allocation2 + $0x130] sm:$0xff] %vm2003, %v1864
      %2043 = vst.msk [vmem:[#allocation2 + $0x138] sm:$0xff] %vm2003, %v1866
      %2044 = vst.msk [vmem:[#allocation2 + $0x140] sm:$0xff] %vm2003, %v1868
      %2045 = vst.msk [vmem:[#allocation2 + $0x148] sm:$0xff] %vm2003, %v1870
      %2046 = vst.msk [vmem:[#allocation2 + $0x150] sm:$0xff] %vm2003, %v1872
      %2047 = vst.msk [vmem:[#allocation2 + $0x158] sm:$0xff] %vm2003, %v1874
      %2048 = vst.msk [vmem:[#allocation2 + $0x160] sm:$0xff] %vm2003, %v1876
      %2049 = vst.msk [vmem:[#allocation2 + $0x168] sm:$0xff] %vm2003, %v1878
      %2050 = vst.msk [vmem:[#allocation2 + $0x170] sm:$0xff] %vm2003, %v1880
      %2051 = vst.msk [vmem:[#allocation2 + $0x178] sm:$0xff] %vm2003, %v1882
      %2052 = vst.msk [vmem:[#allocation2 + $0x180] sm:$0xff] %vm2003, %v1884
      %2053 = vst.msk [vmem:[#allocation2 + $0x188] sm:$0xff] %vm2003, %v1886
      %2054 = vst.msk [vmem:[#allocation2 + $0x190] sm:$0xff] %vm2003, %v1888
      %2055 = vst.msk [vmem:[#allocation2 + $0x198] sm:$0xff] %vm2003, %v1890
      %2056 = vst.msk [vmem:[#allocation2 + $0x1a0] sm:$0xff] %vm2003, %v1892
      %2057 = vst.msk [vmem:[#allocation2 + $0x1a8] sm:$0xff] %vm2003, %v1894
      %2058 = vst.msk [vmem:[#allocation2 + $0x1b0] sm:$0xff] %vm2003, %v1896
      %2059 = vst.msk [vmem:[#allocation2 + $0x1b8] sm:$0xff] %vm2003, %v1898
      %2060 = vst.msk [vmem:[#allocation2 + $0x1c0] sm:$0xff] %vm2003, %v1900
      %2061 = vst.msk [vmem:[#allocation2 + $0x1c8] sm:$0xff] %vm2003, %v1902
      %2062 = vst.msk [vmem:[#allocation2 + $0x1d0] sm:$0xff] %vm2003, %v1904
      %2063 = vst.msk [vmem:[#allocation2 + $0x1d8] sm:$0xff] %vm2003, %v1906
      %2064 = vst.msk [vmem:[#allocation2 + $0x1e0] sm:$0xff] %vm2003, %v1908
      %2065 = vst.msk [vmem:[#allocation2 + $0x1e8] sm:$0xff] %vm2003, %v1910
      %2066 = vst.msk [vmem:[#allocation2 + $0x1f0] sm:$0xff] %vm2003, %v1912
      %2067 = vst.msk [vmem:[#allocation2 + $0x1f8] sm:$0xff] %vm2003, %v1914
      %2068 = vst.msk [vmem:[#allocation2 + $0x200] sm:$0xff] %vm2003, %v1916
      %2069 = vst.msk [vmem:[#allocation2 + $0x208] sm:$0xff] %vm2003, %v1918
      %2070 = vst.msk [vmem:[#allocation2 + $0x210] sm:$0xff] %vm2003, %v1920
      %2071 = vst.msk [vmem:[#allocation2 + $0x218] sm:$0xff] %vm2003, %v1922
      %2072 = vst.msk [vmem:[#allocation2 + $0x220] sm:$0xff] %vm2003, %v1924
      %2073 = vst.msk [vmem:[#allocation2 + $0x228] sm:$0xff] %vm2003, %v1926
      %2074 = vst.msk [vmem:[#allocation2 + $0x230] sm:$0xff] %vm2003, %v1928
      %2075 = vst.msk [vmem:[#allocation2 + $0x238] sm:$0xff] %vm2003, %v1930
      %v2076 = vld [vmem:[%s1209 + $0x2] sm:$0xff]
      %v2077 = vld [vmem:[%s1209 + $0xa] sm:$0xff]
      %v2078 = vld [vmem:[%s1209 + $0x12] sm:$0xff]
      %v2079 = vld [vmem:[%s1209 + $0x1a] sm:$0xff]
      %v2080 = vld [vmem:[%s1209 + $0x2a] sm:$0xff]
      %v2081 = vld [vmem:[%s1209 + $0x32] sm:$0xff]
      %v2082 = vld [vmem:[%s1209 + $0x3a] sm:$0xff]
      %v2083 = vld [vmem:[%s1209 + $0x42] sm:$0xff]
      %v2084 = vld [vmem:[%s1209 + $0x52] sm:$0xff]
      %v2085 = vld [vmem:[%s1209 + $0x5a] sm:$0xff]
      %v2086 = vld [vmem:[%s1209 + $0x62] sm:$0xff]
      %v2087 = vld [vmem:[%s1209 + $0x6a] sm:$0xff]
      %v2088 = vld [vmem:[%s1209 + $0x7a] sm:$0xff]
      %v2089 = vld [vmem:[%s1209 + $0x82] sm:$0xff]
      %v2090 = vld [vmem:[%s1209 + $0x8a] sm:$0xff]
      %v2091 = vld [vmem:[%s1209 + $0x92] sm:$0xff]
      %v2092 = vld [vmem:[%s1209 + $0xa2] sm:$0xff]
      %v2093 = vld [vmem:[%s1209 + $0xaa] sm:$0xff]
      %v2094 = vld [vmem:[%s1209 + $0xb2] sm:$0xff]
      %v2095 = vld [vmem:[%s1209 + $0xba] sm:$0xff]
      %v2096 = vld [vmem:[%s1209 + $0xca] sm:$0xff]
      %v2097 = vld [vmem:[%s1209 + $0xd2] sm:$0xff]
      %v2098 = vld [vmem:[%s1209 + $0xda] sm:$0xff]
      %v2099 = vld [vmem:[%s1209 + $0xe2] sm:$0xff]
      %v2100 = vld [vmem:[%s1209 + $0xf2] sm:$0xff]
      %v2101 = vld [vmem:[%s1209 + $0xfa] sm:$0xff]
      %v2102 = vld [vmem:[%s1209 + $0x102] sm:$0xff]
      %v2103 = vld [vmem:[%s1209 + $0x10a] sm:$0xff]
      %v2104 = vld [vmem:[%s1209 + $0x11a] sm:$0xff]
      %v2105 = vld [vmem:[%s1209 + $0x122] sm:$0xff]
      %v2106 = vld [vmem:[%s1209 + $0x12a] sm:$0xff]
      %v2107 = vld [vmem:[%s1209 + $0x132] sm:$0xff]
      %v2108 = vld [vmem:[%s1209 + $0x142] sm:$0xff]
      %v2109 = vld [vmem:[%s1209 + $0x14a] sm:$0xff]
      %v2110 = vld [vmem:[%s1209 + $0x152] sm:$0xff]
      %v2111 = vld [vmem:[%s1209 + $0x15a] sm:$0xff]
      %v2112 = vld [vmem:[%s1209 + $0x16a] sm:$0xff]
      %v2113 = vld [vmem:[%s1209 + $0x172] sm:$0xff]
      %v2114 = vld [vmem:[%s1209 + $0x17a] sm:$0xff]
      %v2115 = vld [vmem:[%s1209 + $0x182] sm:$0xff]
      %v2116 = vld [vmem:[%s1209 + $0x192] sm:$0xff]
      %v2117 = vld [vmem:[%s1209 + $0x19a] sm:$0xff]
      %v2118 = vld [vmem:[%s1209 + $0x1a2] sm:$0xff]
      %v2119 = vld [vmem:[%s1209 + $0x1aa] sm:$0xff]
      %v2120 = vld [vmem:[%s1209 + $0x1ba] sm:$0xff]
      %v2121 = vld [vmem:[%s1209 + $0x1c2] sm:$0xff]
      %v2122 = vld [vmem:[%s1209 + $0x1ca] sm:$0xff]
      %v2123 = vld [vmem:[%s1209 + $0x1d2] sm:$0xff]
      %v2124 = vld [vmem:[%s1209 + $0x1e2] sm:$0xff]
      %v2125 = vld [vmem:[%s1209 + $0x1ea] sm:$0xff]
      %v2126 = vld [vmem:[%s1209 + $0x1f2] sm:$0xff]
      %v2127 = vld [vmem:[%s1209 + $0x1fa] sm:$0xff]
      %v2128 = vld [vmem:[%s1209 + $0x20a] sm:$0xff]
      %v2129 = vld [vmem:[%s1209 + $0x212] sm:$0xff]
      %v2130 = vld [vmem:[%s1209 + $0x21a] sm:$0xff]
      %v2131 = vld [vmem:[%s1209 + $0x222] sm:$0xff]
      %v2132 = vld [vmem:[%s1209 + $0x232] sm:$0xff]
      %v2133 = vld [vmem:[%s1209 + $0x23a] sm:$0xff]
      %v2134 = vld [vmem:[%s1209 + $0x242] sm:$0xff]
      %v2135 = vld [vmem:[%s1209 + $0x24a] sm:$0xff]
      %v2136 = vld [vmem:[%s1209 + $0x25a] sm:$0xff]
      %v2137 = vld [vmem:[%s1209 + $0x262] sm:$0xff]
      %v2138 = vld [vmem:[%s1209 + $0x26a] sm:$0xff]
      %v2139 = vld [vmem:[%s1209 + $0x272] sm:$0xff]
      %v2140 = vld [vmem:[%s1209 + $0x282] sm:$0xff]
      %v2141 = vld [vmem:[%s1209 + $0x28a] sm:$0xff]
      %v2142 = vld [vmem:[%s1209 + $0x292] sm:$0xff]
      %v2143 = vld [vmem:[%s1209 + $0x29a] sm:$0xff]
      %v2144 = vld [vmem:[%s1209 + $0x2aa] sm:$0xff]
      %v2145 = vld [vmem:[%s1209 + $0x2b2] sm:$0xff]
      %v2146 = vld [vmem:[%s1209 + $0x2ba] sm:$0xff]
      %v2147 = vld [vmem:[%s1209 + $0x2c2] sm:$0xff]
      %2220 = vrot.lane.b32.xlu0 %v2076, 20
      %v2221 = vpop.permute.xlu0 %2220
      %2222 = vrot.lane.b32.xlu0 %v2077, 20
      %v2223 = vpop.permute.xlu0 %2222
      %2224 = vrot.lane.b32.xlu0 %v2078, 20
      %v2225 = vpop.permute.xlu0 %2224
      %2226 = vrot.lane.b32.xlu0 %v2079, 20
      %v2227 = vpop.permute.xlu0 %2226
      %2228 = vrot.lane.b32.xlu0 %v2080, 20
      %v2229 = vpop.permute.xlu0 %2228
      %2230 = vrot.lane.b32.xlu0 %v2081, 20
      %v2231 = vpop.permute.xlu0 %2230
      %2232 = vrot.lane.b32.xlu0 %v2082, 20
      %v2233 = vpop.permute.xlu0 %2232
      %2234 = vrot.lane.b32.xlu0 %v2083, 20
      %v2235 = vpop.permute.xlu0 %2234
      %2236 = vrot.lane.b32.xlu0 %v2084, 20
      %v2237 = vpop.permute.xlu0 %2236
      %2238 = vrot.lane.b32.xlu0 %v2085, 20
      %v2239 = vpop.permute.xlu0 %2238
      %2240 = vrot.lane.b32.xlu0 %v2086, 20
      %v2241 = vpop.permute.xlu0 %2240
      %2242 = vrot.lane.b32.xlu0 %v2087, 20
      %v2243 = vpop.permute.xlu0 %2242
      %2244 = vrot.lane.b32.xlu0 %v2088, 20
      %v2245 = vpop.permute.xlu0 %2244
      %2246 = vrot.lane.b32.xlu0 %v2089, 20
      %v2247 = vpop.permute.xlu0 %2246
      %2248 = vrot.lane.b32.xlu0 %v2090, 20
      %v2249 = vpop.permute.xlu0 %2248
      %2250 = vrot.lane.b32.xlu0 %v2091, 20
      %v2251 = vpop.permute.xlu0 %2250
      %2252 = vrot.lane.b32.xlu0 %v2092, 20
      %v2253 = vpop.permute.xlu0 %2252
      %2254 = vrot.lane.b32.xlu0 %v2093, 20
      %v2255 = vpop.permute.xlu0 %2254
      %2256 = vrot.lane.b32.xlu0 %v2094, 20
      %v2257 = vpop.permute.xlu0 %2256
      %2258 = vrot.lane.b32.xlu0 %v2095, 20
      %v2259 = vpop.permute.xlu0 %2258
      %2260 = vrot.lane.b32.xlu0 %v2096, 20
      %v2261 = vpop.permute.xlu0 %2260
      %2262 = vrot.lane.b32.xlu0 %v2097, 20
      %v2263 = vpop.permute.xlu0 %2262
      %2264 = vrot.lane.b32.xlu0 %v2098, 20
      %v2265 = vpop.permute.xlu0 %2264
      %2266 = vrot.lane.b32.xlu0 %v2099, 20
      %v2267 = vpop.permute.xlu0 %2266
      %2268 = vrot.lane.b32.xlu0 %v2100, 20
      %v2269 = vpop.permute.xlu0 %2268
      %2270 = vrot.lane.b32.xlu0 %v2101, 20
      %v2271 = vpop.permute.xlu0 %2270
      %2272 = vrot.lane.b32.xlu0 %v2102, 20
      %v2273 = vpop.permute.xlu0 %2272
      %2274 = vrot.lane.b32.xlu0 %v2103, 20
      %v2275 = vpop.permute.xlu0 %2274
      %2276 = vrot.lane.b32.xlu0 %v2104, 20
      %v2277 = vpop.permute.xlu0 %2276
      %2278 = vrot.lane.b32.xlu0 %v2105, 20
      %v2279 = vpop.permute.xlu0 %2278
      %2280 = vrot.lane.b32.xlu0 %v2106, 20
      %v2281 = vpop.permute.xlu0 %2280
      %2282 = vrot.lane.b32.xlu0 %v2107, 20
      %v2283 = vpop.permute.xlu0 %2282
      %2284 = vrot.lane.b32.xlu0 %v2108, 20
      %v2285 = vpop.permute.xlu0 %2284
      %2286 = vrot.lane.b32.xlu0 %v2109, 20
      %v2287 = vpop.permute.xlu0 %2286
      %2288 = vrot.lane.b32.xlu0 %v2110, 20
      %v2289 = vpop.permute.xlu0 %2288
      %2290 = vrot.lane.b32.xlu0 %v2111, 20
      %v2291 = vpop.permute.xlu0 %2290
      %2292 = vrot.lane.b32.xlu0 %v2112, 20
      %v2293 = vpop.permute.xlu0 %2292
      %2294 = vrot.lane.b32.xlu0 %v2113, 20
      %v2295 = vpop.permute.xlu0 %2294
      %2296 = vrot.lane.b32.xlu0 %v2114, 20
      %v2297 = vpop.permute.xlu0 %2296
      %2298 = vrot.lane.b32.xlu0 %v2115, 20
      %v2299 = vpop.permute.xlu0 %2298
      %2300 = vrot.lane.b32.xlu0 %v2116, 20
      %v2301 = vpop.permute.xlu0 %2300
      %2302 = vrot.lane.b32.xlu0 %v2117, 20
      %v2303 = vpop.permute.xlu0 %2302
      %2304 = vrot.lane.b32.xlu0 %v2118, 20
      %v2305 = vpop.permute.xlu0 %2304
      %2306 = vrot.lane.b32.xlu0 %v2119, 20
      %v2307 = vpop.permute.xlu0 %2306
      %2308 = vrot.lane.b32.xlu0 %v2120, 20
      %v2309 = vpop.permute.xlu0 %2308
      %2310 = vrot.lane.b32.xlu0 %v2121, 20
      %v2311 = vpop.permute.xlu0 %2310
      %2312 = vrot.lane.b32.xlu0 %v2122, 20
      %v2313 = vpop.permute.xlu0 %2312
      %2314 = vrot.lane.b32.xlu0 %v2123, 20
      %v2315 = vpop.permute.xlu0 %2314
      %2316 = vrot.lane.b32.xlu0 %v2124, 20
      %v2317 = vpop.permute.xlu0 %2316
      %2318 = vrot.lane.b32.xlu0 %v2125, 20
      %v2319 = vpop.permute.xlu0 %2318
      %2320 = vrot.lane.b32.xlu0 %v2126, 20
      %v2321 = vpop.permute.xlu0 %2320
      %2322 = vrot.lane.b32.xlu0 %v2127, 20
      %v2323 = vpop.permute.xlu0 %2322
      %2324 = vrot.lane.b32.xlu0 %v2128, 20
      %v2325 = vpop.permute.xlu0 %2324
      %2326 = vrot.lane.b32.xlu0 %v2129, 20
      %v2327 = vpop.permute.xlu0 %2326
      %2328 = vrot.lane.b32.xlu0 %v2130, 20
      %v2329 = vpop.permute.xlu0 %2328
      %2330 = vrot.lane.b32.xlu0 %v2131, 20
      %v2331 = vpop.permute.xlu0 %2330
      %2332 = vrot.lane.b32.xlu0 %v2132, 20
      %v2333 = vpop.permute.xlu0 %2332
      %2334 = vrot.lane.b32.xlu0 %v2133, 20
      %v2335 = vpop.permute.xlu0 %2334
      %2336 = vrot.lane.b32.xlu0 %v2134, 20
      %v2337 = vpop.permute.xlu0 %2336
      %2338 = vrot.lane.b32.xlu0 %v2135, 20
      %v2339 = vpop.permute.xlu0 %2338
      %2340 = vrot.lane.b32.xlu0 %v2136, 20
      %v2341 = vpop.permute.xlu0 %2340
      %2342 = vrot.lane.b32.xlu0 %v2137, 20
      %v2343 = vpop.permute.xlu0 %2342
      %2344 = vrot.lane.b32.xlu0 %v2138, 20
      %v2345 = vpop.permute.xlu0 %2344
      %2346 = vrot.lane.b32.xlu0 %v2139, 20
      %v2347 = vpop.permute.xlu0 %2346
      %2348 = vrot.lane.b32.xlu0 %v2140, 20
      %v2349 = vpop.permute.xlu0 %2348
      %2350 = vrot.lane.b32.xlu0 %v2141, 20
      %v2351 = vpop.permute.xlu0 %2350
      %2352 = vrot.lane.b32.xlu0 %v2142, 20
      %v2353 = vpop.permute.xlu0 %2352
      %2354 = vrot.lane.b32.xlu0 %v2143, 20
      %v2355 = vpop.permute.xlu0 %2354
      %2356 = vrot.lane.b32.xlu0 %v2144, 20
      %v2357 = vpop.permute.xlu0 %2356
      %2358 = vrot.lane.b32.xlu0 %v2145, 20
      %v2359 = vpop.permute.xlu0 %2358
      %2360 = vrot.lane.b32.xlu0 %v2146, 20
      %v2361 = vpop.permute.xlu0 %2360
      %2362 = vrot.lane.b32.xlu0 %v2147, 20
      %v2363 = vpop.permute.xlu0 %2362
      %vm2436 = vcmask 195744
      %2437 = vst.msk [vmem:[#allocation2] sm:$0xff] %vm2436, %v2221
      %2438 = vst.msk [vmem:[#allocation2 + $0x8] sm:$0xff] %vm2436, %v2223
      %2439 = vst.msk [vmem:[#allocation2 + $0x10] sm:$0xff] %vm2436, %v2225
      %2440 = vst.msk [vmem:[#allocation2 + $0x18] sm:$0xff] %vm2436, %v2227
      %2441 = vst.msk [vmem:[#allocation2 + $0x20] sm:$0xff] %vm2436, %v2229
      %2442 = vst.msk [vmem:[#allocation2 + $0x28] sm:$0xff] %vm2436, %v2231
      %2443 = vst.msk [vmem:[#allocation2 + $0x30] sm:$0xff] %vm2436, %v2233
      %2444 = vst.msk [vmem:[#allocation2 + $0x38] sm:$0xff] %vm2436, %v2235
      %2445 = vst.msk [vmem:[#allocation2 + $0x40] sm:$0xff] %vm2436, %v2237
      %2446 = vst.msk [vmem:[#allocation2 + $0x48] sm:$0xff] %vm2436, %v2239
      %2447 = vst.msk [vmem:[#allocation2 + $0x50] sm:$0xff] %vm2436, %v2241
      %2448 = vst.msk [vmem:[#allocation2 + $0x58] sm:$0xff] %vm2436, %v2243
      %2449 = vst.msk [vmem:[#allocation2 + $0x60] sm:$0xff] %vm2436, %v2245
      %2450 = vst.msk [vmem:[#allocation2 + $0x68] sm:$0xff] %vm2436, %v2247
      %2451 = vst.msk [vmem:[#allocation2 + $0x70] sm:$0xff] %vm2436, %v2249
      %2452 = vst.msk [vmem:[#allocation2 + $0x78] sm:$0xff] %vm2436, %v2251
      %2453 = vst.msk [vmem:[#allocation2 + $0x80] sm:$0xff] %vm2436, %v2253
      %2454 = vst.msk [vmem:[#allocation2 + $0x88] sm:$0xff] %vm2436, %v2255
      %2455 = vst.msk [vmem:[#allocation2 + $0x90] sm:$0xff] %vm2436, %v2257
      %2456 = vst.msk [vmem:[#allocation2 + $0x98] sm:$0xff] %vm2436, %v2259
      %2457 = vst.msk [vmem:[#allocation2 + $0xa0] sm:$0xff] %vm2436, %v2261
      %2458 = vst.msk [vmem:[#allocation2 + $0xa8] sm:$0xff] %vm2436, %v2263
      %2459 = vst.msk [vmem:[#allocation2 + $0xb0] sm:$0xff] %vm2436, %v2265
      %2460 = vst.msk [vmem:[#allocation2 + $0xb8] sm:$0xff] %vm2436, %v2267
      %2461 = vst.msk [vmem:[#allocation2 + $0xc0] sm:$0xff] %vm2436, %v2269
      %2462 = vst.msk [vmem:[#allocation2 + $0xc8] sm:$0xff] %vm2436, %v2271
      %2463 = vst.msk [vmem:[#allocation2 + $0xd0] sm:$0xff] %vm2436, %v2273
      %2464 = vst.msk [vmem:[#allocation2 + $0xd8] sm:$0xff] %vm2436, %v2275
      %2465 = vst.msk [vmem:[#allocation2 + $0xe0] sm:$0xff] %vm2436, %v2277
      %2466 = vst.msk [vmem:[#allocation2 + $0xe8] sm:$0xff] %vm2436, %v2279
      %2467 = vst.msk [vmem:[#allocation2 + $0xf0] sm:$0xff] %vm2436, %v2281
      %2468 = vst.msk [vmem:[#allocation2 + $0xf8] sm:$0xff] %vm2436, %v2283
      %2469 = vst.msk [vmem:[#allocation2 + $0x100] sm:$0xff] %vm2436, %v2285
      %2470 = vst.msk [vmem:[#allocation2 + $0x108] sm:$0xff] %vm2436, %v2287
      %2471 = vst.msk [vmem:[#allocation2 + $0x110] sm:$0xff] %vm2436, %v2289
      %2472 = vst.msk [vmem:[#allocation2 + $0x118] sm:$0xff] %vm2436, %v2291
      %2473 = vst.msk [vmem:[#allocation2 + $0x120] sm:$0xff] %vm2436, %v2293
      %2474 = vst.msk [vmem:[#allocation2 + $0x128] sm:$0xff] %vm2436, %v2295
      %2475 = vst.msk [vmem:[#allocation2 + $0x130] sm:$0xff] %vm2436, %v2297
      %2476 = vst.msk [vmem:[#allocation2 + $0x138] sm:$0xff] %vm2436, %v2299
      %2477 = vst.msk [vmem:[#allocation2 + $0x140] sm:$0xff] %vm2436, %v2301
      %2478 = vst.msk [vmem:[#allocation2 + $0x148] sm:$0xff] %vm2436, %v2303
      %2479 = vst.msk [vmem:[#allocation2 + $0x150] sm:$0xff] %vm2436, %v2305
      %2480 = vst.msk [vmem:[#allocation2 + $0x158] sm:$0xff] %vm2436, %v2307
      %2481 = vst.msk [vmem:[#allocation2 + $0x160] sm:$0xff] %vm2436, %v2309
      %2482 = vst.msk [vmem:[#allocation2 + $0x168] sm:$0xff] %vm2436, %v2311
      %2483 = vst.msk [vmem:[#allocation2 + $0x170] sm:$0xff] %vm2436, %v2313
      %2484 = vst.msk [vmem:[#allocation2 + $0x178] sm:$0xff] %vm2436, %v2315
      %2485 = vst.msk [vmem:[#allocation2 + $0x180] sm:$0xff] %vm2436, %v2317
      %2486 = vst.msk [vmem:[#allocation2 + $0x188] sm:$0xff] %vm2436, %v2319
      %2487 = vst.msk [vmem:[#allocation2 + $0x190] sm:$0xff] %vm2436, %v2321
      %2488 = vst.msk [vmem:[#allocation2 + $0x198] sm:$0xff] %vm2436, %v2323
      %2489 = vst.msk [vmem:[#allocation2 + $0x1a0] sm:$0xff] %vm2436, %v2325
      %2490 = vst.msk [vmem:[#allocation2 + $0x1a8] sm:$0xff] %vm2436, %v2327
      %2491 = vst.msk [vmem:[#allocation2 + $0x1b0] sm:$0xff] %vm2436, %v2329
      %2492 = vst.msk [vmem:[#allocation2 + $0x1b8] sm:$0xff] %vm2436, %v2331
      %2493 = vst.msk [vmem:[#allocation2 + $0x1c0] sm:$0xff] %vm2436, %v2333
      %2494 = vst.msk [vmem:[#allocation2 + $0x1c8] sm:$0xff] %vm2436, %v2335
      %2495 = vst.msk [vmem:[#allocation2 + $0x1d0] sm:$0xff] %vm2436, %v2337
      %2496 = vst.msk [vmem:[#allocation2 + $0x1d8] sm:$0xff] %vm2436, %v2339
      %2497 = vst.msk [vmem:[#allocation2 + $0x1e0] sm:$0xff] %vm2436, %v2341
      %2498 = vst.msk [vmem:[#allocation2 + $0x1e8] sm:$0xff] %vm2436, %v2343
      %2499 = vst.msk [vmem:[#allocation2 + $0x1f0] sm:$0xff] %vm2436, %v2345
      %2500 = vst.msk [vmem:[#allocation2 + $0x1f8] sm:$0xff] %vm2436, %v2347
      %2501 = vst.msk [vmem:[#allocation2 + $0x200] sm:$0xff] %vm2436, %v2349
      %2502 = vst.msk [vmem:[#allocation2 + $0x208] sm:$0xff] %vm2436, %v2351
      %2503 = vst.msk [vmem:[#allocation2 + $0x210] sm:$0xff] %vm2436, %v2353
      %2504 = vst.msk [vmem:[#allocation2 + $0x218] sm:$0xff] %vm2436, %v2355
      %2505 = vst.msk [vmem:[#allocation2 + $0x220] sm:$0xff] %vm2436, %v2357
      %2506 = vst.msk [vmem:[#allocation2 + $0x228] sm:$0xff] %vm2436, %v2359
      %2507 = vst.msk [vmem:[#allocation2 + $0x230] sm:$0xff] %vm2436, %v2361
      %2508 = vst.msk [vmem:[#allocation2 + $0x238] sm:$0xff] %vm2436, %v2363
      %s2509 = scalar_lea.vmem %s192, 80
      %v2510 = vld [vmem:[%s2509] sm:$0xff]
      %v2511 = vld [vmem:[%s2509 + $0x8] sm:$0xff]
      %v2512 = vld [vmem:[%s2509 + $0x10] sm:$0xff]
      %v2513 = vld [vmem:[%s2509 + $0x18] sm:$0xff]
      %v2514 = vld [vmem:[%s2509 + $0x28] sm:$0xff]
      %v2515 = vld [vmem:[%s2509 + $0x30] sm:$0xff]
      %v2516 = vld [vmem:[%s2509 + $0x38] sm:$0xff]
      %v2517 = vld [vmem:[%s2509 + $0x40] sm:$0xff]
      %v2518 = vld [vmem:[%s2509 + $0x50] sm:$0xff]
      %v2519 = vld [vmem:[%s2509 + $0x58] sm:$0xff]
      %v2520 = vld [vmem:[%s2509 + $0x60] sm:$0xff]
      %v2521 = vld [vmem:[%s2509 + $0x68] sm:$0xff]
      %v2522 = vld [vmem:[%s2509 + $0x78] sm:$0xff]
      %v2523 = vld [vmem:[%s2509 + $0x80] sm:$0xff]
      %v2524 = vld [vmem:[%s2509 + $0x88] sm:$0xff]
      %v2525 = vld [vmem:[%s2509 + $0x90] sm:$0xff]
      %v2526 = vld [vmem:[%s2509 + $0xa0] sm:$0xff]
      %v2527 = vld [vmem:[%s2509 + $0xa8] sm:$0xff]
      %v2528 = vld [vmem:[%s2509 + $0xb0] sm:$0xff]
      %v2529 = vld [vmem:[%s2509 + $0xb8] sm:$0xff]
      %v2530 = vld [vmem:[%s2509 + $0xc8] sm:$0xff]
      %v2531 = vld [vmem:[%s2509 + $0xd0] sm:$0xff]
      %v2532 = vld [vmem:[%s2509 + $0xd8] sm:$0xff]
      %v2533 = vld [vmem:[%s2509 + $0xe0] sm:$0xff]
      %v2534 = vld [vmem:[%s2509 + $0xf0] sm:$0xff]
      %v2535 = vld [vmem:[%s2509 + $0xf8] sm:$0xff]
      %v2536 = vld [vmem:[%s2509 + $0x100] sm:$0xff]
      %v2537 = vld [vmem:[%s2509 + $0x108] sm:$0xff]
      %v2538 = vld [vmem:[%s2509 + $0x118] sm:$0xff]
      %v2539 = vld [vmem:[%s2509 + $0x120] sm:$0xff]
      %v2540 = vld [vmem:[%s2509 + $0x128] sm:$0xff]
      %v2541 = vld [vmem:[%s2509 + $0x130] sm:$0xff]
      %v2542 = vld [vmem:[%s2509 + $0x140] sm:$0xff]
      %v2543 = vld [vmem:[%s2509 + $0x148] sm:$0xff]
      %v2544 = vld [vmem:[%s2509 + $0x150] sm:$0xff]
      %v2545 = vld [vmem:[%s2509 + $0x158] sm:$0xff]
      %v2546 = vld [vmem:[%s2509 + $0x168] sm:$0xff]
      %v2547 = vld [vmem:[%s2509 + $0x170] sm:$0xff]
      %v2548 = vld [vmem:[%s2509 + $0x178] sm:$0xff]
      %v2549 = vld [vmem:[%s2509 + $0x180] sm:$0xff]
      %v2550 = vld [vmem:[%s2509 + $0x190] sm:$0xff]
      %v2551 = vld [vmem:[%s2509 + $0x198] sm:$0xff]
      %v2552 = vld [vmem:[%s2509 + $0x1a0] sm:$0xff]
      %v2553 = vld [vmem:[%s2509 + $0x1a8] sm:$0xff]
      %v2554 = vld [vmem:[%s2509 + $0x1b8] sm:$0xff]
      %v2555 = vld [vmem:[%s2509 + $0x1c0] sm:$0xff]
      %v2556 = vld [vmem:[%s2509 + $0x1c8] sm:$0xff]
      %v2557 = vld [vmem:[%s2509 + $0x1d0] sm:$0xff]
      %v2558 = vld [vmem:[%s2509 + $0x1e0] sm:$0xff]
      %v2559 = vld [vmem:[%s2509 + $0x1e8] sm:$0xff]
      %v2560 = vld [vmem:[%s2509 + $0x1f0] sm:$0xff]
      %v2561 = vld [vmem:[%s2509 + $0x1f8] sm:$0xff]
      %v2562 = vld [vmem:[%s2509 + $0x208] sm:$0xff]
      %v2563 = vld [vmem:[%s2509 + $0x210] sm:$0xff]
      %v2564 = vld [vmem:[%s2509 + $0x218] sm:$0xff]
      %v2565 = vld [vmem:[%s2509 + $0x220] sm:$0xff]
      %v2566 = vld [vmem:[%s2509 + $0x230] sm:$0xff]
      %v2567 = vld [vmem:[%s2509 + $0x238] sm:$0xff]
      %v2568 = vld [vmem:[%s2509 + $0x240] sm:$0xff]
      %v2569 = vld [vmem:[%s2509 + $0x248] sm:$0xff]
      %v2570 = vld [vmem:[%s2509 + $0x258] sm:$0xff]
      %v2571 = vld [vmem:[%s2509 + $0x260] sm:$0xff]
      %v2572 = vld [vmem:[%s2509 + $0x268] sm:$0xff]
      %v2573 = vld [vmem:[%s2509 + $0x270] sm:$0xff]
      %v2574 = vld [vmem:[%s2509 + $0x280] sm:$0xff]
      %v2575 = vld [vmem:[%s2509 + $0x288] sm:$0xff]
      %v2576 = vld [vmem:[%s2509 + $0x290] sm:$0xff]
      %v2577 = vld [vmem:[%s2509 + $0x298] sm:$0xff]
      %v2578 = vld [vmem:[%s2509 + $0x2a8] sm:$0xff]
      %v2579 = vld [vmem:[%s2509 + $0x2b0] sm:$0xff]
      %v2580 = vld [vmem:[%s2509 + $0x2b8] sm:$0xff]
      %v2581 = vld [vmem:[%s2509 + $0x2c0] sm:$0xff]
      %2654 = vrot.lane.b32.xlu0 %v2510, 24
      %v2655 = vpop.permute.xlu0 %2654
      %2656 = vrot.lane.b32.xlu0 %v2511, 24
      %v2657 = vpop.permute.xlu0 %2656
      %2658 = vrot.lane.b32.xlu0 %v2512, 24
      %v2659 = vpop.permute.xlu0 %2658
      %2660 = vrot.lane.b32.xlu0 %v2513, 24
      %v2661 = vpop.permute.xlu0 %2660
      %2662 = vrot.lane.b32.xlu0 %v2514, 24
      %v2663 = vpop.permute.xlu0 %2662
      %2664 = vrot.lane.b32.xlu0 %v2515, 24
      %v2665 = vpop.permute.xlu0 %2664
      %2666 = vrot.lane.b32.xlu0 %v2516, 24
      %v2667 = vpop.permute.xlu0 %2666
      %2668 = vrot.lane.b32.xlu0 %v2517, 24
      %v2669 = vpop.permute.xlu0 %2668
      %2670 = vrot.lane.b32.xlu0 %v2518, 24
      %v2671 = vpop.permute.xlu0 %2670
      %2672 = vrot.lane.b32.xlu0 %v2519, 24
      %v2673 = vpop.permute.xlu0 %2672
      %2674 = vrot.lane.b32.xlu0 %v2520, 24
      %v2675 = vpop.permute.xlu0 %2674
      %2676 = vrot.lane.b32.xlu0 %v2521, 24
      %v2677 = vpop.permute.xlu0 %2676
      %2678 = vrot.lane.b32.xlu0 %v2522, 24
      %v2679 = vpop.permute.xlu0 %2678
      %2680 = vrot.lane.b32.xlu0 %v2523, 24
      %v2681 = vpop.permute.xlu0 %2680
      %2682 = vrot.lane.b32.xlu0 %v2524, 24
      %v2683 = vpop.permute.xlu0 %2682
      %2684 = vrot.lane.b32.xlu0 %v2525, 24
      %v2685 = vpop.permute.xlu0 %2684
      %2686 = vrot.lane.b32.xlu0 %v2526, 24
      %v2687 = vpop.permute.xlu0 %2686
      %2688 = vrot.lane.b32.xlu0 %v2527, 24
      %v2689 = vpop.permute.xlu0 %2688
      %2690 = vrot.lane.b32.xlu0 %v2528, 24
      %v2691 = vpop.permute.xlu0 %2690
      %2692 = vrot.lane.b32.xlu0 %v2529, 24
      %v2693 = vpop.permute.xlu0 %2692
      %2694 = vrot.lane.b32.xlu0 %v2530, 24
      %v2695 = vpop.permute.xlu0 %2694
      %2696 = vrot.lane.b32.xlu0 %v2531, 24
      %v2697 = vpop.permute.xlu0 %2696
      %2698 = vrot.lane.b32.xlu0 %v2532, 24
      %v2699 = vpop.permute.xlu0 %2698
      %2700 = vrot.lane.b32.xlu0 %v2533, 24
      %v2701 = vpop.permute.xlu0 %2700
      %2702 = vrot.lane.b32.xlu0 %v2534, 24
      %v2703 = vpop.permute.xlu0 %2702
      %2704 = vrot.lane.b32.xlu0 %v2535, 24
      %v2705 = vpop.permute.xlu0 %2704
      %2706 = vrot.lane.b32.xlu0 %v2536, 24
      %v2707 = vpop.permute.xlu0 %2706
      %2708 = vrot.lane.b32.xlu0 %v2537, 24
      %v2709 = vpop.permute.xlu0 %2708
      %2710 = vrot.lane.b32.xlu0 %v2538, 24
      %v2711 = vpop.permute.xlu0 %2710
      %2712 = vrot.lane.b32.xlu0 %v2539, 24
      %v2713 = vpop.permute.xlu0 %2712
      %2714 = vrot.lane.b32.xlu0 %v2540, 24
      %v2715 = vpop.permute.xlu0 %2714
      %2716 = vrot.lane.b32.xlu0 %v2541, 24
      %v2717 = vpop.permute.xlu0 %2716
      %2718 = vrot.lane.b32.xlu0 %v2542, 24
      %v2719 = vpop.permute.xlu0 %2718
      %2720 = vrot.lane.b32.xlu0 %v2543, 24
      %v2721 = vpop.permute.xlu0 %2720
      %2722 = vrot.lane.b32.xlu0 %v2544, 24
      %v2723 = vpop.permute.xlu0 %2722
      %2724 = vrot.lane.b32.xlu0 %v2545, 24
      %v2725 = vpop.permute.xlu0 %2724
      %2726 = vrot.lane.b32.xlu0 %v2546, 24
      %v2727 = vpop.permute.xlu0 %2726
      %2728 = vrot.lane.b32.xlu0 %v2547, 24
      %v2729 = vpop.permute.xlu0 %2728
      %2730 = vrot.lane.b32.xlu0 %v2548, 24
      %v2731 = vpop.permute.xlu0 %2730
      %2732 = vrot.lane.b32.xlu0 %v2549, 24
      %v2733 = vpop.permute.xlu0 %2732
      %2734 = vrot.lane.b32.xlu0 %v2550, 24
      %v2735 = vpop.permute.xlu0 %2734
      %2736 = vrot.lane.b32.xlu0 %v2551, 24
      %v2737 = vpop.permute.xlu0 %2736
      %2738 = vrot.lane.b32.xlu0 %v2552, 24
      %v2739 = vpop.permute.xlu0 %2738
      %2740 = vrot.lane.b32.xlu0 %v2553, 24
      %v2741 = vpop.permute.xlu0 %2740
      %2742 = vrot.lane.b32.xlu0 %v2554, 24
      %v2743 = vpop.permute.xlu0 %2742
      %2744 = vrot.lane.b32.xlu0 %v2555, 24
      %v2745 = vpop.permute.xlu0 %2744
      %2746 = vrot.lane.b32.xlu0 %v2556, 24
      %v2747 = vpop.permute.xlu0 %2746
      %2748 = vrot.lane.b32.xlu0 %v2557, 24
      %v2749 = vpop.permute.xlu0 %2748
      %2750 = vrot.lane.b32.xlu0 %v2558, 24
      %v2751 = vpop.permute.xlu0 %2750
      %2752 = vrot.lane.b32.xlu0 %v2559, 24
      %v2753 = vpop.permute.xlu0 %2752
      %2754 = vrot.lane.b32.xlu0 %v2560, 24
      %v2755 = vpop.permute.xlu0 %2754
      %2756 = vrot.lane.b32.xlu0 %v2561, 24
      %v2757 = vpop.permute.xlu0 %2756
      %2758 = vrot.lane.b32.xlu0 %v2562, 24
      %v2759 = vpop.permute.xlu0 %2758
      %2760 = vrot.lane.b32.xlu0 %v2563, 24
      %v2761 = vpop.permute.xlu0 %2760
      %2762 = vrot.lane.b32.xlu0 %v2564, 24
      %v2763 = vpop.permute.xlu0 %2762
      %2764 = vrot.lane.b32.xlu0 %v2565, 24
      %v2765 = vpop.permute.xlu0 %2764
      %2766 = vrot.lane.b32.xlu0 %v2566, 24
      %v2767 = vpop.permute.xlu0 %2766
      %2768 = vrot.lane.b32.xlu0 %v2567, 24
      %v2769 = vpop.permute.xlu0 %2768
      %2770 = vrot.lane.b32.xlu0 %v2568, 24
      %v2771 = vpop.permute.xlu0 %2770
      %2772 = vrot.lane.b32.xlu0 %v2569, 24
      %v2773 = vpop.permute.xlu0 %2772
      %2774 = vrot.lane.b32.xlu0 %v2570, 24
      %v2775 = vpop.permute.xlu0 %2774
      %2776 = vrot.lane.b32.xlu0 %v2571, 24
      %v2777 = vpop.permute.xlu0 %2776
      %2778 = vrot.lane.b32.xlu0 %v2572, 24
      %v2779 = vpop.permute.xlu0 %2778
      %2780 = vrot.lane.b32.xlu0 %v2573, 24
      %v2781 = vpop.permute.xlu0 %2780
      %2782 = vrot.lane.b32.xlu0 %v2574, 24
      %v2783 = vpop.permute.xlu0 %2782
      %2784 = vrot.lane.b32.xlu0 %v2575, 24
      %v2785 = vpop.permute.xlu0 %2784
      %2786 = vrot.lane.b32.xlu0 %v2576, 24
      %v2787 = vpop.permute.xlu0 %2786
      %2788 = vrot.lane.b32.xlu0 %v2577, 24
      %v2789 = vpop.permute.xlu0 %2788
      %2790 = vrot.lane.b32.xlu0 %v2578, 24
      %v2791 = vpop.permute.xlu0 %2790
      %2792 = vrot.lane.b32.xlu0 %v2579, 24
      %v2793 = vpop.permute.xlu0 %2792
      %2794 = vrot.lane.b32.xlu0 %v2580, 24
      %v2795 = vpop.permute.xlu0 %2794
      %2796 = vrot.lane.b32.xlu0 %v2581, 24
      %v2797 = vpop.permute.xlu0 %2796
      %vm2870 = vcmask 228544
      %2871 = vst.msk [vmem:[#allocation2] sm:$0xff] %vm2870, %v2655
      %2872 = vst.msk [vmem:[#allocation2 + $0x8] sm:$0xff] %vm2870, %v2657
      %2873 = vst.msk [vmem:[#allocation2 + $0x10] sm:$0xff] %vm2870, %v2659
      %2874 = vst.msk [vmem:[#allocation2 + $0x18] sm:$0xff] %vm2870, %v2661
      %2875 = vst.msk [vmem:[#allocation2 + $0x20] sm:$0xff] %vm2870, %v2663
      %2876 = vst.msk [vmem:[#allocation2 + $0x28] sm:$0xff] %vm2870, %v2665
      %2877 = vst.msk [vmem:[#allocation2 + $0x30] sm:$0xff] %vm2870, %v2667
      %2878 = vst.msk [vmem:[#allocation2 + $0x38] sm:$0xff] %vm2870, %v2669
      %2879 = vst.msk [vmem:[#allocation2 + $0x40] sm:$0xff] %vm2870, %v2671
      %2880 = vst.msk [vmem:[#allocation2 + $0x48] sm:$0xff] %vm2870, %v2673
      %2881 = vst.msk [vmem:[#allocation2 + $0x50] sm:$0xff] %vm2870, %v2675
      %2882 = vst.msk [vmem:[#allocation2 + $0x58] sm:$0xff] %vm2870, %v2677
      %2883 = vst.msk [vmem:[#allocation2 + $0x60] sm:$0xff] %vm2870, %v2679
      %2884 = vst.msk [vmem:[#allocation2 + $0x68] sm:$0xff] %vm2870, %v2681
      %2885 = vst.msk [vmem:[#allocation2 + $0x70] sm:$0xff] %vm2870, %v2683
      %2886 = vst.msk [vmem:[#allocation2 + $0x78] sm:$0xff] %vm2870, %v2685
      %2887 = vst.msk [vmem:[#allocation2 + $0x80] sm:$0xff] %vm2870, %v2687
      %2888 = vst.msk [vmem:[#allocation2 + $0x88] sm:$0xff] %vm2870, %v2689
      %2889 = vst.msk [vmem:[#allocation2 + $0x90] sm:$0xff] %vm2870, %v2691
      %2890 = vst.msk [vmem:[#allocation2 + $0x98] sm:$0xff] %vm2870, %v2693
      %2891 = vst.msk [vmem:[#allocation2 + $0xa0] sm:$0xff] %vm2870, %v2695
      %2892 = vst.msk [vmem:[#allocation2 + $0xa8] sm:$0xff] %vm2870, %v2697
      %2893 = vst.msk [vmem:[#allocation2 + $0xb0] sm:$0xff] %vm2870, %v2699
      %2894 = vst.msk [vmem:[#allocation2 + $0xb8] sm:$0xff] %vm2870, %v2701
      %2895 = vst.msk [vmem:[#allocation2 + $0xc0] sm:$0xff] %vm2870, %v2703
      %2896 = vst.msk [vmem:[#allocation2 + $0xc8] sm:$0xff] %vm2870, %v2705
      %2897 = vst.msk [vmem:[#allocation2 + $0xd0] sm:$0xff] %vm2870, %v2707
      %2898 = vst.msk [vmem:[#allocation2 + $0xd8] sm:$0xff] %vm2870, %v2709
      %2899 = vst.msk [vmem:[#allocation2 + $0xe0] sm:$0xff] %vm2870, %v2711
      %2900 = vst.msk [vmem:[#allocation2 + $0xe8] sm:$0xff] %vm2870, %v2713
      %2901 = vst.msk [vmem:[#allocation2 + $0xf0] sm:$0xff] %vm2870, %v2715
      %2902 = vst.msk [vmem:[#allocation2 + $0xf8] sm:$0xff] %vm2870, %v2717
      %2903 = vst.msk [vmem:[#allocation2 + $0x100] sm:$0xff] %vm2870, %v2719
      %2904 = vst.msk [vmem:[#allocation2 + $0x108] sm:$0xff] %vm2870, %v2721
      %2905 = vst.msk [vmem:[#allocation2 + $0x110] sm:$0xff] %vm2870, %v2723
      %2906 = vst.msk [vmem:[#allocation2 + $0x118] sm:$0xff] %vm2870, %v2725
      %2907 = vst.msk [vmem:[#allocation2 + $0x120] sm:$0xff] %vm2870, %v2727
      %2908 = vst.msk [vmem:[#allocation2 + $0x128] sm:$0xff] %vm2870, %v2729
      %2909 = vst.msk [vmem:[#allocation2 + $0x130] sm:$0xff] %vm2870, %v2731
      %2910 = vst.msk [vmem:[#allocation2 + $0x138] sm:$0xff] %vm2870, %v2733
      %2911 = vst.msk [vmem:[#allocation2 + $0x140] sm:$0xff] %vm2870, %v2735
      %2912 = vst.msk [vmem:[#allocation2 + $0x148] sm:$0xff] %vm2870, %v2737
      %2913 = vst.msk [vmem:[#allocation2 + $0x150] sm:$0xff] %vm2870, %v2739
      %2914 = vst.msk [vmem:[#allocation2 + $0x158] sm:$0xff] %vm2870, %v2741
      %2915 = vst.msk [vmem:[#allocation2 + $0x160] sm:$0xff] %vm2870, %v2743
      %2916 = vst.msk [vmem:[#allocation2 + $0x168] sm:$0xff] %vm2870, %v2745
      %2917 = vst.msk [vmem:[#allocation2 + $0x170] sm:$0xff] %vm2870, %v2747
      %2918 = vst.msk [vmem:[#allocation2 + $0x178] sm:$0xff] %vm2870, %v2749
      %2919 = vst.msk [vmem:[#allocation2 + $0x180] sm:$0xff] %vm2870, %v2751
      %2920 = vst.msk [vmem:[#allocation2 + $0x188] sm:$0xff] %vm2870, %v2753
      %2921 = vst.msk [vmem:[#allocation2 + $0x190] sm:$0xff] %vm2870, %v2755
      %2922 = vst.msk [vmem:[#allocation2 + $0x198] sm:$0xff] %vm2870, %v2757
      %2923 = vst.msk [vmem:[#allocation2 + $0x1a0] sm:$0xff] %vm2870, %v2759
      %2924 = vst.msk [vmem:[#allocation2 + $0x1a8] sm:$0xff] %vm2870, %v2761
      %2925 = vst.msk [vmem:[#allocation2 + $0x1b0] sm:$0xff] %vm2870, %v2763
      %2926 = vst.msk [vmem:[#allocation2 + $0x1b8] sm:$0xff] %vm2870, %v2765
      %2927 = vst.msk [vmem:[#allocation2 + $0x1c0] sm:$0xff] %vm2870, %v2767
      %2928 = vst.msk [vmem:[#allocation2 + $0x1c8] sm:$0xff] %vm2870, %v2769
      %2929 = vst.msk [vmem:[#allocation2 + $0x1d0] sm:$0xff] %vm2870, %v2771
      %2930 = vst.msk [vmem:[#allocation2 + $0x1d8] sm:$0xff] %vm2870, %v2773
      %2931 = vst.msk [vmem:[#allocation2 + $0x1e0] sm:$0xff] %vm2870, %v2775
      %2932 = vst.msk [vmem:[#allocation2 + $0x1e8] sm:$0xff] %vm2870, %v2777
      %2933 = vst.msk [vmem:[#allocation2 + $0x1f0] sm:$0xff] %vm2870, %v2779
      %2934 = vst.msk [vmem:[#allocation2 + $0x1f8] sm:$0xff] %vm2870, %v2781
      %2935 = vst.msk [vmem:[#allocation2 + $0x200] sm:$0xff] %vm2870, %v2783
      %2936 = vst.msk [vmem:[#allocation2 + $0x208] sm:$0xff] %vm2870, %v2785
      %2937 = vst.msk [vmem:[#allocation2 + $0x210] sm:$0xff] %vm2870, %v2787
      %2938 = vst.msk [vmem:[#allocation2 + $0x218] sm:$0xff] %vm2870, %v2789
      %2939 = vst.msk [vmem:[#allocation2 + $0x220] sm:$0xff] %vm2870, %v2791
      %2940 = vst.msk [vmem:[#allocation2 + $0x228] sm:$0xff] %vm2870, %v2793
      %2941 = vst.msk [vmem:[#allocation2 + $0x230] sm:$0xff] %vm2870, %v2795
      %2942 = vst.msk [vmem:[#allocation2 + $0x238] sm:$0xff] %vm2870, %v2797
      %v2943 = vld [vmem:[%s2509 + $0x1] sm:$0xff]
      %v2944 = vld [vmem:[%s2509 + $0x9] sm:$0xff]
      %v2945 = vld [vmem:[%s2509 + $0x11] sm:$0xff]
      %v2946 = vld [vmem:[%s2509 + $0x19] sm:$0xff]
      %v2947 = vld [vmem:[%s2509 + $0x29] sm:$0xff]
      %v2948 = vld [vmem:[%s2509 + $0x31] sm:$0xff]
      %v2949 = vld [vmem:[%s2509 + $0x39] sm:$0xff]
      %v2950 = vld [vmem:[%s2509 + $0x41] sm:$0xff]
      %v2951 = vld [vmem:[%s2509 + $0x51] sm:$0xff]
      %v2952 = vld [vmem:[%s2509 + $0x59] sm:$0xff]
      %v2953 = vld [vmem:[%s2509 + $0x61] sm:$0xff]
      %v2954 = vld [vmem:[%s2509 + $0x69] sm:$0xff]
      %v2955 = vld [vmem:[%s2509 + $0x79] sm:$0xff]
      %v2956 = vld [vmem:[%s2509 + $0x81] sm:$0xff]
      %v2957 = vld [vmem:[%s2509 + $0x89] sm:$0xff]
      %v2958 = vld [vmem:[%s2509 + $0x91] sm:$0xff]
      %v2959 = vld [vmem:[%s2509 + $0xa1] sm:$0xff]
      %v2960 = vld [vmem:[%s2509 + $0xa9] sm:$0xff]
      %v2961 = vld [vmem:[%s2509 + $0xb1] sm:$0xff]
      %v2962 = vld [vmem:[%s2509 + $0xb9] sm:$0xff]
      %v2963 = vld [vmem:[%s2509 + $0xc9] sm:$0xff]
      %v2964 = vld [vmem:[%s2509 + $0xd1] sm:$0xff]
      %v2965 = vld [vmem:[%s2509 + $0xd9] sm:$0xff]
      %v2966 = vld [vmem:[%s2509 + $0xe1] sm:$0xff]
      %v2967 = vld [vmem:[%s2509 + $0xf1] sm:$0xff]
      %v2968 = vld [vmem:[%s2509 + $0xf9] sm:$0xff]
      %v2969 = vld [vmem:[%s2509 + $0x101] sm:$0xff]
      %v2970 = vld [vmem:[%s2509 + $0x109] sm:$0xff]
      %v2971 = vld [vmem:[%s2509 + $0x119] sm:$0xff]
      %v2972 = vld [vmem:[%s2509 + $0x121] sm:$0xff]
      %v2973 = vld [vmem:[%s2509 + $0x129] sm:$0xff]
      %v2974 = vld [vmem:[%s2509 + $0x131] sm:$0xff]
      %v2975 = vld [vmem:[%s2509 + $0x141] sm:$0xff]
      %v2976 = vld [vmem:[%s2509 + $0x149] sm:$0xff]
      %v2977 = vld [vmem:[%s2509 + $0x151] sm:$0xff]
      %v2978 = vld [vmem:[%s2509 + $0x159] sm:$0xff]
      %v2979 = vld [vmem:[%s2509 + $0x169] sm:$0xff]
      %v2980 = vld [vmem:[%s2509 + $0x171] sm:$0xff]
      %v2981 = vld [vmem:[%s2509 + $0x179] sm:$0xff]
      %v2982 = vld [vmem:[%s2509 + $0x181] sm:$0xff]
      %v2983 = vld [vmem:[%s2509 + $0x191] sm:$0xff]
      %v2984 = vld [vmem:[%s2509 + $0x199] sm:$0xff]
      %v2985 = vld [vmem:[%s2509 + $0x1a1] sm:$0xff]
      %v2986 = vld [vmem:[%s2509 + $0x1a9] sm:$0xff]
      %v2987 = vld [vmem:[%s2509 + $0x1b9] sm:$0xff]
      %v2988 = vld [vmem:[%s2509 + $0x1c1] sm:$0xff]
      %v2989 = vld [vmem:[%s2509 + $0x1c9] sm:$0xff]
      %v2990 = vld [vmem:[%s2509 + $0x1d1] sm:$0xff]
      %v2991 = vld [vmem:[%s2509 + $0x1e1] sm:$0xff]
      %v2992 = vld [vmem:[%s2509 + $0x1e9] sm:$0xff]
      %v2993 = vld [vmem:[%s2509 + $0x1f1] sm:$0xff]
      %v2994 = vld [vmem:[%s2509 + $0x1f9] sm:$0xff]
      %v2995 = vld [vmem:[%s2509 + $0x209] sm:$0xff]
      %v2996 = vld [vmem:[%s2509 + $0x211] sm:$0xff]
      %v2997 = vld [vmem:[%s2509 + $0x219] sm:$0xff]
      %v2998 = vld [vmem:[%s2509 + $0x221] sm:$0xff]
      %v2999 = vld [vmem:[%s2509 + $0x231] sm:$0xff]
      %v3000 = vld [vmem:[%s2509 + $0x239] sm:$0xff]
      %v3001 = vld [vmem:[%s2509 + $0x241] sm:$0xff]
      %v3002 = vld [vmem:[%s2509 + $0x249] sm:$0xff]
      %v3003 = vld [vmem:[%s2509 + $0x259] sm:$0xff]
      %v3004 = vld [vmem:[%s2509 + $0x261] sm:$0xff]
      %v3005 = vld [vmem:[%s2509 + $0x269] sm:$0xff]
      %v3006 = vld [vmem:[%s2509 + $0x271] sm:$0xff]
      %v3007 = vld [vmem:[%s2509 + $0x281] sm:$0xff]
      %v3008 = vld [vmem:[%s2509 + $0x289] sm:$0xff]
      %v3009 = vld [vmem:[%s2509 + $0x291] sm:$0xff]
      %v3010 = vld [vmem:[%s2509 + $0x299] sm:$0xff]
      %v3011 = vld [vmem:[%s2509 + $0x2a9] sm:$0xff]
      %v3012 = vld [vmem:[%s2509 + $0x2b1] sm:$0xff]
      %v3013 = vld [vmem:[%s2509 + $0x2b9] sm:$0xff]
      %v3014 = vld [vmem:[%s2509 + $0x2c1] sm:$0xff]
      %3087 = vrot.lane.b32.xlu0 %v2943, 28
      %v3088 = vpop.permute.xlu0 %3087
      %3089 = vrot.lane.b32.xlu0 %v2944, 28
      %v3090 = vpop.permute.xlu0 %3089
      %3091 = vrot.lane.b32.xlu0 %v2945, 28
      %v3092 = vpop.permute.xlu0 %3091
      %3093 = vrot.lane.b32.xlu0 %v2946, 28
      %v3094 = vpop.permute.xlu0 %3093
      %3095 = vrot.lane.b32.xlu0 %v2947, 28
      %v3096 = vpop.permute.xlu0 %3095
      %3097 = vrot.lane.b32.xlu0 %v2948, 28
      %v3098 = vpop.permute.xlu0 %3097
      %3099 = vrot.lane.b32.xlu0 %v2949, 28
      %v3100 = vpop.permute.xlu0 %3099
      %3101 = vrot.lane.b32.xlu0 %v2950, 28
      %v3102 = vpop.permute.xlu0 %3101
      %3103 = vrot.lane.b32.xlu0 %v2951, 28
      %v3104 = vpop.permute.xlu0 %3103
      %3105 = vrot.lane.b32.xlu0 %v2952, 28
      %v3106 = vpop.permute.xlu0 %3105
      %3107 = vrot.lane.b32.xlu0 %v2953, 28
      %v3108 = vpop.permute.xlu0 %3107
      %3109 = vrot.lane.b32.xlu0 %v2954, 28
      %v3110 = vpop.permute.xlu0 %3109
      %3111 = vrot.lane.b32.xlu0 %v2955, 28
      %v3112 = vpop.permute.xlu0 %3111
      %3113 = vrot.lane.b32.xlu0 %v2956, 28
      %v3114 = vpop.permute.xlu0 %3113
      %3115 = vrot.lane.b32.xlu0 %v2957, 28
      %v3116 = vpop.permute.xlu0 %3115
      %3117 = vrot.lane.b32.xlu0 %v2958, 28
      %v3118 = vpop.permute.xlu0 %3117
      %3119 = vrot.lane.b32.xlu0 %v2959, 28
      %v3120 = vpop.permute.xlu0 %3119
      %3121 = vrot.lane.b32.xlu0 %v2960, 28
      %v3122 = vpop.permute.xlu0 %3121
      %3123 = vrot.lane.b32.xlu0 %v2961, 28
      %v3124 = vpop.permute.xlu0 %3123
      %3125 = vrot.lane.b32.xlu0 %v2962, 28
      %v3126 = vpop.permute.xlu0 %3125
      %3127 = vrot.lane.b32.xlu0 %v2963, 28
      %v3128 = vpop.permute.xlu0 %3127
      %3129 = vrot.lane.b32.xlu0 %v2964, 28
      %v3130 = vpop.permute.xlu0 %3129
      %3131 = vrot.lane.b32.xlu0 %v2965, 28
      %v3132 = vpop.permute.xlu0 %3131
      %3133 = vrot.lane.b32.xlu0 %v2966, 28
      %v3134 = vpop.permute.xlu0 %3133
      %3135 = vrot.lane.b32.xlu0 %v2967, 28
      %v3136 = vpop.permute.xlu0 %3135
      %3137 = vrot.lane.b32.xlu0 %v2968, 28
      %v3138 = vpop.permute.xlu0 %3137
      %3139 = vrot.lane.b32.xlu0 %v2969, 28
      %v3140 = vpop.permute.xlu0 %3139
      %3141 = vrot.lane.b32.xlu0 %v2970, 28
      %v3142 = vpop.permute.xlu0 %3141
      %3143 = vrot.lane.b32.xlu0 %v2971, 28
      %v3144 = vpop.permute.xlu0 %3143
      %3145 = vrot.lane.b32.xlu0 %v2972, 28
      %v3146 = vpop.permute.xlu0 %3145
      %3147 = vrot.lane.b32.xlu0 %v2973, 28
      %v3148 = vpop.permute.xlu0 %3147
      %3149 = vrot.lane.b32.xlu0 %v2974, 28
      %v3150 = vpop.permute.xlu0 %3149
      %3151 = vrot.lane.b32.xlu0 %v2975, 28
      %v3152 = vpop.permute.xlu0 %3151
      %3153 = vrot.lane.b32.xlu0 %v2976, 28
      %v3154 = vpop.permute.xlu0 %3153
      %3155 = vrot.lane.b32.xlu0 %v2977, 28
      %v3156 = vpop.permute.xlu0 %3155
      %3157 = vrot.lane.b32.xlu0 %v2978, 28
      %v3158 = vpop.permute.xlu0 %3157
      %3159 = vrot.lane.b32.xlu0 %v2979, 28
      %v3160 = vpop.permute.xlu0 %3159
      %3161 = vrot.lane.b32.xlu0 %v2980, 28
      %v3162 = vpop.permute.xlu0 %3161
      %3163 = vrot.lane.b32.xlu0 %v2981, 28
      %v3164 = vpop.permute.xlu0 %3163
      %3165 = vrot.lane.b32.xlu0 %v2982, 28
      %v3166 = vpop.permute.xlu0 %3165
      %3167 = vrot.lane.b32.xlu0 %v2983, 28
      %v3168 = vpop.permute.xlu0 %3167
      %3169 = vrot.lane.b32.xlu0 %v2984, 28
      %v3170 = vpop.permute.xlu0 %3169
      %3171 = vrot.lane.b32.xlu0 %v2985, 28
      %v3172 = vpop.permute.xlu0 %3171
      %3173 = vrot.lane.b32.xlu0 %v2986, 28
      %v3174 = vpop.permute.xlu0 %3173
      %3175 = vrot.lane.b32.xlu0 %v2987, 28
      %v3176 = vpop.permute.xlu0 %3175
      %3177 = vrot.lane.b32.xlu0 %v2988, 28
      %v3178 = vpop.permute.xlu0 %3177
      %3179 = vrot.lane.b32.xlu0 %v2989, 28
      %v3180 = vpop.permute.xlu0 %3179
      %3181 = vrot.lane.b32.xlu0 %v2990, 28
      %v3182 = vpop.permute.xlu0 %3181
      %3183 = vrot.lane.b32.xlu0 %v2991, 28
      %v3184 = vpop.permute.xlu0 %3183
      %3185 = vrot.lane.b32.xlu0 %v2992, 28
      %v3186 = vpop.permute.xlu0 %3185
      %3187 = vrot.lane.b32.xlu0 %v2993, 28
      %v3188 = vpop.permute.xlu0 %3187
      %3189 = vrot.lane.b32.xlu0 %v2994, 28
      %v3190 = vpop.permute.xlu0 %3189
      %3191 = vrot.lane.b32.xlu0 %v2995, 28
      %v3192 = vpop.permute.xlu0 %3191
      %3193 = vrot.lane.b32.xlu0 %v2996, 28
      %v3194 = vpop.permute.xlu0 %3193
      %3195 = vrot.lane.b32.xlu0 %v2997, 28
      %v3196 = vpop.permute.xlu0 %3195
      %3197 = vrot.lane.b32.xlu0 %v2998, 28
      %v3198 = vpop.permute.xlu0 %3197
      %3199 = vrot.lane.b32.xlu0 %v2999, 28
      %v3200 = vpop.permute.xlu0 %3199
      %3201 = vrot.lane.b32.xlu0 %v3000, 28
      %v3202 = vpop.permute.xlu0 %3201
      %3203 = vrot.lane.b32.xlu0 %v3001, 28
      %v3204 = vpop.permute.xlu0 %3203
      %3205 = vrot.lane.b32.xlu0 %v3002, 28
      %v3206 = vpop.permute.xlu0 %3205
      %3207 = vrot.lane.b32.xlu0 %v3003, 28
      %v3208 = vpop.permute.xlu0 %3207
      %3209 = vrot.lane.b32.xlu0 %v3004, 28
      %v3210 = vpop.permute.xlu0 %3209
      %3211 = vrot.lane.b32.xlu0 %v3005, 28
      %v3212 = vpop.permute.xlu0 %3211
      %3213 = vrot.lane.b32.xlu0 %v3006, 28
      %v3214 = vpop.permute.xlu0 %3213
      %3215 = vrot.lane.b32.xlu0 %v3007, 28
      %v3216 = vpop.permute.xlu0 %3215
      %3217 = vrot.lane.b32.xlu0 %v3008, 28
      %v3218 = vpop.permute.xlu0 %3217
      %3219 = vrot.lane.b32.xlu0 %v3009, 28
      %v3220 = vpop.permute.xlu0 %3219
      %3221 = vrot.lane.b32.xlu0 %v3010, 28
      %v3222 = vpop.permute.xlu0 %3221
      %3223 = vrot.lane.b32.xlu0 %v3011, 28
      %v3224 = vpop.permute.xlu0 %3223
      %3225 = vrot.lane.b32.xlu0 %v3012, 28
      %v3226 = vpop.permute.xlu0 %3225
      %3227 = vrot.lane.b32.xlu0 %v3013, 28
      %v3228 = vpop.permute.xlu0 %3227
      %3229 = vrot.lane.b32.xlu0 %v3014, 28
      %v3230 = vpop.permute.xlu0 %3229
      %vm3303 = vcmask 261344
      %3304 = vst.msk [vmem:[#allocation2] sm:$0xff] %vm3303, %v3088
      %3305 = vst.msk [vmem:[#allocation2 + $0x8] sm:$0xff] %vm3303, %v3090
      %3306 = vst.msk [vmem:[#allocation2 + $0x10] sm:$0xff] %vm3303, %v3092
      %3307 = vst.msk [vmem:[#allocation2 + $0x18] sm:$0xff] %vm3303, %v3094
      %3308 = vst.msk [vmem:[#allocation2 + $0x20] sm:$0xff] %vm3303, %v3096
      %3309 = vst.msk [vmem:[#allocation2 + $0x28] sm:$0xff] %vm3303, %v3098
      %3310 = vst.msk [vmem:[#allocation2 + $0x30] sm:$0xff] %vm3303, %v3100
      %3311 = vst.msk [vmem:[#allocation2 + $0x38] sm:$0xff] %vm3303, %v3102
      %3312 = vst.msk [vmem:[#allocation2 + $0x40] sm:$0xff] %vm3303, %v3104
      %3313 = vst.msk [vmem:[#allocation2 + $0x48] sm:$0xff] %vm3303, %v3106
      %3314 = vst.msk [vmem:[#allocation2 + $0x50] sm:$0xff] %vm3303, %v3108
      %3315 = vst.msk [vmem:[#allocation2 + $0x58] sm:$0xff] %vm3303, %v3110
      %3316 = vst.msk [vmem:[#allocation2 + $0x60] sm:$0xff] %vm3303, %v3112
      %3317 = vst.msk [vmem:[#allocation2 + $0x68] sm:$0xff] %vm3303, %v3114
      %3318 = vst.msk [vmem:[#allocation2 + $0x70] sm:$0xff] %vm3303, %v3116
      %3319 = vst.msk [vmem:[#allocation2 + $0x78] sm:$0xff] %vm3303, %v3118
      %3320 = vst.msk [vmem:[#allocation2 + $0x80] sm:$0xff] %vm3303, %v3120
      %3321 = vst.msk [vmem:[#allocation2 + $0x88] sm:$0xff] %vm3303, %v3122
      %3322 = vst.msk [vmem:[#allocation2 + $0x90] sm:$0xff] %vm3303, %v3124
      %3323 = vst.msk [vmem:[#allocation2 + $0x98] sm:$0xff] %vm3303, %v3126
      %3324 = vst.msk [vmem:[#allocation2 + $0xa0] sm:$0xff] %vm3303, %v3128
      %3325 = vst.msk [vmem:[#allocation2 + $0xa8] sm:$0xff] %vm3303, %v3130
      %3326 = vst.msk [vmem:[#allocation2 + $0xb0] sm:$0xff] %vm3303, %v3132
      %3327 = vst.msk [vmem:[#allocation2 + $0xb8] sm:$0xff] %vm3303, %v3134
      %3328 = vst.msk [vmem:[#allocation2 + $0xc0] sm:$0xff] %vm3303, %v3136
      %3329 = vst.msk [vmem:[#allocation2 + $0xc8] sm:$0xff] %vm3303, %v3138
      %3330 = vst.msk [vmem:[#allocation2 + $0xd0] sm:$0xff] %vm3303, %v3140
      %3331 = vst.msk [vmem:[#allocation2 + $0xd8] sm:$0xff] %vm3303, %v3142
      %3332 = vst.msk [vmem:[#allocation2 + $0xe0] sm:$0xff] %vm3303, %v3144
      %3333 = vst.msk [vmem:[#allocation2 + $0xe8] sm:$0xff] %vm3303, %v3146
      %3334 = vst.msk [vmem:[#allocation2 + $0xf0] sm:$0xff] %vm3303, %v3148
      %3335 = vst.msk [vmem:[#allocation2 + $0xf8] sm:$0xff] %vm3303, %v3150
      %3336 = vst.msk [vmem:[#allocation2 + $0x100] sm:$0xff] %vm3303, %v3152
      %3337 = vst.msk [vmem:[#allocation2 + $0x108] sm:$0xff] %vm3303, %v3154
      %3338 = vst.msk [vmem:[#allocation2 + $0x110] sm:$0xff] %vm3303, %v3156
      %3339 = vst.msk [vmem:[#allocation2 + $0x118] sm:$0xff] %vm3303, %v3158
      %3340 = vst.msk [vmem:[#allocation2 + $0x120] sm:$0xff] %vm3303, %v3160
      %3341 = vst.msk [vmem:[#allocation2 + $0x128] sm:$0xff] %vm3303, %v3162
      %3342 = vst.msk [vmem:[#allocation2 + $0x130] sm:$0xff] %vm3303, %v3164
      %3343 = vst.msk [vmem:[#allocation2 + $0x138] sm:$0xff] %vm3303, %v3166
      %3344 = vst.msk [vmem:[#allocation2 + $0x140] sm:$0xff] %vm3303, %v3168
      %3345 = vst.msk [vmem:[#allocation2 + $0x148] sm:$0xff] %vm3303, %v3170
      %3346 = vst.msk [vmem:[#allocation2 + $0x150] sm:$0xff] %vm3303, %v3172
      %3347 = vst.msk [vmem:[#allocation2 + $0x158] sm:$0xff] %vm3303, %v3174
      %3348 = vst.msk [vmem:[#allocation2 + $0x160] sm:$0xff] %vm3303, %v3176
      %3349 = vst.msk [vmem:[#allocation2 + $0x168] sm:$0xff] %vm3303, %v3178
      %3350 = vst.msk [vmem:[#allocation2 + $0x170] sm:$0xff] %vm3303, %v3180
      %3351 = vst.msk [vmem:[#allocation2 + $0x178] sm:$0xff] %vm3303, %v3182
      %3352 = vst.msk [vmem:[#allocation2 + $0x180] sm:$0xff] %vm3303, %v3184
      %3353 = vst.msk [vmem:[#allocation2 + $0x188] sm:$0xff] %vm3303, %v3186
      %3354 = vst.msk [vmem:[#allocation2 + $0x190] sm:$0xff] %vm3303, %v3188
      %3355 = vst.msk [vmem:[#allocation2 + $0x198] sm:$0xff] %vm3303, %v3190
      %3356 = vst.msk [vmem:[#allocation2 + $0x1a0] sm:$0xff] %vm3303, %v3192
      %3357 = vst.msk [vmem:[#allocation2 + $0x1a8] sm:$0xff] %vm3303, %v3194
      %3358 = vst.msk [vmem:[#allocation2 + $0x1b0] sm:$0xff] %vm3303, %v3196
      %3359 = vst.msk [vmem:[#allocation2 + $0x1b8] sm:$0xff] %vm3303, %v3198
      %3360 = vst.msk [vmem:[#allocation2 + $0x1c0] sm:$0xff] %vm3303, %v3200
      %3361 = vst.msk [vmem:[#allocation2 + $0x1c8] sm:$0xff] %vm3303, %v3202
      %3362 = vst.msk [vmem:[#allocation2 + $0x1d0] sm:$0xff] %vm3303, %v3204
      %3363 = vst.msk [vmem:[#allocation2 + $0x1d8] sm:$0xff] %vm3303, %v3206
      %3364 = vst.msk [vmem:[#allocation2 + $0x1e0] sm:$0xff] %vm3303, %v3208
      %3365 = vst.msk [vmem:[#allocation2 + $0x1e8] sm:$0xff] %vm3303, %v3210
      %3366 = vst.msk [vmem:[#allocation2 + $0x1f0] sm:$0xff] %vm3303, %v3212
      %3367 = vst.msk [vmem:[#allocation2 + $0x1f8] sm:$0xff] %vm3303, %v3214
      %3368 = vst.msk [vmem:[#allocation2 + $0x200] sm:$0xff] %vm3303, %v3216
      %3369 = vst.msk [vmem:[#allocation2 + $0x208] sm:$0xff] %vm3303, %v3218
      %3370 = vst.msk [vmem:[#allocation2 + $0x210] sm:$0xff] %vm3303, %v3220
      %3371 = vst.msk [vmem:[#allocation2 + $0x218] sm:$0xff] %vm3303, %v3222
      %3372 = vst.msk [vmem:[#allocation2 + $0x220] sm:$0xff] %vm3303, %v3224
      %3373 = vst.msk [vmem:[#allocation2 + $0x228] sm:$0xff] %vm3303, %v3226
      %3374 = vst.msk [vmem:[#allocation2 + $0x230] sm:$0xff] %vm3303, %v3228
      %3375 = vst.msk [vmem:[#allocation2 + $0x238] sm:$0xff] %vm3303, %v3230
      %v3376 = vld [vmem:[%s2509 + $0x2] sm:$0xff]
      %v3377 = vld [vmem:[%s2509 + $0xa] sm:$0xff]
      %v3378 = vld [vmem:[%s2509 + $0x12] sm:$0xff]
      %v3379 = vld [vmem:[%s2509 + $0x1a] sm:$0xff]
      %v3380 = vld [vmem:[%s2509 + $0x2a] sm:$0xff]
      %v3381 = vld [vmem:[%s2509 + $0x32] sm:$0xff]
      %v3382 = vld [vmem:[%s2509 + $0x3a] sm:$0xff]
      %v3383 = vld [vmem:[%s2509 + $0x42] sm:$0xff]
      %v3384 = vld [vmem:[%s2509 + $0x52] sm:$0xff]
      %v3385 = vld [vmem:[%s2509 + $0x5a] sm:$0xff]
      %v3386 = vld [vmem:[%s2509 + $0x62] sm:$0xff]
      %v3387 = vld [vmem:[%s2509 + $0x6a] sm:$0xff]
      %v3388 = vld [vmem:[%s2509 + $0x7a] sm:$0xff]
      %v3389 = vld [vmem:[%s2509 + $0x82] sm:$0xff]
      %v3390 = vld [vmem:[%s2509 + $0x8a] sm:$0xff]
      %v3391 = vld [vmem:[%s2509 + $0x92] sm:$0xff]
      %v3392 = vld [vmem:[%s2509 + $0xa2] sm:$0xff]
      %v3393 = vld [vmem:[%s2509 + $0xaa] sm:$0xff]
      %v3394 = vld [vmem:[%s2509 + $0xb2] sm:$0xff]
      %v3395 = vld [vmem:[%s2509 + $0xba] sm:$0xff]
      %v3396 = vld [vmem:[%s2509 + $0xca] sm:$0xff]
      %v3397 = vld [vmem:[%s2509 + $0xd2] sm:$0xff]
      %v3398 = vld [vmem:[%s2509 + $0xda] sm:$0xff]
      %v3399 = vld [vmem:[%s2509 + $0xe2] sm:$0xff]
      %v3400 = vld [vmem:[%s2509 + $0xf2] sm:$0xff]
      %v3401 = vld [vmem:[%s2509 + $0xfa] sm:$0xff]
      %v3402 = vld [vmem:[%s2509 + $0x102] sm:$0xff]
      %v3403 = vld [vmem:[%s2509 + $0x10a] sm:$0xff]
      %v3404 = vld [vmem:[%s2509 + $0x11a] sm:$0xff]
      %v3405 = vld [vmem:[%s2509 + $0x122] sm:$0xff]
      %v3406 = vld [vmem:[%s2509 + $0x12a] sm:$0xff]
      %v3407 = vld [vmem:[%s2509 + $0x132] sm:$0xff]
      %v3408 = vld [vmem:[%s2509 + $0x142] sm:$0xff]
      %v3409 = vld [vmem:[%s2509 + $0x14a] sm:$0xff]
      %v3410 = vld [vmem:[%s2509 + $0x152] sm:$0xff]
      %v3411 = vld [vmem:[%s2509 + $0x15a] sm:$0xff]
      %v3412 = vld [vmem:[%s2509 + $0x16a] sm:$0xff]
      %v3413 = vld [vmem:[%s2509 + $0x172] sm:$0xff]
      %v3414 = vld [vmem:[%s2509 + $0x17a] sm:$0xff]
      %v3415 = vld [vmem:[%s2509 + $0x182] sm:$0xff]
      %v3416 = vld [vmem:[%s2509 + $0x192] sm:$0xff]
      %v3417 = vld [vmem:[%s2509 + $0x19a] sm:$0xff]
      %v3418 = vld [vmem:[%s2509 + $0x1a2] sm:$0xff]
      %v3419 = vld [vmem:[%s2509 + $0x1aa] sm:$0xff]
      %v3420 = vld [vmem:[%s2509 + $0x1ba] sm:$0xff]
      %v3421 = vld [vmem:[%s2509 + $0x1c2] sm:$0xff]
      %v3422 = vld [vmem:[%s2509 + $0x1ca] sm:$0xff]
      %v3423 = vld [vmem:[%s2509 + $0x1d2] sm:$0xff]
      %v3424 = vld [vmem:[%s2509 + $0x1e2] sm:$0xff]
      %v3425 = vld [vmem:[%s2509 + $0x1ea] sm:$0xff]
      %v3426 = vld [vmem:[%s2509 + $0x1f2] sm:$0xff]
      %v3427 = vld [vmem:[%s2509 + $0x1fa] sm:$0xff]
      %v3428 = vld [vmem:[%s2509 + $0x20a] sm:$0xff]
      %v3429 = vld [vmem:[%s2509 + $0x212] sm:$0xff]
      %v3430 = vld [vmem:[%s2509 + $0x21a] sm:$0xff]
      %v3431 = vld [vmem:[%s2509 + $0x222] sm:$0xff]
      %v3432 = vld [vmem:[%s2509 + $0x232] sm:$0xff]
      %v3433 = vld [vmem:[%s2509 + $0x23a] sm:$0xff]
      %v3434 = vld [vmem:[%s2509 + $0x242] sm:$0xff]
      %v3435 = vld [vmem:[%s2509 + $0x24a] sm:$0xff]
      %v3436 = vld [vmem:[%s2509 + $0x25a] sm:$0xff]
      %v3437 = vld [vmem:[%s2509 + $0x262] sm:$0xff]
      %v3438 = vld [vmem:[%s2509 + $0x26a] sm:$0xff]
      %v3439 = vld [vmem:[%s2509 + $0x272] sm:$0xff]
      %v3440 = vld [vmem:[%s2509 + $0x282] sm:$0xff]
      %v3441 = vld [vmem:[%s2509 + $0x28a] sm:$0xff]
      %v3442 = vld [vmem:[%s2509 + $0x292] sm:$0xff]
      %v3443 = vld [vmem:[%s2509 + $0x29a] sm:$0xff]
      %v3444 = vld [vmem:[%s2509 + $0x2aa] sm:$0xff]
      %v3445 = vld [vmem:[%s2509 + $0x2b2] sm:$0xff]
      %v3446 = vld [vmem:[%s2509 + $0x2ba] sm:$0xff]
      %v3447 = vld [vmem:[%s2509 + $0x2c2] sm:$0xff]
      %3520 = vrot.lane.b32.xlu0 %v3376, 32
      %v3521 = vpop.permute.xlu0 %3520
      %3522 = vrot.lane.b32.xlu0 %v3377, 32
      %v3523 = vpop.permute.xlu0 %3522
      %3524 = vrot.lane.b32.xlu0 %v3378, 32
      %v3525 = vpop.permute.xlu0 %3524
      %3526 = vrot.lane.b32.xlu0 %v3379, 32
      %v3527 = vpop.permute.xlu0 %3526
      %3528 = vrot.lane.b32.xlu0 %v3380, 32
      %v3529 = vpop.permute.xlu0 %3528
      %3530 = vrot.lane.b32.xlu0 %v3381, 32
      %v3531 = vpop.permute.xlu0 %3530
      %3532 = vrot.lane.b32.xlu0 %v3382, 32
      %v3533 = vpop.permute.xlu0 %3532
      %3534 = vrot.lane.b32.xlu0 %v3383, 32
      %v3535 = vpop.permute.xlu0 %3534
      %3536 = vrot.lane.b32.xlu0 %v3384, 32
      %v3537 = vpop.permute.xlu0 %3536
      %3538 = vrot.lane.b32.xlu0 %v3385, 32
      %v3539 = vpop.permute.xlu0 %3538
      %3540 = vrot.lane.b32.xlu0 %v3386, 32
      %v3541 = vpop.permute.xlu0 %3540
      %3542 = vrot.lane.b32.xlu0 %v3387, 32
      %v3543 = vpop.permute.xlu0 %3542
      %3544 = vrot.lane.b32.xlu0 %v3388, 32
      %v3545 = vpop.permute.xlu0 %3544
      %3546 = vrot.lane.b32.xlu0 %v3389, 32
      %v3547 = vpop.permute.xlu0 %3546
      %3548 = vrot.lane.b32.xlu0 %v3390, 32
      %v3549 = vpop.permute.xlu0 %3548
      %3550 = vrot.lane.b32.xlu0 %v3391, 32
      %v3551 = vpop.permute.xlu0 %3550
      %3552 = vrot.lane.b32.xlu0 %v3392, 32
      %v3553 = vpop.permute.xlu0 %3552
      %3554 = vrot.lane.b32.xlu0 %v3393, 32
      %v3555 = vpop.permute.xlu0 %3554
      %3556 = vrot.lane.b32.xlu0 %v3394, 32
      %v3557 = vpop.permute.xlu0 %3556
      %3558 = vrot.lane.b32.xlu0 %v3395, 32
      %v3559 = vpop.permute.xlu0 %3558
      %3560 = vrot.lane.b32.xlu0 %v3396, 32
      %v3561 = vpop.permute.xlu0 %3560
      %3562 = vrot.lane.b32.xlu0 %v3397, 32
      %v3563 = vpop.permute.xlu0 %3562
      %3564 = vrot.lane.b32.xlu0 %v3398, 32
      %v3565 = vpop.permute.xlu0 %3564
      %3566 = vrot.lane.b32.xlu0 %v3399, 32
      %v3567 = vpop.permute.xlu0 %3566
      %3568 = vrot.lane.b32.xlu0 %v3400, 32
      %v3569 = vpop.permute.xlu0 %3568
      %3570 = vrot.lane.b32.xlu0 %v3401, 32
      %v3571 = vpop.permute.xlu0 %3570
      %3572 = vrot.lane.b32.xlu0 %v3402, 32
      %v3573 = vpop.permute.xlu0 %3572
      %3574 = vrot.lane.b32.xlu0 %v3403, 32
      %v3575 = vpop.permute.xlu0 %3574
      %3576 = vrot.lane.b32.xlu0 %v3404, 32
      %v3577 = vpop.permute.xlu0 %3576
      %3578 = vrot.lane.b32.xlu0 %v3405, 32
      %v3579 = vpop.permute.xlu0 %3578
      %3580 = vrot.lane.b32.xlu0 %v3406, 32
      %v3581 = vpop.permute.xlu0 %3580
      %3582 = vrot.lane.b32.xlu0 %v3407, 32
      %v3583 = vpop.permute.xlu0 %3582
      %3584 = vrot.lane.b32.xlu0 %v3408, 32
      %v3585 = vpop.permute.xlu0 %3584
      %3586 = vrot.lane.b32.xlu0 %v3409, 32
      %v3587 = vpop.permute.xlu0 %3586
      %3588 = vrot.lane.b32.xlu0 %v3410, 32
      %v3589 = vpop.permute.xlu0 %3588
      %3590 = vrot.lane.b32.xlu0 %v3411, 32
      %v3591 = vpop.permute.xlu0 %3590
      %3592 = vrot.lane.b32.xlu0 %v3412, 32
      %v3593 = vpop.permute.xlu0 %3592
      %3594 = vrot.lane.b32.xlu0 %v3413, 32
      %v3595 = vpop.permute.xlu0 %3594
      %3596 = vrot.lane.b32.xlu0 %v3414, 32
      %v3597 = vpop.permute.xlu0 %3596
      %3598 = vrot.lane.b32.xlu0 %v3415, 32
      %v3599 = vpop.permute.xlu0 %3598
      %3600 = vrot.lane.b32.xlu0 %v3416, 32
      %v3601 = vpop.permute.xlu0 %3600
      %3602 = vrot.lane.b32.xlu0 %v3417, 32
      %v3603 = vpop.permute.xlu0 %3602
      %3604 = vrot.lane.b32.xlu0 %v3418, 32
      %v3605 = vpop.permute.xlu0 %3604
      %3606 = vrot.lane.b32.xlu0 %v3419, 32
      %v3607 = vpop.permute.xlu0 %3606
      %3608 = vrot.lane.b32.xlu0 %v3420, 32
      %v3609 = vpop.permute.xlu0 %3608
      %3610 = vrot.lane.b32.xlu0 %v3421, 32
      %v3611 = vpop.permute.xlu0 %3610
      %3612 = vrot.lane.b32.xlu0 %v3422, 32
      %v3613 = vpop.permute.xlu0 %3612
      %3614 = vrot.lane.b32.xlu0 %v3423, 32
      %v3615 = vpop.permute.xlu0 %3614
      %3616 = vrot.lane.b32.xlu0 %v3424, 32
      %v3617 = vpop.permute.xlu0 %3616
      %3618 = vrot.lane.b32.xlu0 %v3425, 32
      %v3619 = vpop.permute.xlu0 %3618
      %3620 = vrot.lane.b32.xlu0 %v3426, 32
      %v3621 = vpop.permute.xlu0 %3620
      %3622 = vrot.lane.b32.xlu0 %v3427, 32
      %v3623 = vpop.permute.xlu0 %3622
      %3624 = vrot.lane.b32.xlu0 %v3428, 32
      %v3625 = vpop.permute.xlu0 %3624
      %3626 = vrot.lane.b32.xlu0 %v3429, 32
      %v3627 = vpop.permute.xlu0 %3626
      %3628 = vrot.lane.b32.xlu0 %v3430, 32
      %v3629 = vpop.permute.xlu0 %3628
      %3630 = vrot.lane.b32.xlu0 %v3431, 32
      %v3631 = vpop.permute.xlu0 %3630
      %3632 = vrot.lane.b32.xlu0 %v3432, 32
      %v3633 = vpop.permute.xlu0 %3632
      %3634 = vrot.lane.b32.xlu0 %v3433, 32
      %v3635 = vpop.permute.xlu0 %3634
      %3636 = vrot.lane.b32.xlu0 %v3434, 32
      %v3637 = vpop.permute.xlu0 %3636
      %3638 = vrot.lane.b32.xlu0 %v3435, 32
      %v3639 = vpop.permute.xlu0 %3638
      %3640 = vrot.lane.b32.xlu0 %v3436, 32
      %v3641 = vpop.permute.xlu0 %3640
      %3642 = vrot.lane.b32.xlu0 %v3437, 32
      %v3643 = vpop.permute.xlu0 %3642
      %3644 = vrot.lane.b32.xlu0 %v3438, 32
      %v3645 = vpop.permute.xlu0 %3644
      %3646 = vrot.lane.b32.xlu0 %v3439, 32
      %v3647 = vpop.permute.xlu0 %3646
      %3648 = vrot.lane.b32.xlu0 %v3440, 32
      %v3649 = vpop.permute.xlu0 %3648
      %3650 = vrot.lane.b32.xlu0 %v3441, 32
      %v3651 = vpop.permute.xlu0 %3650
      %3652 = vrot.lane.b32.xlu0 %v3442, 32
      %v3653 = vpop.permute.xlu0 %3652
      %3654 = vrot.lane.b32.xlu0 %v3443, 32
      %v3655 = vpop.permute.xlu0 %3654
      %3656 = vrot.lane.b32.xlu0 %v3444, 32
      %v3657 = vpop.permute.xlu0 %3656
      %3658 = vrot.lane.b32.xlu0 %v3445, 32
      %v3659 = vpop.permute.xlu0 %3658
      %3660 = vrot.lane.b32.xlu0 %v3446, 32
      %v3661 = vpop.permute.xlu0 %3660
      %3662 = vrot.lane.b32.xlu0 %v3447, 32
      %v3663 = vpop.permute.xlu0 %3662
      %vm3736 = vcmask 294144
      %3737 = vst.msk [vmem:[#allocation2] sm:$0xff] %vm3736, %v3521
      %3738 = vst.msk [vmem:[#allocation2 + $0x8] sm:$0xff] %vm3736, %v3523
      %3739 = vst.msk [vmem:[#allocation2 + $0x10] sm:$0xff] %vm3736, %v3525
      %3740 = vst.msk [vmem:[#allocation2 + $0x18] sm:$0xff] %vm3736, %v3527
      %3741 = vst.msk [vmem:[#allocation2 + $0x20] sm:$0xff] %vm3736, %v3529
      %3742 = vst.msk [vmem:[#allocation2 + $0x28] sm:$0xff] %vm3736, %v3531
      %3743 = vst.msk [vmem:[#allocation2 + $0x30] sm:$0xff] %vm3736, %v3533
      %3744 = vst.msk [vmem:[#allocation2 + $0x38] sm:$0xff] %vm3736, %v3535
      %3745 = vst.msk [vmem:[#allocation2 + $0x40] sm:$0xff] %vm3736, %v3537
      %3746 = vst.msk [vmem:[#allocation2 + $0x48] sm:$0xff] %vm3736, %v3539
      %3747 = vst.msk [vmem:[#allocation2 + $0x50] sm:$0xff] %vm3736, %v3541
      %3748 = vst.msk [vmem:[#allocation2 + $0x58] sm:$0xff] %vm3736, %v3543
      %3749 = vst.msk [vmem:[#allocation2 + $0x60] sm:$0xff] %vm3736, %v3545
      %3750 = vst.msk [vmem:[#allocation2 + $0x68] sm:$0xff] %vm3736, %v3547
      %3751 = vst.msk [vmem:[#allocation2 + $0x70] sm:$0xff] %vm3736, %v3549
      %3752 = vst.msk [vmem:[#allocation2 + $0x78] sm:$0xff] %vm3736, %v3551
      %3753 = vst.msk [vmem:[#allocation2 + $0x80] sm:$0xff] %vm3736, %v3553
      %3754 = vst.msk [vmem:[#allocation2 + $0x88] sm:$0xff] %vm3736, %v3555
      %3755 = vst.msk [vmem:[#allocation2 + $0x90] sm:$0xff] %vm3736, %v3557
      %3756 = vst.msk [vmem:[#allocation2 + $0x98] sm:$0xff] %vm3736, %v3559
      %3757 = vst.msk [vmem:[#allocation2 + $0xa0] sm:$0xff] %vm3736, %v3561
      %3758 = vst.msk [vmem:[#allocation2 + $0xa8] sm:$0xff] %vm3736, %v3563
      %3759 = vst.msk [vmem:[#allocation2 + $0xb0] sm:$0xff] %vm3736, %v3565
      %3760 = vst.msk [vmem:[#allocation2 + $0xb8] sm:$0xff] %vm3736, %v3567
      %3761 = vst.msk [vmem:[#allocation2 + $0xc0] sm:$0xff] %vm3736, %v3569
      %3762 = vst.msk [vmem:[#allocation2 + $0xc8] sm:$0xff] %vm3736, %v3571
      %3763 = vst.msk [vmem:[#allocation2 + $0xd0] sm:$0xff] %vm3736, %v3573
      %3764 = vst.msk [vmem:[#allocation2 + $0xd8] sm:$0xff] %vm3736, %v3575
      %3765 = vst.msk [vmem:[#allocation2 + $0xe0] sm:$0xff] %vm3736, %v3577
      %3766 = vst.msk [vmem:[#allocation2 + $0xe8] sm:$0xff] %vm3736, %v3579
      %3767 = vst.msk [vmem:[#allocation2 + $0xf0] sm:$0xff] %vm3736, %v3581
      %3768 = vst.msk [vmem:[#allocation2 + $0xf8] sm:$0xff] %vm3736, %v3583
      %3769 = vst.msk [vmem:[#allocation2 + $0x100] sm:$0xff] %vm3736, %v3585
      %3770 = vst.msk [vmem:[#allocation2 + $0x108] sm:$0xff] %vm3736, %v3587
      %3771 = vst.msk [vmem:[#allocation2 + $0x110] sm:$0xff] %vm3736, %v3589
      %3772 = vst.msk [vmem:[#allocation2 + $0x118] sm:$0xff] %vm3736, %v3591
      %3773 = vst.msk [vmem:[#allocation2 + $0x120] sm:$0xff] %vm3736, %v3593
      %3774 = vst.msk [vmem:[#allocation2 + $0x128] sm:$0xff] %vm3736, %v3595
      %3775 = vst.msk [vmem:[#allocation2 + $0x130] sm:$0xff] %vm3736, %v3597
      %3776 = vst.msk [vmem:[#allocation2 + $0x138] sm:$0xff] %vm3736, %v3599
      %3777 = vst.msk [vmem:[#allocation2 + $0x140] sm:$0xff] %vm3736, %v3601
      %3778 = vst.msk [vmem:[#allocation2 + $0x148] sm:$0xff] %vm3736, %v3603
      %3779 = vst.msk [vmem:[#allocation2 + $0x150] sm:$0xff] %vm3736, %v3605
      %3780 = vst.msk [vmem:[#allocation2 + $0x158] sm:$0xff] %vm3736, %v3607
      %3781 = vst.msk [vmem:[#allocation2 + $0x160] sm:$0xff] %vm3736, %v3609
      %3782 = vst.msk [vmem:[#allocation2 + $0x168] sm:$0xff] %vm3736, %v3611
      %3783 = vst.msk [vmem:[#allocation2 + $0x170] sm:$0xff] %vm3736, %v3613
      %3784 = vst.msk [vmem:[#allocation2 + $0x178] sm:$0xff] %vm3736, %v3615
      %3785 = vst.msk [vmem:[#allocation2 + $0x180] sm:$0xff] %vm3736, %v3617
      %3786 = vst.msk [vmem:[#allocation2 + $0x188] sm:$0xff] %vm3736, %v3619
      %3787 = vst.msk [vmem:[#allocation2 + $0x190] sm:$0xff] %vm3736, %v3621
      %3788 = vst.msk [vmem:[#allocation2 + $0x198] sm:$0xff] %vm3736, %v3623
      %3789 = vst.msk [vmem:[#allocation2 + $0x1a0] sm:$0xff] %vm3736, %v3625
      %3790 = vst.msk [vmem:[#allocation2 + $0x1a8] sm:$0xff] %vm3736, %v3627
      %3791 = vst.msk [vmem:[#allocation2 + $0x1b0] sm:$0xff] %vm3736, %v3629
      %3792 = vst.msk [vmem:[#allocation2 + $0x1b8] sm:$0xff] %vm3736, %v3631
      %3793 = vst.msk [vmem:[#allocation2 + $0x1c0] sm:$0xff] %vm3736, %v3633
      %3794 = vst.msk [vmem:[#allocation2 + $0x1c8] sm:$0xff] %vm3736, %v3635
      %3795 = vst.msk [vmem:[#allocation2 + $0x1d0] sm:$0xff] %vm3736, %v3637
      %3796 = vst.msk [vmem:[#allocation2 + $0x1d8] sm:$0xff] %vm3736, %v3639
      %3797 = vst.msk [vmem:[#allocation2 + $0x1e0] sm:$0xff] %vm3736, %v3641
      %3798 = vst.msk [vmem:[#allocation2 + $0x1e8] sm:$0xff] %vm3736, %v3643
      %3799 = vst.msk [vmem:[#allocation2 + $0x1f0] sm:$0xff] %vm3736, %v3645
      %3800 = vst.msk [vmem:[#allocation2 + $0x1f8] sm:$0xff] %vm3736, %v3647
      %3801 = vst.msk [vmem:[#allocation2 + $0x200] sm:$0xff] %vm3736, %v3649
      %3802 = vst.msk [vmem:[#allocation2 + $0x208] sm:$0xff] %vm3736, %v3651
      %3803 = vst.msk [vmem:[#allocation2 + $0x210] sm:$0xff] %vm3736, %v3653
      %3804 = vst.msk [vmem:[#allocation2 + $0x218] sm:$0xff] %vm3736, %v3655
      %3805 = vst.msk [vmem:[#allocation2 + $0x220] sm:$0xff] %vm3736, %v3657
      %3806 = vst.msk [vmem:[#allocation2 + $0x228] sm:$0xff] %vm3736, %v3659
      %3807 = vst.msk [vmem:[#allocation2 + $0x230] sm:$0xff] %vm3736, %v3661
      %3808 = vst.msk [vmem:[#allocation2 + $0x238] sm:$0xff] %vm3736, %v3663
      %v3809 = vld [vmem:[#allocation2] sm:$0xff]
      %v3810 = vld [vmem:[#allocation2 + $0x8] sm:$0xff]
      %v3811 = vld [vmem:[#allocation2 + $0x10] sm:$0xff]
      %v3812 = vld [vmem:[#allocation2 + $0x18] sm:$0xff]
      %v3813 = vld [vmem:[#allocation2 + $0x20] sm:$0xff]
      %v3814 = vld [vmem:[#allocation2 + $0x28] sm:$0xff]
      %v3815 = vld [vmem:[#allocation2 + $0x30] sm:$0xff]
      %v3816 = vld [vmem:[#allocation2 + $0x38] sm:$0xff]
      %v3817 = vld [vmem:[#allocation2 + $0x40] sm:$0xff]
      %v3818 = vld [vmem:[#allocation2 + $0x48] sm:$0xff]
      %v3819 = vld [vmem:[#allocation2 + $0x50] sm:$0xff]
      %v3820 = vld [vmem:[#allocation2 + $0x58] sm:$0xff]
      %v3821 = vld [vmem:[#allocation2 + $0x60] sm:$0xff]
      %v3822 = vld [vmem:[#allocation2 + $0x68] sm:$0xff]
      %v3823 = vld [vmem:[#allocation2 + $0x70] sm:$0xff]
      %v3824 = vld [vmem:[#allocation2 + $0x78] sm:$0xff]
      %v3825 = vld [vmem:[#allocation2 + $0x80] sm:$0xff]
      %v3826 = vld [vmem:[#allocation2 + $0x88] sm:$0xff]
      %v3827 = vld [vmem:[#allocation2 + $0x90] sm:$0xff]
      %v3828 = vld [vmem:[#allocation2 + $0x98] sm:$0xff]
      %v3829 = vld [vmem:[#allocation2 + $0xa0] sm:$0xff]
      %v3830 = vld [vmem:[#allocation2 + $0xa8] sm:$0xff]
      %v3831 = vld [vmem:[#allocation2 + $0xb0] sm:$0xff]
      %v3832 = vld [vmem:[#allocation2 + $0xb8] sm:$0xff]
      %v3833 = vld [vmem:[#allocation2 + $0xc0] sm:$0xff]
      %v3834 = vld [vmem:[#allocation2 + $0xc8] sm:$0xff]
      %v3835 = vld [vmem:[#allocation2 + $0xd0] sm:$0xff]
      %v3836 = vld [vmem:[#allocation2 + $0xd8] sm:$0xff]
      %v3837 = vld [vmem:[#allocation2 + $0xe0] sm:$0xff]
      %v3838 = vld [vmem:[#allocation2 + $0xe8] sm:$0xff]
      %v3839 = vld [vmem:[#allocation2 + $0xf0] sm:$0xff]
      %v3840 = vld [vmem:[#allocation2 + $0xf8] sm:$0xff]
      %v3841 = vld [vmem:[#allocation2 + $0x100] sm:$0xff]
      %v3842 = vld [vmem:[#allocation2 + $0x108] sm:$0xff]
      %v3843 = vld [vmem:[#allocation2 + $0x110] sm:$0xff]
      %v3844 = vld [vmem:[#allocation2 + $0x118] sm:$0xff]
      %v3845 = vld [vmem:[#allocation2 + $0x120] sm:$0xff]
      %v3846 = vld [vmem:[#allocation2 + $0x128] sm:$0xff]
      %v3847 = vld [vmem:[#allocation2 + $0x130] sm:$0xff]
      %v3848 = vld [vmem:[#allocation2 + $0x138] sm:$0xff]
      %v3849 = vld [vmem:[#allocation2 + $0x140] sm:$0xff]
      %v3850 = vld [vmem:[#allocation2 + $0x148] sm:$0xff]
      %v3851 = vld [vmem:[#allocation2 + $0x150] sm:$0xff]
      %v3852 = vld [vmem:[#allocation2 + $0x158] sm:$0xff]
      %v3853 = vld [vmem:[#allocation2 + $0x160] sm:$0xff]
      %v3854 = vld [vmem:[#allocation2 + $0x168] sm:$0xff]
      %v3855 = vld [vmem:[#allocation2 + $0x170] sm:$0xff]
      %v3856 = vld [vmem:[#allocation2 + $0x178] sm:$0xff]
      %v3857 = vld [vmem:[#allocation2 + $0x180] sm:$0xff]
      %v3858 = vld [vmem:[#allocation2 + $0x188] sm:$0xff]
      %v3859 = vld [vmem:[#allocation2 + $0x190] sm:$0xff]
      %v3860 = vld [vmem:[#allocation2 + $0x198] sm:$0xff]
      %v3861 = vld [vmem:[#allocation2 + $0x1a0] sm:$0xff]
      %v3862 = vld [vmem:[#allocation2 + $0x1a8] sm:$0xff]
      %v3863 = vld [vmem:[#allocation2 + $0x1b0] sm:$0xff]
      %v3864 = vld [vmem:[#allocation2 + $0x1b8] sm:$0xff]
      %v3865 = vld [vmem:[#allocation2 + $0x1c0] sm:$0xff]
      %v3866 = vld [vmem:[#allocation2 + $0x1c8] sm:$0xff]
      %v3867 = vld [vmem:[#allocation2 + $0x1d0] sm:$0xff]
      %v3868 = vld [vmem:[#allocation2 + $0x1d8] sm:$0xff]
      %v3869 = vld [vmem:[#allocation2 + $0x1e0] sm:$0xff]
      %v3870 = vld [vmem:[#allocation2 + $0x1e8] sm:$0xff]
      %v3871 = vld [vmem:[#allocation2 + $0x1f0] sm:$0xff]
      %v3872 = vld [vmem:[#allocation2 + $0x1f8] sm:$0xff]
      %v3873 = vld [vmem:[#allocation2 + $0x200] sm:$0xff]
      %v3874 = vld [vmem:[#allocation2 + $0x208] sm:$0xff]
      %v3875 = vld [vmem:[#allocation2 + $0x210] sm:$0xff]
      %v3876 = vld [vmem:[#allocation2 + $0x218] sm:$0xff]
      %v3877 = vld [vmem:[#allocation2 + $0x220] sm:$0xff]
      %v3878 = vld [vmem:[#allocation2 + $0x228] sm:$0xff]
      %v3879 = vld [vmem:[#allocation2 + $0x230] sm:$0xff]
      %v3880 = vld [vmem:[#allocation2 + $0x238] sm:$0xff]
      %v3881 = vld [vmem:[%s1] sm:$0xff]
      %v3882 = vld [vmem:[%s1 + $0x8] sm:$0xff]
      %v3883 = vld [vmem:[%s1 + $0x10] sm:$0xff]
      %v3884 = vld [vmem:[%s1 + $0x18] sm:$0xff]
      %v3885 = vld [vmem:[%s1 + $0x20] sm:$0xf]
      %vm3886 = vcmask 293888
      %v3888 = vsel %vm3886, %v3809, 0
      %v3891 = vsel %vm3886, %v3810, 0
      %v3894 = vsel %vm3886, %v3811, 0
      %v3897 = vsel %vm3886, %v3812, 0
      %v3900 = vsel %vm3886, %v3813, 0
      %v3903 = vsel %vm3886, %v3814, 0
      %v3906 = vsel %vm3886, %v3815, 0
      %v3909 = vsel %vm3886, %v3816, 0
      %v3912 = vsel %vm3886, %v3817, 0
      %v3915 = vsel %vm3886, %v3818, 0
      %v3918 = vsel %vm3886, %v3819, 0
      %v3921 = vsel %vm3886, %v3820, 0
      %v3924 = vsel %vm3886, %v3821, 0
      %v3927 = vsel %vm3886, %v3822, 0
      %v3930 = vsel %vm3886, %v3823, 0
      %v3933 = vsel %vm3886, %v3824, 0
      %v3936 = vsel %vm3886, %v3825, 0
      %v3939 = vsel %vm3886, %v3826, 0
      %v3942 = vsel %vm3886, %v3827, 0
      %v3945 = vsel %vm3886, %v3828, 0
      %v3948 = vsel %vm3886, %v3829, 0
      %v3951 = vsel %vm3886, %v3830, 0
      %v3954 = vsel %vm3886, %v3831, 0
      %v3957 = vsel %vm3886, %v3832, 0
      %v3960 = vsel %vm3886, %v3833, 0
      %v3963 = vsel %vm3886, %v3834, 0
      %v3966 = vsel %vm3886, %v3835, 0
      %v3969 = vsel %vm3886, %v3836, 0
      %v3972 = vsel %vm3886, %v3837, 0
      %v3975 = vsel %vm3886, %v3838, 0
      %v3978 = vsel %vm3886, %v3839, 0
      %v3981 = vsel %vm3886, %v3840, 0
      %v3984 = vsel %vm3886, %v3841, 0
      %v3987 = vsel %vm3886, %v3842, 0
      %v3990 = vsel %vm3886, %v3843, 0
      %v3993 = vsel %vm3886, %v3844, 0
      %v3996 = vsel %vm3886, %v3845, 0
      %v3999 = vsel %vm3886, %v3846, 0
      %v4002 = vsel %vm3886, %v3847, 0
      %v4005 = vsel %vm3886, %v3848, 0
      %v4008 = vsel %vm3886, %v3849, 0
      %v4011 = vsel %vm3886, %v3850, 0
      %v4014 = vsel %vm3886, %v3851, 0
      %v4017 = vsel %vm3886, %v3852, 0
      %v4020 = vsel %vm3886, %v3853, 0
      %v4023 = vsel %vm3886, %v3854, 0
      %v4026 = vsel %vm3886, %v3855, 0
      %v4029 = vsel %vm3886, %v3856, 0
      %v4032 = vsel %vm3886, %v3857, 0
      %v4035 = vsel %vm3886, %v3858, 0
      %v4038 = vsel %vm3886, %v3859, 0
      %v4041 = vsel %vm3886, %v3860, 0
      %v4044 = vsel %vm3886, %v3861, 0
      %v4047 = vsel %vm3886, %v3862, 0
      %v4050 = vsel %vm3886, %v3863, 0
      %v4053 = vsel %vm3886, %v3864, 0
      %v4056 = vsel %vm3886, %v3865, 0
      %v4059 = vsel %vm3886, %v3866, 0
      %v4062 = vsel %vm3886, %v3867, 0
      %v4065 = vsel %vm3886, %v3868, 0
      %v4068 = vsel %vm3886, %v3869, 0
      %v4071 = vsel %vm3886, %v3870, 0
      %v4074 = vsel %vm3886, %v3871, 0
      %v4077 = vsel %vm3886, %v3872, 0
      %v4080 = vsel %vm3886, %v3873, 0
      %v4083 = vsel %vm3886, %v3874, 0
      %v4086 = vsel %vm3886, %v3875, 0
      %v4089 = vsel %vm3886, %v3876, 0
      %v4092 = vsel %vm3886, %v3877, 0
      %v4095 = vsel %vm3886, %v3878, 0
      %v4098 = vsel %vm3886, %v3879, 0
      %v4101 = vsel %vm3886, %v3880, 0
      %vm4103 = vcmask 1043456
      %v4105 = vsel %vm4103, %v3885, 0
      %4107 = vmatprep.subr.mxu0 0.0
      %4108 = vmatpush1.msra.mxu0 0.0
      %4109 = vmatprep.subr.mxu0 0.0
      %4110 = vmatpush1.msra.mxu0 0.0
      %4111 = vmatprep.subr.mxu0 0.0
      %4112 = vmatpush1.msra.mxu0 0.0
      %4113 = vmatprep.subr.mxu0 0.0
      %4114 = vmatpush1.msra.mxu0 0.0
      %4115 = vmatprep.subr.mxu0 0.0
      %4116 = vmatpush1.msra.mxu0 0.0
      %4117 = vmatprep.subr.mxu0 0.0
      %4118 = vmatpush1.msra.mxu0 0.0
      %4119 = vmatprep.subr.mxu0 0.0
      %4120 = vmatpush1.msra.mxu0 0.0
      %4121 = vmatprep.subr.mxu0 0.0
      %4122 = vmatpush1.msra.mxu0 0.0
      %4123 = vmatprep.subr.mxu0 0.0
      %4124 = vmatpush1.msra.mxu0 0.0
      %4125 = vmatprep.subr.mxu0 0.0
      %4126 = vmatpush1.msra.mxu0 0.0
      %4127 = vmatprep.subr.mxu0 0.0
      %4128 = vmatpush1.msra.mxu0 0.0
      %4129 = vmatprep.subr.mxu0 0.0
      %4130 = vmatpush1.msra.mxu0 %v4105
      %4131 = vmatprep.subr.mxu0 0.0
      %4132 = vmatpush1.msra.mxu0 %v3884
      %4133 = vmatprep.subr.mxu0 0.0
      %4134 = vmatpush1.msra.mxu0 %v3883
      %4135 = vmatprep.subr.mxu0 0.0
      %4136 = vmatpush1.msra.mxu0 %v3882
      %4137 = vmatprep.subr.mxu0 0.0
      %4138 = vmatpush1.msra.mxu0 %v3881
      %4139 = vmatprep.subr.mxu0 0.0
      %4140 = vmatpush2.msra.mxu0 0.0
      %4141 = vmatprep.subr.mxu0 0.0
      %4142 = vmatpush2.msra.mxu0 0.0
      %4143 = vmatprep.subr.mxu0 0.0
      %4144 = vmatpush2.msra.mxu0 0.0
      %4145 = vmatprep.subr.mxu0 0.0
      %4146 = vmatpush2.msra.mxu0 0.0
      %4147 = vmatprep.subr.mxu0 0.0
      %4148 = vmatpush2.msra.mxu0 0.0
      %4149 = vmatprep.subr.mxu0 0.0
      %4150 = vmatpush2.msra.mxu0 0.0
      %4151 = vmatprep.subr.mxu0 0.0
      %4152 = vmatpush2.msra.mxu0 0.0
      %4153 = vmatprep.subr.mxu0 0.0
      %4154 = vmatpush2.msra.mxu0 0.0
      %4155 = vmatprep.subr.mxu0 0.0
      %4156 = vmatpush2.msra.mxu0 0.0
      %4157 = vmatprep.subr.mxu0 0.0
      %4158 = vmatpush2.msra.mxu0 0.0
      %4159 = vmatprep.subr.mxu0 0.0
      %4160 = vmatpush2.msra.mxu0 0.0
      %4161 = vmatprep.subr.mxu0 0.0
      %4162 = vmatpush2.msra.mxu0 0.0
      %4163 = vmatprep.subr.mxu0 0.0
      %4164 = vmatpush2.msra.mxu0 0.0
      %4165 = vmatprep.subr.mxu0 0.0
      %4166 = vmatpush2.msra.mxu0 0.0
      %4167 = vmatprep.subr.mxu0 0.0
      %4168 = vmatpush2.msra.mxu0 0.0
      %4169 = vmatprep.subr.mxu0 0.0
      %4170 = vmatpush2.msra.mxu0 0.0
      %4171 = vmatprep.mubr.f32.mxu0 0.0
      %4172 = vmatmul.mubr.f32.gmra.mxu0 %v3888
      %v4173 = vpop.f32.mrf.mxu0
      %v4174 = vadd.f32 0.0, %v4173
      %v4175 = vpop.f32.mrf.mxu0
      %4176 = vmatprep.mubr.f32.mxu0 0.0
      %4177 = vmatmul.mubr.f32.gmra.mxu0 %v3891
      %v4178 = vpop.f32.mrf.mxu0
      %v4179 = vadd.f32 0.0, %v4178
      %v4180 = vpop.f32.mrf.mxu0
      %4181 = vmatprep.mubr.f32.mxu0 0.0
      %4182 = vmatmul.mubr.f32.gmra.mxu0 %v3894
      %v4183 = vpop.f32.mrf.mxu0
      %v4184 = vadd.f32 0.0, %v4183
      %v4185 = vpop.f32.mrf.mxu0
      %4186 = vmatprep.mubr.f32.mxu0 0.0
      %4187 = vmatmul.mubr.f32.gmra.mxu0 %v3897
      %v4188 = vpop.f32.mrf.mxu0
      %v4189 = vpop.f32.mrf.mxu0
      %4190 = vmatprep.mubr.f32.mxu0 0.0
      %4191 = vmatmul.mubr.f32.gmra.mxu0 %v3900
      %v4192 = vpop.f32.mrf.mxu0
      %v4193 = vadd.f32 0.0, %v4192
      %v4194 = vpop.f32.mrf.mxu0
      %4195 = vmatprep.mubr.f32.mxu0 0.0
      %4196 = vmatmul.mubr.f32.gmra.mxu0 %v3903
      %v4197 = vpop.f32.mrf.mxu0
      %v4198 = vadd.f32 0.0, %v4197
      %v4199 = vpop.f32.mrf.mxu0
      %4200 = vmatprep.mubr.f32.mxu0 0.0
      %4201 = vmatmul.mubr.f32.gmra.mxu0 %v3906
      %v4202 = vpop.f32.mrf.mxu0
      %v4203 = vadd.f32 0.0, %v4202
      %v4204 = vpop.f32.mrf.mxu0
      %4205 = vmatprep.mubr.f32.mxu0 0.0
      %4206 = vmatmul.mubr.f32.gmra.mxu0 %v3909
      %v4207 = vpop.f32.mrf.mxu0
      %v4208 = vpop.f32.mrf.mxu0
      %4209 = vmatprep.mubr.f32.mxu0 0.0
      %4210 = vmatmul.mubr.f32.gmra.mxu0 %v3912
      %v4211 = vpop.f32.mrf.mxu0
      %v4212 = vadd.f32 0.0, %v4211
      %v4213 = vpop.f32.mrf.mxu0
      %4214 = vmatprep.mubr.f32.mxu0 0.0
      %4215 = vmatmul.mubr.f32.gmra.mxu0 %v3915
      %v4216 = vpop.f32.mrf.mxu0
      %v4217 = vadd.f32 0.0, %v4216
      %v4218 = vpop.f32.mrf.mxu0
      %4219 = vmatprep.mubr.f32.mxu0 0.0
      %4220 = vmatmul.mubr.f32.gmra.mxu0 %v3918
      %v4221 = vpop.f32.mrf.mxu0
      %v4222 = vadd.f32 0.0, %v4221
      %v4223 = vpop.f32.mrf.mxu0
      %4224 = vmatprep.mubr.f32.mxu0 0.0
      %4225 = vmatmul.mubr.f32.gmra.mxu0 %v3921
      %v4226 = vpop.f32.mrf.mxu0
      %v4227 = vpop.f32.mrf.mxu0
      %4228 = vmatprep.mubr.f32.mxu0 0.0
      %4229 = vmatmul.mubr.f32.gmra.mxu0 %v3924
      %v4230 = vpop.f32.mrf.mxu0
      %v4231 = vadd.f32 0.0, %v4230
      %v4232 = vpop.f32.mrf.mxu0
      %4233 = vmatprep.mubr.f32.mxu0 0.0
      %4234 = vmatmul.mubr.f32.gmra.mxu0 %v3927
      %v4235 = vpop.f32.mrf.mxu0
      %v4236 = vadd.f32 0.0, %v4235
      %v4237 = vpop.f32.mrf.mxu0
      %4238 = vmatprep.mubr.f32.mxu0 0.0
      %4239 = vmatmul.mubr.f32.gmra.mxu0 %v3930
      %v4240 = vpop.f32.mrf.mxu0
      %v4241 = vadd.f32 0.0, %v4240
      %v4242 = vpop.f32.mrf.mxu0
      %4243 = vmatprep.mubr.f32.mxu0 0.0
      %4244 = vmatmul.mubr.f32.gmra.mxu0 %v3933
      %v4245 = vpop.f32.mrf.mxu0
      %v4246 = vpop.f32.mrf.mxu0
      %4247 = vmatprep.mubr.f32.mxu0 0.0
      %4248 = vmatmul.mubr.f32.gmra.mxu0 %v3936
      %v4249 = vpop.f32.mrf.mxu0
      %v4250 = vadd.f32 0.0, %v4249
      %v4251 = vpop.f32.mrf.mxu0
      %4252 = vmatprep.mubr.f32.mxu0 0.0
      %4253 = vmatmul.mubr.f32.gmra.mxu0 %v3939
      %v4254 = vpop.f32.mrf.mxu0
      %v4255 = vadd.f32 0.0, %v4254
      %v4256 = vpop.f32.mrf.mxu0
      %4257 = vmatprep.mubr.f32.mxu0 0.0
      %4258 = vmatmul.mubr.f32.gmra.mxu0 %v3942
      %v4259 = vpop.f32.mrf.mxu0
      %v4260 = vadd.f32 0.0, %v4259
      %v4261 = vpop.f32.mrf.mxu0
      %4262 = vmatprep.mubr.f32.mxu0 0.0
      %4263 = vmatmul.mubr.f32.gmra.mxu0 %v3945
      %v4264 = vpop.f32.mrf.mxu0
      %v4265 = vpop.f32.mrf.mxu0
      %4266 = vmatprep.mubr.f32.mxu0 0.0
      %4267 = vmatmul.mubr.f32.gmra.mxu0 %v3948
      %v4268 = vpop.f32.mrf.mxu0
      %v4269 = vadd.f32 0.0, %v4268
      %v4270 = vpop.f32.mrf.mxu0
      %4271 = vmatprep.mubr.f32.mxu0 0.0
      %4272 = vmatmul.mubr.f32.gmra.mxu0 %v3951
      %v4273 = vpop.f32.mrf.mxu0
      %v4274 = vadd.f32 0.0, %v4273
      %v4275 = vpop.f32.mrf.mxu0
      %4276 = vmatprep.mubr.f32.mxu0 0.0
      %4277 = vmatmul.mubr.f32.gmra.mxu0 %v3954
      %v4278 = vpop.f32.mrf.mxu0
      %v4279 = vadd.f32 0.0, %v4278
      %v4280 = vpop.f32.mrf.mxu0
      %4281 = vmatprep.mubr.f32.mxu0 0.0
      %4282 = vmatmul.mubr.f32.gmra.mxu0 %v3957
      %v4283 = vpop.f32.mrf.mxu0
      %v4284 = vpop.f32.mrf.mxu0
      %4285 = vmatprep.mubr.f32.mxu0 0.0
      %4286 = vmatmul.mubr.f32.gmra.mxu0 %v3960
      %v4287 = vpop.f32.mrf.mxu0
      %v4288 = vadd.f32 0.0, %v4287
      %v4289 = vpop.f32.mrf.mxu0
      %4290 = vmatprep.mubr.f32.mxu0 0.0
      %4291 = vmatmul.mubr.f32.gmra.mxu0 %v3963
      %v4292 = vpop.f32.mrf.mxu0
      %v4293 = vadd.f32 0.0, %v4292
      %v4294 = vpop.f32.mrf.mxu0
      %4295 = vmatprep.mubr.f32.mxu0 0.0
      %4296 = vmatmul.mubr.f32.gmra.mxu0 %v3966
      %v4297 = vpop.f32.mrf.mxu0
      %v4298 = vadd.f32 0.0, %v4297
      %v4299 = vpop.f32.mrf.mxu0
      %4300 = vmatprep.mubr.f32.mxu0 0.0
      %4301 = vmatmul.mubr.f32.gmra.mxu0 %v3969
      %v4302 = vpop.f32.mrf.mxu0
      %v4303 = vpop.f32.mrf.mxu0
      %4304 = vmatprep.mubr.f32.mxu0 0.0
      %4305 = vmatmul.mubr.f32.gmra.mxu0 %v3972
      %v4306 = vpop.f32.mrf.mxu0
      %v4307 = vadd.f32 0.0, %v4306
      %v4308 = vpop.f32.mrf.mxu0
      %4309 = vmatprep.mubr.f32.mxu0 0.0
      %4310 = vmatmul.mubr.f32.gmra.mxu0 %v3975
      %v4311 = vpop.f32.mrf.mxu0
      %v4312 = vadd.f32 0.0, %v4311
      %v4313 = vpop.f32.mrf.mxu0
      %4314 = vmatprep.mubr.f32.mxu0 0.0
      %4315 = vmatmul.mubr.f32.gmra.mxu0 %v3978
      %v4316 = vpop.f32.mrf.mxu0
      %v4317 = vadd.f32 0.0, %v4316
      %v4318 = vpop.f32.mrf.mxu0
      %4319 = vmatprep.mubr.f32.mxu0 0.0
      %4320 = vmatmul.mubr.f32.gmra.mxu0 %v3981
      %v4321 = vpop.f32.mrf.mxu0
      %v4322 = vpop.f32.mrf.mxu0
      %4323 = vmatprep.mubr.f32.mxu0 0.0
      %4324 = vmatmul.mubr.f32.gmra.mxu0 %v3984
      %v4325 = vpop.f32.mrf.mxu0
      %v4326 = vadd.f32 0.0, %v4325
      %v4327 = vpop.f32.mrf.mxu0
      %4328 = vmatprep.mubr.f32.mxu0 0.0
      %4329 = vmatmul.mubr.f32.gmra.mxu0 %v3987
      %v4330 = vpop.f32.mrf.mxu0
      %v4331 = vadd.f32 0.0, %v4330
      %v4332 = vpop.f32.mrf.mxu0
      %4333 = vmatprep.mubr.f32.mxu0 0.0
      %4334 = vmatmul.mubr.f32.gmra.mxu0 %v3990
      %v4335 = vpop.f32.mrf.mxu0
      %v4336 = vadd.f32 0.0, %v4335
      %v4337 = vpop.f32.mrf.mxu0
      %4338 = vmatprep.mubr.f32.mxu0 0.0
      %4339 = vmatmul.mubr.f32.gmra.mxu0 %v3993
      %v4340 = vpop.f32.mrf.mxu0
      %v4341 = vpop.f32.mrf.mxu0
      %4342 = vmatprep.mubr.f32.mxu0 0.0
      %4343 = vmatmul.mubr.f32.gmra.mxu0 %v3996
      %v4344 = vpop.f32.mrf.mxu0
      %v4345 = vadd.f32 0.0, %v4344
      %v4346 = vpop.f32.mrf.mxu0
      %4347 = vmatprep.mubr.f32.mxu0 0.0
      %4348 = vmatmul.mubr.f32.gmra.mxu0 %v3999
      %v4349 = vpop.f32.mrf.mxu0
      %v4350 = vadd.f32 0.0, %v4349
      %v4351 = vpop.f32.mrf.mxu0
      %4352 = vmatprep.mubr.f32.mxu0 0.0
      %4353 = vmatmul.mubr.f32.gmra.mxu0 %v4002
      %v4354 = vpop.f32.mrf.mxu0
      %v4355 = vadd.f32 0.0, %v4354
      %v4356 = vpop.f32.mrf.mxu0
      %4357 = vmatprep.mubr.f32.mxu0 0.0
      %4358 = vmatmul.mubr.f32.gmra.mxu0 %v4005
      %v4359 = vpop.f32.mrf.mxu0
      %v4360 = vpop.f32.mrf.mxu0
      %4361 = vmatprep.mubr.f32.mxu0 0.0
      %4362 = vmatmul.mubr.f32.gmra.mxu0 %v4008
      %v4363 = vpop.f32.mrf.mxu0
      %v4364 = vadd.f32 0.0, %v4363
      %v4365 = vpop.f32.mrf.mxu0
      %4366 = vmatprep.mubr.f32.mxu0 0.0
      %4367 = vmatmul.mubr.f32.gmra.mxu0 %v4011
      %v4368 = vpop.f32.mrf.mxu0
      %v4369 = vadd.f32 0.0, %v4368
      %v4370 = vpop.f32.mrf.mxu0
      %4371 = vmatprep.mubr.f32.mxu0 0.0
      %4372 = vmatmul.mubr.f32.gmra.mxu0 %v4014
      %v4373 = vpop.f32.mrf.mxu0
      %v4374 = vadd.f32 0.0, %v4373
      %v4375 = vpop.f32.mrf.mxu0
      %4376 = vmatprep.mubr.f32.mxu0 0.0
      %4377 = vmatmul.mubr.f32.gmra.mxu0 %v4017
      %v4378 = vpop.f32.mrf.mxu0
      %v4379 = vpop.f32.mrf.mxu0
      %4380 = vmatprep.mubr.f32.mxu0 0.0
      %4381 = vmatmul.mubr.f32.gmra.mxu0 %v4020
      %v4382 = vpop.f32.mrf.mxu0
      %v4383 = vadd.f32 0.0, %v4382
      %v4384 = vpop.f32.mrf.mxu0
      %4385 = vmatprep.mubr.f32.mxu0 0.0
      %4386 = vmatmul.mubr.f32.gmra.mxu0 %v4023
      %v4387 = vpop.f32.mrf.mxu0
      %v4388 = vadd.f32 0.0, %v4387
      %v4389 = vpop.f32.mrf.mxu0
      %4390 = vmatprep.mubr.f32.mxu0 0.0
      %4391 = vmatmul.mubr.f32.gmra.mxu0 %v4026
      %v4392 = vpop.f32.mrf.mxu0
      %v4393 = vadd.f32 0.0, %v4392
      %v4394 = vpop.f32.mrf.mxu0
      %4395 = vmatprep.mubr.f32.mxu0 0.0
      %4396 = vmatmul.mubr.f32.gmra.mxu0 %v4029
      %v4397 = vpop.f32.mrf.mxu0
      %v4398 = vpop.f32.mrf.mxu0
      %4399 = vmatprep.mubr.f32.mxu0 0.0
      %4400 = vmatmul.mubr.f32.gmra.mxu0 %v4032
      %v4401 = vpop.f32.mrf.mxu0
      %v4402 = vadd.f32 0.0, %v4401
      %v4403 = vpop.f32.mrf.mxu0
      %4404 = vmatprep.mubr.f32.mxu0 0.0
      %4405 = vmatmul.mubr.f32.gmra.mxu0 %v4035
      %v4406 = vpop.f32.mrf.mxu0
      %v4407 = vadd.f32 0.0, %v4406
      %v4408 = vpop.f32.mrf.mxu0
      %4409 = vmatprep.mubr.f32.mxu0 0.0
      %4410 = vmatmul.mubr.f32.gmra.mxu0 %v4038
      %v4411 = vpop.f32.mrf.mxu0
      %v4412 = vadd.f32 0.0, %v4411
      %v4413 = vpop.f32.mrf.mxu0
      %4414 = vmatprep.mubr.f32.mxu0 0.0
      %4415 = vmatmul.mubr.f32.gmra.mxu0 %v4041
      %v4416 = vpop.f32.mrf.mxu0
      %v4417 = vpop.f32.mrf.mxu0
      %4418 = vmatprep.mubr.f32.mxu0 0.0
      %4419 = vmatmul.mubr.f32.gmra.mxu0 %v4044
      %v4420 = vpop.f32.mrf.mxu0
      %v4421 = vadd.f32 0.0, %v4420
      %v4422 = vpop.f32.mrf.mxu0
      %4423 = vmatprep.mubr.f32.mxu0 0.0
      %4424 = vmatmul.mubr.f32.gmra.mxu0 %v4047
      %v4425 = vpop.f32.mrf.mxu0
      %v4426 = vadd.f32 0.0, %v4425
      %v4427 = vpop.f32.mrf.mxu0
      %4428 = vmatprep.mubr.f32.mxu0 0.0
      %4429 = vmatmul.mubr.f32.gmra.mxu0 %v4050
      %v4430 = vpop.f32.mrf.mxu0
      %v4431 = vadd.f32 0.0, %v4430
      %v4432 = vpop.f32.mrf.mxu0
      %4433 = vmatprep.mubr.f32.mxu0 0.0
      %4434 = vmatmul.mubr.f32.gmra.mxu0 %v4053
      %v4435 = vpop.f32.mrf.mxu0
      %v4436 = vpop.f32.mrf.mxu0
      %4437 = vmatprep.mubr.f32.mxu0 0.0
      %4438 = vmatmul.mubr.f32.gmra.mxu0 %v4056
      %v4439 = vpop.f32.mrf.mxu0
      %v4440 = vadd.f32 0.0, %v4439
      %v4441 = vpop.f32.mrf.mxu0
      %4442 = vmatprep.mubr.f32.mxu0 0.0
      %4443 = vmatmul.mubr.f32.gmra.mxu0 %v4059
      %v4444 = vpop.f32.mrf.mxu0
      %v4445 = vadd.f32 0.0, %v4444
      %v4446 = vpop.f32.mrf.mxu0
      %4447 = vmatprep.mubr.f32.mxu0 0.0
      %4448 = vmatmul.mubr.f32.gmra.mxu0 %v4062
      %v4449 = vpop.f32.mrf.mxu0
      %v4450 = vadd.f32 0.0, %v4449
      %v4451 = vpop.f32.mrf.mxu0
      %4452 = vmatprep.mubr.f32.mxu0 0.0
      %4453 = vmatmul.mubr.f32.gmra.mxu0 %v4065
      %v4454 = vpop.f32.mrf.mxu0
      %v4455 = vpop.f32.mrf.mxu0
      %4456 = vmatprep.mubr.f32.mxu0 0.0
      %4457 = vmatmul.mubr.f32.gmra.mxu0 %v4068
      %v4458 = vpop.f32.mrf.mxu0
      %v4459 = vadd.f32 0.0, %v4458
      %v4460 = vpop.f32.mrf.mxu0
      %4461 = vmatprep.mubr.f32.mxu0 0.0
      %4462 = vmatmul.mubr.f32.gmra.mxu0 %v4071
      %v4463 = vpop.f32.mrf.mxu0
      %v4464 = vadd.f32 0.0, %v4463
      %v4465 = vpop.f32.mrf.mxu0
      %4466 = vmatprep.mubr.f32.mxu0 0.0
      %4467 = vmatmul.mubr.f32.gmra.mxu0 %v4074
      %v4468 = vpop.f32.mrf.mxu0
      %v4469 = vadd.f32 0.0, %v4468
      %v4470 = vpop.f32.mrf.mxu0
      %4471 = vmatprep.mubr.f32.mxu0 0.0
      %4472 = vmatmul.mubr.f32.gmra.mxu0 %v4077
      %v4473 = vpop.f32.mrf.mxu0
      %v4474 = vpop.f32.mrf.mxu0
      %4475 = vmatprep.mubr.f32.mxu0 0.0
      %4476 = vmatmul.mubr.f32.gmra.mxu0 %v4080
      %v4477 = vpop.f32.mrf.mxu0
      %v4478 = vadd.f32 0.0, %v4477
      %v4479 = vpop.f32.mrf.mxu0
      %4480 = vmatprep.mubr.f32.mxu0 0.0
      %4481 = vmatmul.mubr.f32.gmra.mxu0 %v4083
      %v4482 = vpop.f32.mrf.mxu0
      %v4483 = vadd.f32 0.0, %v4482
      %v4484 = vpop.f32.mrf.mxu0
      %4485 = vmatprep.mubr.f32.mxu0 0.0
      %4486 = vmatmul.mubr.f32.gmra.mxu0 %v4086
      %v4487 = vpop.f32.mrf.mxu0
      %v4488 = vadd.f32 0.0, %v4487
      %v4489 = vpop.f32.mrf.mxu0
      %4490 = vmatprep.mubr.f32.mxu0 0.0
      %4491 = vmatmul.mubr.f32.gmra.mxu0 %v4089
      %v4492 = vpop.f32.mrf.mxu0
      %v4493 = vpop.f32.mrf.mxu0
      %4494 = vmatprep.mubr.f32.mxu0 0.0
      %4495 = vmatmul.mubr.f32.gmra.mxu0 %v4092
      %v4496 = vpop.f32.mrf.mxu0
      %v4497 = vadd.f32 0.0, %v4496
      %v4498 = vpop.f32.mrf.mxu0
      %4499 = vmatprep.mubr.f32.mxu0 0.0
      %4500 = vmatmul.mubr.f32.gmra.mxu0 %v4095
      %v4501 = vpop.f32.mrf.mxu0
      %v4502 = vadd.f32 0.0, %v4501
      %v4503 = vpop.f32.mrf.mxu0
      %4504 = vmatprep.mubr.f32.mxu0 0.0
      %4505 = vmatmul.mubr.f32.gmra.mxu0 %v4098
      %v4506 = vpop.f32.mrf.mxu0
      %v4507 = vadd.f32 0.0, %v4506
      %v4508 = vpop.f32.mrf.mxu0
      %4509 = vmatprep.mubr.f32.mxu0 0.0
      %4510 = vmatmul.mubr.f32.gmra.mxu0 %v4101
      %v4511 = vpop.f32.mrf.mxu0
      %v4512 = vpop.f32.mrf.mxu0
      %4513 = vdwg.mxu0
      %v4514 = vld [vmem:[%s2] sm:$0x1]
      %v4516 = vlaneseq
      %v4517 = vshrl.u32 %v4516, 7
      %v4518 = vsub.s32 0, %v4517
      %v4519 = vrot.slane %v4514, %v4518
      %v4521 = vadd.f32 %v4174, %v4519
      %v4522 = vadd.f32 %v4179, %v4519
      %v4523 = vadd.f32 %v4184, %v4519
      %v4524 = vadd.f32 %v4193, %v4519
      %v4525 = vadd.f32 %v4198, %v4519
      %v4526 = vadd.f32 %v4203, %v4519
      %v4527 = vadd.f32 %v4212, %v4519
      %v4528 = vadd.f32 %v4217, %v4519
      %v4529 = vadd.f32 %v4222, %v4519
      %v4530 = vadd.f32 %v4231, %v4519
      %v4531 = vadd.f32 %v4236, %v4519
      %v4532 = vadd.f32 %v4241, %v4519
      %v4533 = vadd.f32 %v4250, %v4519
      %v4534 = vadd.f32 %v4255, %v4519
      %v4535 = vadd.f32 %v4260, %v4519
      %v4536 = vadd.f32 %v4269, %v4519
      %v4537 = vadd.f32 %v4274, %v4519
      %v4538 = vadd.f32 %v4279, %v4519
      %v4539 = vadd.f32 %v4288, %v4519
      %v4540 = vadd.f32 %v4293, %v4519
      %v4541 = vadd.f32 %v4298, %v4519
      %v4542 = vadd.f32 %v4307, %v4519
      %v4543 = vadd.f32 %v4312, %v4519
      %v4544 = vadd.f32 %v4317, %v4519
      %v4545 = vadd.f32 %v4326, %v4519
      %v4546 = vadd.f32 %v4331, %v4519
      %v4547 = vadd.f32 %v4336, %v4519
      %v4548 = vadd.f32 %v4345, %v4519
      %v4549 = vadd.f32 %v4350, %v4519
      %v4550 = vadd.f32 %v4355, %v4519
      %v4551 = vadd.f32 %v4364, %v4519
      %v4552 = vadd.f32 %v4369, %v4519
      %v4553 = vadd.f32 %v4374, %v4519
      %v4554 = vadd.f32 %v4383, %v4519
      %v4555 = vadd.f32 %v4388, %v4519
      %v4556 = vadd.f32 %v4393, %v4519
      %v4557 = vadd.f32 %v4402, %v4519
      %v4558 = vadd.f32 %v4407, %v4519
      %v4559 = vadd.f32 %v4412, %v4519
      %v4560 = vadd.f32 %v4421, %v4519
      %v4561 = vadd.f32 %v4426, %v4519
      %v4562 = vadd.f32 %v4431, %v4519
      %v4563 = vadd.f32 %v4440, %v4519
      %v4564 = vadd.f32 %v4445, %v4519
      %v4565 = vadd.f32 %v4450, %v4519
      %v4566 = vadd.f32 %v4459, %v4519
      %v4567 = vadd.f32 %v4464, %v4519
      %v4568 = vadd.f32 %v4469, %v4519
      %v4569 = vadd.f32 %v4478, %v4519
      %v4570 = vadd.f32 %v4483, %v4519
      %v4571 = vadd.f32 %v4488, %v4519
      %v4572 = vadd.f32 %v4497, %v4519
      %v4573 = vadd.f32 %v4502, %v4519
      %v4574 = vadd.f32 %v4507, %v4519
      %v4575 = vlaneseq
      %v4576 = vshrl.u32 %v4575, 7
      %v4577 = vadd.s32 %v4576, 8
      %v4578 = vadd.s32 %v4576, 16
      %vm4579 = vcmp.ge.s32.totalorder %v4576, 1
      %vm4580 = vcmp.ge.s32.totalorder %v4577, 1
      %vm4581 = vcmp.ge.s32.totalorder %v4578, 1
      %vm4582 = vmand 0, %vm4579
      %vm4583 = vmand 0, %vm4580
      %vm4584 = vmand 0, %vm4581
      %vm4585 = vmand 1, %vm4579
      %vm4586 = vmand 1, %vm4580
      %vm4587 = vmand 1, %vm4581
      %vm4588 = vcmp.lt.s32.totalorder %v4576, 17
      %vm4589 = vcmp.lt.s32.totalorder %v4577, 17
      %vm4590 = vcmp.lt.s32.totalorder %v4578, 17
      %vm4591 = vmand %vm4582, %vm4588
      %vm4592 = vmand %vm4583, %vm4589
      %vm4593 = vmand %vm4584, %vm4590
      %vm4594 = vmand %vm4585, %vm4588
      %vm4595 = vmand %vm4586, %vm4589
      %vm4596 = vmand %vm4587, %vm4590
      %v4597 = vsel %vm4591, %v4521, 0.0
      %v4598 = vsel %vm4592, %v4522, 0.0
      %v4599 = vsel %vm4593, %v4523, 0.0
      %v4600 = vsel %vm4594, %v4524, 0.0
      %v4601 = vsel %vm4595, %v4525, 0.0
      %v4602 = vsel %vm4596, %v4526, 0.0
      %v4603 = vsel %vm4594, %v4527, 0.0
      %v4604 = vsel %vm4595, %v4528, 0.0
      %v4605 = vsel %vm4596, %v4529, 0.0
      %v4606 = vsel %vm4594, %v4530, 0.0
      %v4607 = vsel %vm4595, %v4531, 0.0
      %v4608 = vsel %vm4596, %v4532, 0.0
      %v4609 = vsel %vm4594, %v4533, 0.0
      %v4610 = vsel %vm4595, %v4534, 0.0
      %v4611 = vsel %vm4596, %v4535, 0.0
      %v4612 = vsel %vm4594, %v4536, 0.0
      %v4613 = vsel %vm4595, %v4537, 0.0
      %v4614 = vsel %vm4596, %v4538, 0.0
      %v4615 = vsel %vm4594, %v4539, 0.0
      %v4616 = vsel %vm4595, %v4540, 0.0
      %v4617 = vsel %vm4596, %v4541, 0.0
      %v4618 = vsel %vm4594, %v4542, 0.0
      %v4619 = vsel %vm4595, %v4543, 0.0
      %v4620 = vsel %vm4596, %v4544, 0.0
      %v4621 = vsel %vm4594, %v4545, 0.0
      %v4622 = vsel %vm4595, %v4546, 0.0
      %v4623 = vsel %vm4596, %v4547, 0.0
      %v4624 = vsel %vm4594, %v4548, 0.0
      %v4625 = vsel %vm4595, %v4549, 0.0
      %v4626 = vsel %vm4596, %v4550, 0.0
      %v4627 = vsel %vm4594, %v4551, 0.0
      %v4628 = vsel %vm4595, %v4552, 0.0
      %v4629 = vsel %vm4596, %v4553, 0.0
      %v4630 = vsel %vm4594, %v4554, 0.0
      %v4631 = vsel %vm4595, %v4555, 0.0
      %v4632 = vsel %vm4596, %v4556, 0.0
      %v4633 = vsel %vm4594, %v4557, 0.0
      %v4634 = vsel %vm4595, %v4558, 0.0
      %v4635 = vsel %vm4596, %v4559, 0.0
      %v4636 = vsel %vm4594, %v4560, 0.0
      %v4637 = vsel %vm4595, %v4561, 0.0
      %v4638 = vsel %vm4596, %v4562, 0.0
      %v4639 = vsel %vm4594, %v4563, 0.0
      %v4640 = vsel %vm4595, %v4564, 0.0
      %v4641 = vsel %vm4596, %v4565, 0.0
      %v4642 = vsel %vm4594, %v4566, 0.0
      %v4643 = vsel %vm4595, %v4567, 0.0
      %v4644 = vsel %vm4596, %v4568, 0.0
      %v4645 = vsel %vm4594, %v4569, 0.0
      %v4646 = vsel %vm4595, %v4570, 0.0
      %v4647 = vsel %vm4596, %v4571, 0.0
      %v4648 = vsel %vm4591, %v4572, 0.0
      %v4649 = vsel %vm4592, %v4573, 0.0
      %v4650 = vsel %vm4593, %v4574, 0.0
      %v4651 = vld [vmem:[%s3] sm:$0x1]
      %v4653 = vlaneseq
      %v4654 = vshrl.u32 %v4653, 7
      %v4655 = vsub.s32 0, %v4654
      %v4656 = vrot.slane %v4651, %v4655
      %v4658 = vmul.f32 %v4597, %v4656
      %v4659 = vmul.f32 %v4598, %v4656
      %v4660 = vmul.f32 %v4600, %v4656
      %v4661 = vmul.f32 %v4601, %v4656
      %v4662 = vmul.f32 %v4603, %v4656
      %v4663 = vmul.f32 %v4604, %v4656
      %v4664 = vmul.f32 %v4606, %v4656
      %v4665 = vmul.f32 %v4607, %v4656
      %v4666 = vmul.f32 %v4609, %v4656
      %v4667 = vmul.f32 %v4610, %v4656
      %v4668 = vmul.f32 %v4612, %v4656
      %v4669 = vmul.f32 %v4613, %v4656
      %v4670 = vmul.f32 %v4615, %v4656
      %v4671 = vmul.f32 %v4616, %v4656
      %v4672 = vmul.f32 %v4618, %v4656
      %v4673 = vmul.f32 %v4619, %v4656
      %v4674 = vmul.f32 %v4621, %v4656
      %v4675 = vmul.f32 %v4622, %v4656
      %v4676 = vmul.f32 %v4624, %v4656
      %v4677 = vmul.f32 %v4625, %v4656
      %v4678 = vmul.f32 %v4627, %v4656
      %v4679 = vmul.f32 %v4628, %v4656
      %v4680 = vmul.f32 %v4630, %v4656
      %v4681 = vmul.f32 %v4631, %v4656
      %v4682 = vmul.f32 %v4633, %v4656
      %v4683 = vmul.f32 %v4634, %v4656
      %v4684 = vmul.f32 %v4636, %v4656
      %v4685 = vmul.f32 %v4637, %v4656
      %v4686 = vmul.f32 %v4639, %v4656
      %v4687 = vmul.f32 %v4640, %v4656
      %v4688 = vmul.f32 %v4642, %v4656
      %v4689 = vmul.f32 %v4643, %v4656
      %s4690 = scalar_lea.vmem %s3, 1
      %v4691 = vld [vmem:[%s4690] sm:$0x1]
      %v4693 = vlaneseq
      %v4694 = vshrl.u32 %v4693, 7
      %v4695 = vsub.s32 0, %v4694
      %v4696 = vrot.slane %v4691, %v4695
      %v4698 = vmul.f32 %v4597, %v4696
      %v4699 = vmul.f32 %v4598, %v4696
      %v4700 = vmul.f32 %v4599, %v4696
      %v4701 = vmul.f32 %v4600, %v4696
      %v4702 = vmul.f32 %v4601, %v4696
      %v4703 = vmul.f32 %v4602, %v4696
      %v4704 = vmul.f32 %v4603, %v4696
      %v4705 = vmul.f32 %v4604, %v4696
      %v4706 = vmul.f32 %v4605, %v4696
      %v4707 = vmul.f32 %v4606, %v4696
      %v4708 = vmul.f32 %v4607, %v4696
      %v4709 = vmul.f32 %v4608, %v4696
      %v4710 = vmul.f32 %v4609, %v4696
      %v4711 = vmul.f32 %v4610, %v4696
      %v4712 = vmul.f32 %v4611, %v4696
      %v4713 = vmul.f32 %v4612, %v4696
      %v4714 = vmul.f32 %v4613, %v4696
      %v4715 = vmul.f32 %v4614, %v4696
      %v4716 = vmul.f32 %v4615, %v4696
      %v4717 = vmul.f32 %v4616, %v4696
      %v4718 = vmul.f32 %v4617, %v4696
      %v4719 = vmul.f32 %v4618, %v4696
      %v4720 = vmul.f32 %v4619, %v4696
      %v4721 = vmul.f32 %v4620, %v4696
      %v4722 = vmul.f32 %v4621, %v4696
      %v4723 = vmul.f32 %v4622, %v4696
      %v4724 = vmul.f32 %v4623, %v4696
      %v4725 = vmul.f32 %v4624, %v4696
      %v4726 = vmul.f32 %v4625, %v4696
      %v4727 = vmul.f32 %v4626, %v4696
      %v4728 = vmul.f32 %v4627, %v4696
      %v4729 = vmul.f32 %v4628, %v4696
      %v4730 = vmul.f32 %v4629, %v4696
      %v4731 = vmul.f32 %v4630, %v4696
      %v4732 = vmul.f32 %v4631, %v4696
      %v4733 = vmul.f32 %v4632, %v4696
      %v4734 = vmul.f32 %v4633, %v4696
      %v4735 = vmul.f32 %v4634, %v4696
      %v4736 = vmul.f32 %v4635, %v4696
      %v4737 = vmul.f32 %v4636, %v4696
      %v4738 = vmul.f32 %v4637, %v4696
      %v4739 = vmul.f32 %v4638, %v4696
      %v4740 = vmul.f32 %v4639, %v4696
      %v4741 = vmul.f32 %v4640, %v4696
      %v4742 = vmul.f32 %v4641, %v4696
      %v4743 = vmul.f32 %v4642, %v4696
      %v4744 = vmul.f32 %v4643, %v4696
      %v4745 = vmul.f32 %v4644, %v4696
      %vm4794 = vcmask 1046528
      %v4795 = vrot.slane %v4698, 1
      %v4796 = vrot.slane %v4699, 1
      %v4797 = vsel %vm4794, %v4795, %v4796
      %v4798 = vrot.slane %v4700, 1
      %v4799 = vsel %vm4794, %v4796, %v4798
      %v4800 = vrot.slane %v4701, 1
      %v4801 = vrot.slane %v4702, 1
      %v4802 = vsel %vm4794, %v4800, %v4801
      %v4803 = vrot.slane %v4703, 1
      %v4804 = vsel %vm4794, %v4801, %v4803
      %v4805 = vrot.slane %v4704, 1
      %v4806 = vrot.slane %v4705, 1
      %v4807 = vsel %vm4794, %v4805, %v4806
      %v4808 = vrot.slane %v4706, 1
      %v4809 = vsel %vm4794, %v4806, %v4808
      %v4810 = vrot.slane %v4707, 1
      %v4811 = vrot.slane %v4708, 1
      %v4812 = vsel %vm4794, %v4810, %v4811
      %v4813 = vrot.slane %v4709, 1
      %v4814 = vsel %vm4794, %v4811, %v4813
      %v4815 = vrot.slane %v4710, 1
      %v4816 = vrot.slane %v4711, 1
      %v4817 = vsel %vm4794, %v4815, %v4816
      %v4818 = vrot.slane %v4712, 1
      %v4819 = vsel %vm4794, %v4816, %v4818
      %v4820 = vrot.slane %v4713, 1
      %v4821 = vrot.slane %v4714, 1
      %v4822 = vsel %vm4794, %v4820, %v4821
      %v4823 = vrot.slane %v4715, 1
      %v4824 = vsel %vm4794, %v4821, %v4823
      %v4825 = vrot.slane %v4716, 1
      %v4826 = vrot.slane %v4717, 1
      %v4827 = vsel %vm4794, %v4825, %v4826
      %v4828 = vrot.slane %v4718, 1
      %v4829 = vsel %vm4794, %v4826, %v4828
      %v4830 = vrot.slane %v4719, 1
      %v4831 = vrot.slane %v4720, 1
      %v4832 = vsel %vm4794, %v4830, %v4831
      %v4833 = vrot.slane %v4721, 1
      %v4834 = vsel %vm4794, %v4831, %v4833
      %v4835 = vrot.slane %v4722, 1
      %v4836 = vrot.slane %v4723, 1
      %v4837 = vsel %vm4794, %v4835, %v4836
      %v4838 = vrot.slane %v4724, 1
      %v4839 = vsel %vm4794, %v4836, %v4838
      %v4840 = vrot.slane %v4725, 1
      %v4841 = vrot.slane %v4726, 1
      %v4842 = vsel %vm4794, %v4840, %v4841
      %v4843 = vrot.slane %v4727, 1
      %v4844 = vsel %vm4794, %v4841, %v4843
      %v4845 = vrot.slane %v4728, 1
      %v4846 = vrot.slane %v4729, 1
      %v4847 = vsel %vm4794, %v4845, %v4846
      %v4848 = vrot.slane %v4730, 1
      %v4849 = vsel %vm4794, %v4846, %v4848
      %v4850 = vrot.slane %v4731, 1
      %v4851 = vrot.slane %v4732, 1
      %v4852 = vsel %vm4794, %v4850, %v4851
      %v4853 = vrot.slane %v4733, 1
      %v4854 = vsel %vm4794, %v4851, %v4853
      %v4855 = vrot.slane %v4734, 1
      %v4856 = vrot.slane %v4735, 1
      %v4857 = vsel %vm4794, %v4855, %v4856
      %v4858 = vrot.slane %v4736, 1
      %v4859 = vsel %vm4794, %v4856, %v4858
      %v4860 = vrot.slane %v4737, 1
      %v4861 = vrot.slane %v4738, 1
      %v4862 = vsel %vm4794, %v4860, %v4861
      %v4863 = vrot.slane %v4739, 1
      %v4864 = vsel %vm4794, %v4861, %v4863
      %v4865 = vrot.slane %v4740, 1
      %v4866 = vrot.slane %v4741, 1
      %v4867 = vsel %vm4794, %v4865, %v4866
      %v4868 = vrot.slane %v4742, 1
      %v4869 = vsel %vm4794, %v4866, %v4868
      %v4870 = vrot.slane %v4743, 1
      %v4871 = vrot.slane %v4744, 1
      %v4872 = vsel %vm4794, %v4870, %v4871
      %v4873 = vrot.slane %v4745, 1
      %v4874 = vsel %vm4794, %v4871, %v4873
      %v4907 = vadd.f32 %v4658, %v4797
      %v4908 = vadd.f32 %v4659, %v4799
      %v4909 = vadd.f32 %v4660, %v4802
      %v4910 = vadd.f32 %v4661, %v4804
      %v4911 = vadd.f32 %v4662, %v4807
      %v4912 = vadd.f32 %v4663, %v4809
      %v4913 = vadd.f32 %v4664, %v4812
      %v4914 = vadd.f32 %v4665, %v4814
      %v4915 = vadd.f32 %v4666, %v4817
      %v4916 = vadd.f32 %v4667, %v4819
      %v4917 = vadd.f32 %v4668, %v4822
      %v4918 = vadd.f32 %v4669, %v4824
      %v4919 = vadd.f32 %v4670, %v4827
      %v4920 = vadd.f32 %v4671, %v4829
      %v4921 = vadd.f32 %v4672, %v4832
      %v4922 = vadd.f32 %v4673, %v4834
      %v4923 = vadd.f32 %v4674, %v4837
      %v4924 = vadd.f32 %v4675, %v4839
      %v4925 = vadd.f32 %v4676, %v4842
      %v4926 = vadd.f32 %v4677, %v4844
      %v4927 = vadd.f32 %v4678, %v4847
      %v4928 = vadd.f32 %v4679, %v4849
      %v4929 = vadd.f32 %v4680, %v4852
      %v4930 = vadd.f32 %v4681, %v4854
      %v4931 = vadd.f32 %v4682, %v4857
      %v4932 = vadd.f32 %v4683, %v4859
      %v4933 = vadd.f32 %v4684, %v4862
      %v4934 = vadd.f32 %v4685, %v4864
      %v4935 = vadd.f32 %v4686, %v4867
      %v4936 = vadd.f32 %v4687, %v4869
      %v4937 = vadd.f32 %v4688, %v4872
      %v4938 = vadd.f32 %v4689, %v4874
      %s4939 = scalar_lea.vmem %s3, 2
      %v4940 = vld [vmem:[%s4939] sm:$0x1]
      %v4942 = vlaneseq
      %v4943 = vshrl.u32 %v4942, 7
      %v4944 = vsub.s32 0, %v4943
      %v4945 = vrot.slane %v4940, %v4944
      %v4947 = vmul.f32 %v4597, %v4945
      %v4948 = vmul.f32 %v4598, %v4945
      %v4949 = vmul.f32 %v4599, %v4945
      %v4950 = vmul.f32 %v4600, %v4945
      %v4951 = vmul.f32 %v4601, %v4945
      %v4952 = vmul.f32 %v4602, %v4945
      %v4953 = vmul.f32 %v4603, %v4945
      %v4954 = vmul.f32 %v4604, %v4945
      %v4955 = vmul.f32 %v4605, %v4945
      %v4956 = vmul.f32 %v4606, %v4945
      %v4957 = vmul.f32 %v4607, %v4945
      %v4958 = vmul.f32 %v4608, %v4945
      %v4959 = vmul.f32 %v4609, %v4945
      %v4960 = vmul.f32 %v4610, %v4945
      %v4961 = vmul.f32 %v4611, %v4945
      %v4962 = vmul.f32 %v4612, %v4945
      %v4963 = vmul.f32 %v4613, %v4945
      %v4964 = vmul.f32 %v4614, %v4945
      %v4965 = vmul.f32 %v4615, %v4945
      %v4966 = vmul.f32 %v4616, %v4945
      %v4967 = vmul.f32 %v4617, %v4945
      %v4968 = vmul.f32 %v4618, %v4945
      %v4969 = vmul.f32 %v4619, %v4945
      %v4970 = vmul.f32 %v4620, %v4945
      %v4971 = vmul.f32 %v4621, %v4945
      %v4972 = vmul.f32 %v4622, %v4945
      %v4973 = vmul.f32 %v4623, %v4945
      %v4974 = vmul.f32 %v4624, %v4945
      %v4975 = vmul.f32 %v4625, %v4945
      %v4976 = vmul.f32 %v4626, %v4945
      %v4977 = vmul.f32 %v4627, %v4945
      %v4978 = vmul.f32 %v4628, %v4945
      %v4979 = vmul.f32 %v4629, %v4945
      %v4980 = vmul.f32 %v4630, %v4945
      %v4981 = vmul.f32 %v4631, %v4945
      %v4982 = vmul.f32 %v4632, %v4945
      %v4983 = vmul.f32 %v4633, %v4945
      %v4984 = vmul.f32 %v4634, %v4945
      %v4985 = vmul.f32 %v4635, %v4945
      %v4986 = vmul.f32 %v4636, %v4945
      %v4987 = vmul.f32 %v4637, %v4945
      %v4988 = vmul.f32 %v4638, %v4945
      %v4989 = vmul.f32 %v4639, %v4945
      %v4990 = vmul.f32 %v4640, %v4945
      %v4991 = vmul.f32 %v4641, %v4945
      %v4992 = vmul.f32 %v4642, %v4945
      %v4993 = vmul.f32 %v4643, %v4945
      %v4994 = vmul.f32 %v4644, %v4945
      %vm5043 = vcmask 1045504
      %v5044 = vrot.slane %v4947, 2
      %v5045 = vrot.slane %v4948, 2
      %v5046 = vsel %vm5043, %v5044, %v5045
      %v5047 = vrot.slane %v4949, 2
      %v5048 = vsel %vm5043, %v5045, %v5047
      %v5049 = vrot.slane %v4950, 2
      %v5050 = vrot.slane %v4951, 2
      %v5051 = vsel %vm5043, %v5049, %v5050
      %v5052 = vrot.slane %v4952, 2
      %v5053 = vsel %vm5043, %v5050, %v5052
      %v5054 = vrot.slane %v4953, 2
      %v5055 = vrot.slane %v4954, 2
      %v5056 = vsel %vm5043, %v5054, %v5055
      %v5057 = vrot.slane %v4955, 2
      %v5058 = vsel %vm5043, %v5055, %v5057
      %v5059 = vrot.slane %v4956, 2
      %v5060 = vrot.slane %v4957, 2
      %v5061 = vsel %vm5043, %v5059, %v5060
      %v5062 = vrot.slane %v4958, 2
      %v5063 = vsel %vm5043, %v5060, %v5062
      %v5064 = vrot.slane %v4959, 2
      %v5065 = vrot.slane %v4960, 2
      %v5066 = vsel %vm5043, %v5064, %v5065
      %v5067 = vrot.slane %v4961, 2
      %v5068 = vsel %vm5043, %v5065, %v5067
      %v5069 = vrot.slane %v4962, 2
      %v5070 = vrot.slane %v4963, 2
      %v5071 = vsel %vm5043, %v5069, %v5070
      %v5072 = vrot.slane %v4964, 2
      %v5073 = vsel %vm5043, %v5070, %v5072
      %v5074 = vrot.slane %v4965, 2
      %v5075 = vrot.slane %v4966, 2
      %v5076 = vsel %vm5043, %v5074, %v5075
      %v5077 = vrot.slane %v4967, 2
      %v5078 = vsel %vm5043, %v5075, %v5077
      %v5079 = vrot.slane %v4968, 2
      %v5080 = vrot.slane %v4969, 2
      %v5081 = vsel %vm5043, %v5079, %v5080
      %v5082 = vrot.slane %v4970, 2
      %v5083 = vsel %vm5043, %v5080, %v5082
      %v5084 = vrot.slane %v4971, 2
      %v5085 = vrot.slane %v4972, 2
      %v5086 = vsel %vm5043, %v5084, %v5085
      %v5087 = vrot.slane %v4973, 2
      %v5088 = vsel %vm5043, %v5085, %v5087
      %v5089 = vrot.slane %v4974, 2
      %v5090 = vrot.slane %v4975, 2
      %v5091 = vsel %vm5043, %v5089, %v5090
      %v5092 = vrot.slane %v4976, 2
      %v5093 = vsel %vm5043, %v5090, %v5092
      %v5094 = vrot.slane %v4977, 2
      %v5095 = vrot.slane %v4978, 2
      %v5096 = vsel %vm5043, %v5094, %v5095
      %v5097 = vrot.slane %v4979, 2
      %v5098 = vsel %vm5043, %v5095, %v5097
      %v5099 = vrot.slane %v4980, 2
      %v5100 = vrot.slane %v4981, 2
      %v5101 = vsel %vm5043, %v5099, %v5100
      %v5102 = vrot.slane %v4982, 2
      %v5103 = vsel %vm5043, %v5100, %v5102
      %v5104 = vrot.slane %v4983, 2
      %v5105 = vrot.slane %v4984, 2
      %v5106 = vsel %vm5043, %v5104, %v5105
      %v5107 = vrot.slane %v4985, 2
      %v5108 = vsel %vm5043, %v5105, %v5107
      %v5109 = vrot.slane %v4986, 2
      %v5110 = vrot.slane %v4987, 2
      %v5111 = vsel %vm5043, %v5109, %v5110
      %v5112 = vrot.slane %v4988, 2
      %v5113 = vsel %vm5043, %v5110, %v5112
      %v5114 = vrot.slane %v4989, 2
      %v5115 = vrot.slane %v4990, 2
      %v5116 = vsel %vm5043, %v5114, %v5115
      %v5117 = vrot.slane %v4991, 2
      %v5118 = vsel %vm5043, %v5115, %v5117
      %v5119 = vrot.slane %v4992, 2
      %v5120 = vrot.slane %v4993, 2
      %v5121 = vsel %vm5043, %v5119, %v5120
      %v5122 = vrot.slane %v4994, 2
      %v5123 = vsel %vm5043, %v5120, %v5122
      %v5156 = vadd.f32 %v4907, %v5046
      %v5157 = vadd.f32 %v4908, %v5048
      %v5158 = vadd.f32 %v4909, %v5051
      %v5159 = vadd.f32 %v4910, %v5053
      %v5160 = vadd.f32 %v4911, %v5056
      %v5161 = vadd.f32 %v4912, %v5058
      %v5162 = vadd.f32 %v4913, %v5061
      %v5163 = vadd.f32 %v4914, %v5063
      %v5164 = vadd.f32 %v4915, %v5066
      %v5165 = vadd.f32 %v4916, %v5068
      %v5166 = vadd.f32 %v4917, %v5071
      %v5167 = vadd.f32 %v4918, %v5073
      %v5168 = vadd.f32 %v4919, %v5076
      %v5169 = vadd.f32 %v4920, %v5078
      %v5170 = vadd.f32 %v4921, %v5081
      %v5171 = vadd.f32 %v4922, %v5083
      %v5172 = vadd.f32 %v4923, %v5086
      %v5173 = vadd.f32 %v4924, %v5088
      %v5174 = vadd.f32 %v4925, %v5091
      %v5175 = vadd.f32 %v4926, %v5093
      %v5176 = vadd.f32 %v4927, %v5096
      %v5177 = vadd.f32 %v4928, %v5098
      %v5178 = vadd.f32 %v4929, %v5101
      %v5179 = vadd.f32 %v4930, %v5103
      %v5180 = vadd.f32 %v4931, %v5106
      %v5181 = vadd.f32 %v4932, %v5108
      %v5182 = vadd.f32 %v4933, %v5111
      %v5183 = vadd.f32 %v4934, %v5113
      %v5184 = vadd.f32 %v4935, %v5116
      %v5185 = vadd.f32 %v4936, %v5118
      %v5186 = vadd.f32 %v4937, %v5121
      %v5187 = vadd.f32 %v4938, %v5123
      %s5188 = scalar_lea.vmem %s3, 3
      %v5189 = vld [vmem:[%s5188] sm:$0x1]
      %v5191 = vlaneseq
      %v5192 = vshrl.u32 %v5191, 7
      %v5193 = vsub.s32 0, %v5192
      %v5194 = vrot.slane %v5189, %v5193
      %v5196 = vmul.f32 %v4600, %v5194
      %v5197 = vmul.f32 %v4601, %v5194
      %v5198 = vmul.f32 %v4603, %v5194
      %v5199 = vmul.f32 %v4604, %v5194
      %v5200 = vmul.f32 %v4606, %v5194
      %v5201 = vmul.f32 %v4607, %v5194
      %v5202 = vmul.f32 %v4609, %v5194
      %v5203 = vmul.f32 %v4610, %v5194
      %v5204 = vmul.f32 %v4612, %v5194
      %v5205 = vmul.f32 %v4613, %v5194
      %v5206 = vmul.f32 %v4615, %v5194
      %v5207 = vmul.f32 %v4616, %v5194
      %v5208 = vmul.f32 %v4618, %v5194
      %v5209 = vmul.f32 %v4619, %v5194
      %v5210 = vmul.f32 %v4621, %v5194
      %v5211 = vmul.f32 %v4622, %v5194
      %v5212 = vmul.f32 %v4624, %v5194
      %v5213 = vmul.f32 %v4625, %v5194
      %v5214 = vmul.f32 %v4627, %v5194
      %v5215 = vmul.f32 %v4628, %v5194
      %v5216 = vmul.f32 %v4630, %v5194
      %v5217 = vmul.f32 %v4631, %v5194
      %v5218 = vmul.f32 %v4633, %v5194
      %v5219 = vmul.f32 %v4634, %v5194
      %v5220 = vmul.f32 %v4636, %v5194
      %v5221 = vmul.f32 %v4637, %v5194
      %v5222 = vmul.f32 %v4639, %v5194
      %v5223 = vmul.f32 %v4640, %v5194
      %v5224 = vmul.f32 %v4642, %v5194
      %v5225 = vmul.f32 %v4643, %v5194
      %v5226 = vmul.f32 %v4645, %v5194
      %v5227 = vmul.f32 %v4646, %v5194
      %v5228 = vadd.f32 %v5156, %v5196
      %v5229 = vadd.f32 %v5157, %v5197
      %v5230 = vadd.f32 %v5158, %v5198
      %v5231 = vadd.f32 %v5159, %v5199
      %v5232 = vadd.f32 %v5160, %v5200
      %v5233 = vadd.f32 %v5161, %v5201
      %v5234 = vadd.f32 %v5162, %v5202
      %v5235 = vadd.f32 %v5163, %v5203
      %v5236 = vadd.f32 %v5164, %v5204
      %v5237 = vadd.f32 %v5165, %v5205
      %v5238 = vadd.f32 %v5166, %v5206
      %v5239 = vadd.f32 %v5167, %v5207
      %v5240 = vadd.f32 %v5168, %v5208
      %v5241 = vadd.f32 %v5169, %v5209
      %v5242 = vadd.f32 %v5170, %v5210
      %v5243 = vadd.f32 %v5171, %v5211
      %v5244 = vadd.f32 %v5172, %v5212
      %v5245 = vadd.f32 %v5173, %v5213
      %v5246 = vadd.f32 %v5174, %v5214
      %v5247 = vadd.f32 %v5175, %v5215
      %v5248 = vadd.f32 %v5176, %v5216
      %v5249 = vadd.f32 %v5177, %v5217
      %v5250 = vadd.f32 %v5178, %v5218
      %v5251 = vadd.f32 %v5179, %v5219
      %v5252 = vadd.f32 %v5180, %v5220
      %v5253 = vadd.f32 %v5181, %v5221
      %v5254 = vadd.f32 %v5182, %v5222
      %v5255 = vadd.f32 %v5183, %v5223
      %v5256 = vadd.f32 %v5184, %v5224
      %v5257 = vadd.f32 %v5185, %v5225
      %v5258 = vadd.f32 %v5186, %v5226
      %v5259 = vadd.f32 %v5187, %v5227
      %s5260 = scalar_lea.vmem %s3, 4
      %v5261 = vld [vmem:[%s5260] sm:$0x1]
      %v5263 = vlaneseq
      %v5264 = vshrl.u32 %v5263, 7
      %v5265 = vsub.s32 0, %v5264
      %v5266 = vrot.slane %v5261, %v5265
      %v5268 = vmul.f32 %v4600, %v5266
      %v5269 = vmul.f32 %v4601, %v5266
      %v5270 = vmul.f32 %v4602, %v5266
      %v5271 = vmul.f32 %v4603, %v5266
      %v5272 = vmul.f32 %v4604, %v5266
      %v5273 = vmul.f32 %v4605, %v5266
      %v5274 = vmul.f32 %v4606, %v5266
      %v5275 = vmul.f32 %v4607, %v5266
      %v5276 = vmul.f32 %v4608, %v5266
      %v5277 = vmul.f32 %v4609, %v5266
      %v5278 = vmul.f32 %v4610, %v5266
      %v5279 = vmul.f32 %v4611, %v5266
      %v5280 = vmul.f32 %v4612, %v5266
      %v5281 = vmul.f32 %v4613, %v5266
      %v5282 = vmul.f32 %v4614, %v5266
      %v5283 = vmul.f32 %v4615, %v5266
      %v5284 = vmul.f32 %v4616, %v5266
      %v5285 = vmul.f32 %v4617, %v5266
      %v5286 = vmul.f32 %v4618, %v5266
      %v5287 = vmul.f32 %v4619, %v5266
      %v5288 = vmul.f32 %v4620, %v5266
      %v5289 = vmul.f32 %v4621, %v5266
      %v5290 = vmul.f32 %v4622, %v5266
      %v5291 = vmul.f32 %v4623, %v5266
      %v5292 = vmul.f32 %v4624, %v5266
      %v5293 = vmul.f32 %v4625, %v5266
      %v5294 = vmul.f32 %v4626, %v5266
      %v5295 = vmul.f32 %v4627, %v5266
      %v5296 = vmul.f32 %v4628, %v5266
      %v5297 = vmul.f32 %v4629, %v5266
      %v5298 = vmul.f32 %v4630, %v5266
      %v5299 = vmul.f32 %v4631, %v5266
      %v5300 = vmul.f32 %v4632, %v5266
      %v5301 = vmul.f32 %v4633, %v5266
      %v5302 = vmul.f32 %v4634, %v5266
      %v5303 = vmul.f32 %v4635, %v5266
      %v5304 = vmul.f32 %v4636, %v5266
      %v5305 = vmul.f32 %v4637, %v5266
      %v5306 = vmul.f32 %v4638, %v5266
      %v5307 = vmul.f32 %v4639, %v5266
      %v5308 = vmul.f32 %v4640, %v5266
      %v5309 = vmul.f32 %v4641, %v5266
      %v5310 = vmul.f32 %v4642, %v5266
      %v5311 = vmul.f32 %v4643, %v5266
      %v5312 = vmul.f32 %v4644, %v5266
      %v5313 = vmul.f32 %v4645, %v5266
      %v5314 = vmul.f32 %v4646, %v5266
      %v5315 = vmul.f32 %v4647, %v5266
      %v5364 = vrot.slane %v5268, 1
      %v5365 = vrot.slane %v5269, 1
      %v5366 = vsel %vm4794, %v5364, %v5365
      %v5367 = vrot.slane %v5270, 1
      %v5368 = vsel %vm4794, %v5365, %v5367
      %v5369 = vrot.slane %v5271, 1
      %v5370 = vrot.slane %v5272, 1
      %v5371 = vsel %vm4794, %v5369, %v5370
      %v5372 = vrot.slane %v5273, 1
      %v5373 = vsel %vm4794, %v5370, %v5372
      %v5374 = vrot.slane %v5274, 1
      %v5375 = vrot.slane %v5275, 1
      %v5376 = vsel %vm4794, %v5374, %v5375
      %v5377 = vrot.slane %v5276, 1
      %v5378 = vsel %vm4794, %v5375, %v5377
      %v5379 = vrot.slane %v5277, 1
      %v5380 = vrot.slane %v5278, 1
      %v5381 = vsel %vm4794, %v5379, %v5380
      %v5382 = vrot.slane %v5279, 1
      %v5383 = vsel %vm4794, %v5380, %v5382
      %v5384 = vrot.slane %v5280, 1
      %v5385 = vrot.slane %v5281, 1
      %v5386 = vsel %vm4794, %v5384, %v5385
      %v5387 = vrot.slane %v5282, 1
      %v5388 = vsel %vm4794, %v5385, %v5387
      %v5389 = vrot.slane %v5283, 1
      %v5390 = vrot.slane %v5284, 1
      %v5391 = vsel %vm4794, %v5389, %v5390
      %v5392 = vrot.slane %v5285, 1
      %v5393 = vsel %vm4794, %v5390, %v5392
      %v5394 = vrot.slane %v5286, 1
      %v5395 = vrot.slane %v5287, 1
      %v5396 = vsel %vm4794, %v5394, %v5395
      %v5397 = vrot.slane %v5288, 1
      %v5398 = vsel %vm4794, %v5395, %v5397
      %v5399 = vrot.slane %v5289, 1
      %v5400 = vrot.slane %v5290, 1
      %v5401 = vsel %vm4794, %v5399, %v5400
      %v5402 = vrot.slane %v5291, 1
      %v5403 = vsel %vm4794, %v5400, %v5402
      %v5404 = vrot.slane %v5292, 1
      %v5405 = vrot.slane %v5293, 1
      %v5406 = vsel %vm4794, %v5404, %v5405
      %v5407 = vrot.slane %v5294, 1
      %v5408 = vsel %vm4794, %v5405, %v5407
      %v5409 = vrot.slane %v5295, 1
      %v5410 = vrot.slane %v5296, 1
      %v5411 = vsel %vm4794, %v5409, %v5410
      %v5412 = vrot.slane %v5297, 1
      %v5413 = vsel %vm4794, %v5410, %v5412
      %v5414 = vrot.slane %v5298, 1
      %v5415 = vrot.slane %v5299, 1
      %v5416 = vsel %vm4794, %v5414, %v5415
      %v5417 = vrot.slane %v5300, 1
      %v5418 = vsel %vm4794, %v5415, %v5417
      %v5419 = vrot.slane %v5301, 1
      %v5420 = vrot.slane %v5302, 1
      %v5421 = vsel %vm4794, %v5419, %v5420
      %v5422 = vrot.slane %v5303, 1
      %v5423 = vsel %vm4794, %v5420, %v5422
      %v5424 = vrot.slane %v5304, 1
      %v5425 = vrot.slane %v5305, 1
      %v5426 = vsel %vm4794, %v5424, %v5425
      %v5427 = vrot.slane %v5306, 1
      %v5428 = vsel %vm4794, %v5425, %v5427
      %v5429 = vrot.slane %v5307, 1
      %v5430 = vrot.slane %v5308, 1
      %v5431 = vsel %vm4794, %v5429, %v5430
      %v5432 = vrot.slane %v5309, 1
      %v5433 = vsel %vm4794, %v5430, %v5432
      %v5434 = vrot.slane %v5310, 1
      %v5435 = vrot.slane %v5311, 1
      %v5436 = vsel %vm4794, %v5434, %v5435
      %v5437 = vrot.slane %v5312, 1
      %v5438 = vsel %vm4794, %v5435, %v5437
      %v5439 = vrot.slane %v5313, 1
      %v5440 = vrot.slane %v5314, 1
      %v5441 = vsel %vm4794, %v5439, %v5440
      %v5442 = vrot.slane %v5315, 1
      %v5443 = vsel %vm4794, %v5440, %v5442
      %v5476 = vadd.f32 %v5228, %v5366
      %v5477 = vadd.f32 %v5229, %v5368
      %v5478 = vadd.f32 %v5230, %v5371
      %v5479 = vadd.f32 %v5231, %v5373
      %v5480 = vadd.f32 %v5232, %v5376
      %v5481 = vadd.f32 %v5233, %v5378
      %v5482 = vadd.f32 %v5234, %v5381
      %v5483 = vadd.f32 %v5235, %v5383
      %v5484 = vadd.f32 %v5236, %v5386
      %v5485 = vadd.f32 %v5237, %v5388
      %v5486 = vadd.f32 %v5238, %v5391
      %v5487 = vadd.f32 %v5239, %v5393
      %v5488 = vadd.f32 %v5240, %v5396
      %v5489 = vadd.f32 %v5241, %v5398
      %v5490 = vadd.f32 %v5242, %v5401
      %v5491 = vadd.f32 %v5243, %v5403
      %v5492 = vadd.f32 %v5244, %v5406
      %v5493 = vadd.f32 %v5245, %v5408
      %v5494 = vadd.f32 %v5246, %v5411
      %v5495 = vadd.f32 %v5247, %v5413
      %v5496 = vadd.f32 %v5248, %v5416
      %v5497 = vadd.f32 %v5249, %v5418
      %v5498 = vadd.f32 %v5250, %v5421
      %v5499 = vadd.f32 %v5251, %v5423
      %v5500 = vadd.f32 %v5252, %v5426
      %v5501 = vadd.f32 %v5253, %v5428
      %v5502 = vadd.f32 %v5254, %v5431
      %v5503 = vadd.f32 %v5255, %v5433
      %v5504 = vadd.f32 %v5256, %v5436
      %v5505 = vadd.f32 %v5257, %v5438
      %v5506 = vadd.f32 %v5258, %v5441
      %v5507 = vadd.f32 %v5259, %v5443
      %s5508 = scalar_lea.vmem %s3, 5
      %v5509 = vld [vmem:[%s5508] sm:$0x1]
      %v5511 = vlaneseq
      %v5512 = vshrl.u32 %v5511, 7
      %v5513 = vsub.s32 0, %v5512
      %v5514 = vrot.slane %v5509, %v5513
      %v5516 = vmul.f32 %v4600, %v5514
      %v5517 = vmul.f32 %v4601, %v5514
      %v5518 = vmul.f32 %v4602, %v5514
      %v5519 = vmul.f32 %v4603, %v5514
      %v5520 = vmul.f32 %v4604, %v5514
      %v5521 = vmul.f32 %v4605, %v5514
      %v5522 = vmul.f32 %v4606, %v5514
      %v5523 = vmul.f32 %v4607, %v5514
      %v5524 = vmul.f32 %v4608, %v5514
      %v5525 = vmul.f32 %v4609, %v5514
      %v5526 = vmul.f32 %v4610, %v5514
      %v5527 = vmul.f32 %v4611, %v5514
      %v5528 = vmul.f32 %v4612, %v5514
      %v5529 = vmul.f32 %v4613, %v5514
      %v5530 = vmul.f32 %v4614, %v5514
      %v5531 = vmul.f32 %v4615, %v5514
      %v5532 = vmul.f32 %v4616, %v5514
      %v5533 = vmul.f32 %v4617, %v5514
      %v5534 = vmul.f32 %v4618, %v5514
      %v5535 = vmul.f32 %v4619, %v5514
      %v5536 = vmul.f32 %v4620, %v5514
      %v5537 = vmul.f32 %v4621, %v5514
      %v5538 = vmul.f32 %v4622, %v5514
      %v5539 = vmul.f32 %v4623, %v5514
      %v5540 = vmul.f32 %v4624, %v5514
      %v5541 = vmul.f32 %v4625, %v5514
      %v5542 = vmul.f32 %v4626, %v5514
      %v5543 = vmul.f32 %v4627, %v5514
      %v5544 = vmul.f32 %v4628, %v5514
      %v5545 = vmul.f32 %v4629, %v5514
      %v5546 = vmul.f32 %v4630, %v5514
      %v5547 = vmul.f32 %v4631, %v5514
      %v5548 = vmul.f32 %v4632, %v5514
      %v5549 = vmul.f32 %v4633, %v5514
      %v5550 = vmul.f32 %v4634, %v5514
      %v5551 = vmul.f32 %v4635, %v5514
      %v5552 = vmul.f32 %v4636, %v5514
      %v5553 = vmul.f32 %v4637, %v5514
      %v5554 = vmul.f32 %v4638, %v5514
      %v5555 = vmul.f32 %v4639, %v5514
      %v5556 = vmul.f32 %v4640, %v5514
      %v5557 = vmul.f32 %v4641, %v5514
      %v5558 = vmul.f32 %v4642, %v5514
      %v5559 = vmul.f32 %v4643, %v5514
      %v5560 = vmul.f32 %v4644, %v5514
      %v5561 = vmul.f32 %v4645, %v5514
      %v5562 = vmul.f32 %v4646, %v5514
      %v5563 = vmul.f32 %v4647, %v5514
      %v5612 = vrot.slane %v5516, 2
      %v5613 = vrot.slane %v5517, 2
      %v5614 = vsel %vm5043, %v5612, %v5613
      %v5615 = vrot.slane %v5518, 2
      %v5616 = vsel %vm5043, %v5613, %v5615
      %v5617 = vrot.slane %v5519, 2
      %v5618 = vrot.slane %v5520, 2
      %v5619 = vsel %vm5043, %v5617, %v5618
      %v5620 = vrot.slane %v5521, 2
      %v5621 = vsel %vm5043, %v5618, %v5620
      %v5622 = vrot.slane %v5522, 2
      %v5623 = vrot.slane %v5523, 2
      %v5624 = vsel %vm5043, %v5622, %v5623
      %v5625 = vrot.slane %v5524, 2
      %v5626 = vsel %vm5043, %v5623, %v5625
      %v5627 = vrot.slane %v5525, 2
      %v5628 = vrot.slane %v5526, 2
      %v5629 = vsel %vm5043, %v5627, %v5628
      %v5630 = vrot.slane %v5527, 2
      %v5631 = vsel %vm5043, %v5628, %v5630
      %v5632 = vrot.slane %v5528, 2
      %v5633 = vrot.slane %v5529, 2
      %v5634 = vsel %vm5043, %v5632, %v5633
      %v5635 = vrot.slane %v5530, 2
      %v5636 = vsel %vm5043, %v5633, %v5635
      %v5637 = vrot.slane %v5531, 2
      %v5638 = vrot.slane %v5532, 2
      %v5639 = vsel %vm5043, %v5637, %v5638
      %v5640 = vrot.slane %v5533, 2
      %v5641 = vsel %vm5043, %v5638, %v5640
      %v5642 = vrot.slane %v5534, 2
      %v5643 = vrot.slane %v5535, 2
      %v5644 = vsel %vm5043, %v5642, %v5643
      %v5645 = vrot.slane %v5536, 2
      %v5646 = vsel %vm5043, %v5643, %v5645
      %v5647 = vrot.slane %v5537, 2
      %v5648 = vrot.slane %v5538, 2
      %v5649 = vsel %vm5043, %v5647, %v5648
      %v5650 = vrot.slane %v5539, 2
      %v5651 = vsel %vm5043, %v5648, %v5650
      %v5652 = vrot.slane %v5540, 2
      %v5653 = vrot.slane %v5541, 2
      %v5654 = vsel %vm5043, %v5652, %v5653
      %v5655 = vrot.slane %v5542, 2
      %v5656 = vsel %vm5043, %v5653, %v5655
      %v5657 = vrot.slane %v5543, 2
      %v5658 = vrot.slane %v5544, 2
      %v5659 = vsel %vm5043, %v5657, %v5658
      %v5660 = vrot.slane %v5545, 2
      %v5661 = vsel %vm5043, %v5658, %v5660
      %v5662 = vrot.slane %v5546, 2
      %v5663 = vrot.slane %v5547, 2
      %v5664 = vsel %vm5043, %v5662, %v5663
      %v5665 = vrot.slane %v5548, 2
      %v5666 = vsel %vm5043, %v5663, %v5665
      %v5667 = vrot.slane %v5549, 2
      %v5668 = vrot.slane %v5550, 2
      %v5669 = vsel %vm5043, %v5667, %v5668
      %v5670 = vrot.slane %v5551, 2
      %v5671 = vsel %vm5043, %v5668, %v5670
      %v5672 = vrot.slane %v5552, 2
      %v5673 = vrot.slane %v5553, 2
      %v5674 = vsel %vm5043, %v5672, %v5673
      %v5675 = vrot.slane %v5554, 2
      %v5676 = vsel %vm5043, %v5673, %v5675
      %v5677 = vrot.slane %v5555, 2
      %v5678 = vrot.slane %v5556, 2
      %v5679 = vsel %vm5043, %v5677, %v5678
      %v5680 = vrot.slane %v5557, 2
      %v5681 = vsel %vm5043, %v5678, %v5680
      %v5682 = vrot.slane %v5558, 2
      %v5683 = vrot.slane %v5559, 2
      %v5684 = vsel %vm5043, %v5682, %v5683
      %v5685 = vrot.slane %v5560, 2
      %v5686 = vsel %vm5043, %v5683, %v5685
      %v5687 = vrot.slane %v5561, 2
      %v5688 = vrot.slane %v5562, 2
      %v5689 = vsel %vm5043, %v5687, %v5688
      %v5690 = vrot.slane %v5563, 2
      %v5691 = vsel %vm5043, %v5688, %v5690
      %v5724 = vadd.f32 %v5476, %v5614
      %v5725 = vadd.f32 %v5477, %v5616
      %v5726 = vadd.f32 %v5478, %v5619
      %v5727 = vadd.f32 %v5479, %v5621
      %v5728 = vadd.f32 %v5480, %v5624
      %v5729 = vadd.f32 %v5481, %v5626
      %v5730 = vadd.f32 %v5482, %v5629
      %v5731 = vadd.f32 %v5483, %v5631
      %v5732 = vadd.f32 %v5484, %v5634
      %v5733 = vadd.f32 %v5485, %v5636
      %v5734 = vadd.f32 %v5486, %v5639
      %v5735 = vadd.f32 %v5487, %v5641
      %v5736 = vadd.f32 %v5488, %v5644
      %v5737 = vadd.f32 %v5489, %v5646
      %v5738 = vadd.f32 %v5490, %v5649
      %v5739 = vadd.f32 %v5491, %v5651
      %v5740 = vadd.f32 %v5492, %v5654
      %v5741 = vadd.f32 %v5493, %v5656
      %v5742 = vadd.f32 %v5494, %v5659
      %v5743 = vadd.f32 %v5495, %v5661
      %v5744 = vadd.f32 %v5496, %v5664
      %v5745 = vadd.f32 %v5497, %v5666
      %v5746 = vadd.f32 %v5498, %v5669
      %v5747 = vadd.f32 %v5499, %v5671
      %v5748 = vadd.f32 %v5500, %v5674
      %v5749 = vadd.f32 %v5501, %v5676
      %v5750 = vadd.f32 %v5502, %v5679
      %v5751 = vadd.f32 %v5503, %v5681
      %v5752 = vadd.f32 %v5504, %v5684
      %v5753 = vadd.f32 %v5505, %v5686
      %v5754 = vadd.f32 %v5506, %v5689
      %v5755 = vadd.f32 %v5507, %v5691
      %s5756 = scalar_lea.vmem %s3, 6
      %v5757 = vld [vmem:[%s5756] sm:$0x1]
      %v5759 = vlaneseq
      %v5760 = vshrl.u32 %v5759, 7
      %v5761 = vsub.s32 0, %v5760
      %v5762 = vrot.slane %v5757, %v5761
      %v5764 = vmul.f32 %v4603, %v5762
      %v5765 = vmul.f32 %v4604, %v5762
      %v5766 = vmul.f32 %v4606, %v5762
      %v5767 = vmul.f32 %v4607, %v5762
      %v5768 = vmul.f32 %v4609, %v5762
      %v5769 = vmul.f32 %v4610, %v5762
      %v5770 = vmul.f32 %v4612, %v5762
      %v5771 = vmul.f32 %v4613, %v5762
      %v5772 = vmul.f32 %v4615, %v5762
      %v5773 = vmul.f32 %v4616, %v5762
      %v5774 = vmul.f32 %v4618, %v5762
      %v5775 = vmul.f32 %v4619, %v5762
      %v5776 = vmul.f32 %v4621, %v5762
      %v5777 = vmul.f32 %v4622, %v5762
      %v5778 = vmul.f32 %v4624, %v5762
      %v5779 = vmul.f32 %v4625, %v5762
      %v5780 = vmul.f32 %v4627, %v5762
      %v5781 = vmul.f32 %v4628, %v5762
      %v5782 = vmul.f32 %v4630, %v5762
      %v5783 = vmul.f32 %v4631, %v5762
      %v5784 = vmul.f32 %v4633, %v5762
      %v5785 = vmul.f32 %v4634, %v5762
      %v5786 = vmul.f32 %v4636, %v5762
      %v5787 = vmul.f32 %v4637, %v5762
      %v5788 = vmul.f32 %v4639, %v5762
      %v5789 = vmul.f32 %v4640, %v5762
      %v5790 = vmul.f32 %v4642, %v5762
      %v5791 = vmul.f32 %v4643, %v5762
      %v5792 = vmul.f32 %v4645, %v5762
      %v5793 = vmul.f32 %v4646, %v5762
      %v5794 = vmul.f32 %v4648, %v5762
      %v5795 = vmul.f32 %v4649, %v5762
      %v5796 = vadd.f32 %v5724, %v5764
      %v5797 = vadd.f32 %v5725, %v5765
      %v5798 = vadd.f32 %v5726, %v5766
      %v5799 = vadd.f32 %v5727, %v5767
      %v5800 = vadd.f32 %v5728, %v5768
      %v5801 = vadd.f32 %v5729, %v5769
      %v5802 = vadd.f32 %v5730, %v5770
      %v5803 = vadd.f32 %v5731, %v5771
      %v5804 = vadd.f32 %v5732, %v5772
      %v5805 = vadd.f32 %v5733, %v5773
      %v5806 = vadd.f32 %v5734, %v5774
      %v5807 = vadd.f32 %v5735, %v5775
      %v5808 = vadd.f32 %v5736, %v5776
      %v5809 = vadd.f32 %v5737, %v5777
      %v5810 = vadd.f32 %v5738, %v5778
      %v5811 = vadd.f32 %v5739, %v5779
      %v5812 = vadd.f32 %v5740, %v5780
      %v5813 = vadd.f32 %v5741, %v5781
      %v5814 = vadd.f32 %v5742, %v5782
      %v5815 = vadd.f32 %v5743, %v5783
      %v5816 = vadd.f32 %v5744, %v5784
      %v5817 = vadd.f32 %v5745, %v5785
      %v5818 = vadd.f32 %v5746, %v5786
      %v5819 = vadd.f32 %v5747, %v5787
      %v5820 = vadd.f32 %v5748, %v5788
      %v5821 = vadd.f32 %v5749, %v5789
      %v5822 = vadd.f32 %v5750, %v5790
      %v5823 = vadd.f32 %v5751, %v5791
      %v5824 = vadd.f32 %v5752, %v5792
      %v5825 = vadd.f32 %v5753, %v5793
      %v5826 = vadd.f32 %v5754, %v5794
      %v5827 = vadd.f32 %v5755, %v5795
      %s5828 = scalar_lea.vmem %s3, 7
      %v5829 = vld [vmem:[%s5828] sm:$0x1]
      %v5831 = vlaneseq
      %v5832 = vshrl.u32 %v5831, 7
      %v5833 = vsub.s32 0, %v5832
      %v5834 = vrot.slane %v5829, %v5833
      %v5836 = vmul.f32 %v4603, %v5834
      %v5837 = vmul.f32 %v4604, %v5834
      %v5838 = vmul.f32 %v4605, %v5834
      %v5839 = vmul.f32 %v4606, %v5834
      %v5840 = vmul.f32 %v4607, %v5834
      %v5841 = vmul.f32 %v4608, %v5834
      %v5842 = vmul.f32 %v4609, %v5834
      %v5843 = vmul.f32 %v4610, %v5834
      %v5844 = vmul.f32 %v4611, %v5834
      %v5845 = vmul.f32 %v4612, %v5834
      %v5846 = vmul.f32 %v4613, %v5834
      %v5847 = vmul.f32 %v4614, %v5834
      %v5848 = vmul.f32 %v4615, %v5834
      %v5849 = vmul.f32 %v4616, %v5834
      %v5850 = vmul.f32 %v4617, %v5834
      %v5851 = vmul.f32 %v4618, %v5834
      %v5852 = vmul.f32 %v4619, %v5834
      %v5853 = vmul.f32 %v4620, %v5834
      %v5854 = vmul.f32 %v4621, %v5834
      %v5855 = vmul.f32 %v4622, %v5834
      %v5856 = vmul.f32 %v4623, %v5834
      %v5857 = vmul.f32 %v4624, %v5834
      %v5858 = vmul.f32 %v4625, %v5834
      %v5859 = vmul.f32 %v4626, %v5834
      %v5860 = vmul.f32 %v4627, %v5834
      %v5861 = vmul.f32 %v4628, %v5834
      %v5862 = vmul.f32 %v4629, %v5834
      %v5863 = vmul.f32 %v4630, %v5834
      %v5864 = vmul.f32 %v4631, %v5834
      %v5865 = vmul.f32 %v4632, %v5834
      %v5866 = vmul.f32 %v4633, %v5834
      %v5867 = vmul.f32 %v4634, %v5834
      %v5868 = vmul.f32 %v4635, %v5834
      %v5869 = vmul.f32 %v4636, %v5834
      %v5870 = vmul.f32 %v4637, %v5834
      %v5871 = vmul.f32 %v4638, %v5834
      %v5872 = vmul.f32 %v4639, %v5834
      %v5873 = vmul.f32 %v4640, %v5834
      %v5874 = vmul.f32 %v4641, %v5834
      %v5875 = vmul.f32 %v4642, %v5834
      %v5876 = vmul.f32 %v4643, %v5834
      %v5877 = vmul.f32 %v4644, %v5834
      %v5878 = vmul.f32 %v4645, %v5834
      %v5879 = vmul.f32 %v4646, %v5834
      %v5880 = vmul.f32 %v4647, %v5834
      %v5881 = vmul.f32 %v4648, %v5834
      %v5882 = vmul.f32 %v4649, %v5834
      %v5883 = vmul.f32 %v4650, %v5834
      %v5932 = vrot.slane %v5836, 1
      %v5933 = vrot.slane %v5837, 1
      %v5934 = vsel %vm4794, %v5932, %v5933
      %v5935 = vrot.slane %v5838, 1
      %v5936 = vsel %vm4794, %v5933, %v5935
      %v5937 = vrot.slane %v5839, 1
      %v5938 = vrot.slane %v5840, 1
      %v5939 = vsel %vm4794, %v5937, %v5938
      %v5940 = vrot.slane %v5841, 1
      %v5941 = vsel %vm4794, %v5938, %v5940
      %v5942 = vrot.slane %v5842, 1
      %v5943 = vrot.slane %v5843, 1
      %v5944 = vsel %vm4794, %v5942, %v5943
      %v5945 = vrot.slane %v5844, 1
      %v5946 = vsel %vm4794, %v5943, %v5945
      %v5947 = vrot.slane %v5845, 1
      %v5948 = vrot.slane %v5846, 1
      %v5949 = vsel %vm4794, %v5947, %v5948
      %v5950 = vrot.slane %v5847, 1
      %v5951 = vsel %vm4794, %v5948, %v5950
      %v5952 = vrot.slane %v5848, 1
      %v5953 = vrot.slane %v5849, 1
      %v5954 = vsel %vm4794, %v5952, %v5953
      %v5955 = vrot.slane %v5850, 1
      %v5956 = vsel %vm4794, %v5953, %v5955
      %v5957 = vrot.slane %v5851, 1
      %v5958 = vrot.slane %v5852, 1
      %v5959 = vsel %vm4794, %v5957, %v5958
      %v5960 = vrot.slane %v5853, 1
      %v5961 = vsel %vm4794, %v5958, %v5960
      %v5962 = vrot.slane %v5854, 1
      %v5963 = vrot.slane %v5855, 1
      %v5964 = vsel %vm4794, %v5962, %v5963
      %v5965 = vrot.slane %v5856, 1
      %v5966 = vsel %vm4794, %v5963, %v5965
      %v5967 = vrot.slane %v5857, 1
      %v5968 = vrot.slane %v5858, 1
      %v5969 = vsel %vm4794, %v5967, %v5968
      %v5970 = vrot.slane %v5859, 1
      %v5971 = vsel %vm4794, %v5968, %v5970
      %v5972 = vrot.slane %v5860, 1
      %v5973 = vrot.slane %v5861, 1
      %v5974 = vsel %vm4794, %v5972, %v5973
      %v5975 = vrot.slane %v5862, 1
      %v5976 = vsel %vm4794, %v5973, %v5975
      %v5977 = vrot.slane %v5863, 1
      %v5978 = vrot.slane %v5864, 1
      %v5979 = vsel %vm4794, %v5977, %v5978
      %v5980 = vrot.slane %v5865, 1
      %v5981 = vsel %vm4794, %v5978, %v5980
      %v5982 = vrot.slane %v5866, 1
      %v5983 = vrot.slane %v5867, 1
      %v5984 = vsel %vm4794, %v5982, %v5983
      %v5985 = vrot.slane %v5868, 1
      %v5986 = vsel %vm4794, %v5983, %v5985
      %v5987 = vrot.slane %v5869, 1
      %v5988 = vrot.slane %v5870, 1
      %v5989 = vsel %vm4794, %v5987, %v5988
      %v5990 = vrot.slane %v5871, 1
      %v5991 = vsel %vm4794, %v5988, %v5990
      %v5992 = vrot.slane %v5872, 1
      %v5993 = vrot.slane %v5873, 1
      %v5994 = vsel %vm4794, %v5992, %v5993
      %v5995 = vrot.slane %v5874, 1
      %v5996 = vsel %vm4794, %v5993, %v5995
      %v5997 = vrot.slane %v5875, 1
      %v5998 = vrot.slane %v5876, 1
      %v5999 = vsel %vm4794, %v5997, %v5998
      %v6000 = vrot.slane %v5877, 1
      %v6001 = vsel %vm4794, %v5998, %v6000
      %v6002 = vrot.slane %v5878, 1
      %v6003 = vrot.slane %v5879, 1
      %v6004 = vsel %vm4794, %v6002, %v6003
      %v6005 = vrot.slane %v5880, 1
      %v6006 = vsel %vm4794, %v6003, %v6005
      %v6007 = vrot.slane %v5881, 1
      %v6008 = vrot.slane %v5882, 1
      %v6009 = vsel %vm4794, %v6007, %v6008
      %v6010 = vrot.slane %v5883, 1
      %v6011 = vsel %vm4794, %v6008, %v6010
      %v6044 = vadd.f32 %v5796, %v5934
      %v6045 = vadd.f32 %v5797, %v5936
      %v6046 = vadd.f32 %v5798, %v5939
      %v6047 = vadd.f32 %v5799, %v5941
      %v6048 = vadd.f32 %v5800, %v5944
      %v6049 = vadd.f32 %v5801, %v5946
      %v6050 = vadd.f32 %v5802, %v5949
      %v6051 = vadd.f32 %v5803, %v5951
      %v6052 = vadd.f32 %v5804, %v5954
      %v6053 = vadd.f32 %v5805, %v5956
      %v6054 = vadd.f32 %v5806, %v5959
      %v6055 = vadd.f32 %v5807, %v5961
      %v6056 = vadd.f32 %v5808, %v5964
      %v6057 = vadd.f32 %v5809, %v5966
      %v6058 = vadd.f32 %v5810, %v5969
      %v6059 = vadd.f32 %v5811, %v5971
      %v6060 = vadd.f32 %v5812, %v5974
      %v6061 = vadd.f32 %v5813, %v5976
      %v6062 = vadd.f32 %v5814, %v5979
      %v6063 = vadd.f32 %v5815, %v5981
      %v6064 = vadd.f32 %v5816, %v5984
      %v6065 = vadd.f32 %v5817, %v5986
      %v6066 = vadd.f32 %v5818, %v5989
      %v6067 = vadd.f32 %v5819, %v5991
      %v6068 = vadd.f32 %v5820, %v5994
      %v6069 = vadd.f32 %v5821, %v5996
      %v6070 = vadd.f32 %v5822, %v5999
      %v6071 = vadd.f32 %v5823, %v6001
      %v6072 = vadd.f32 %v5824, %v6004
      %v6073 = vadd.f32 %v5825, %v6006
      %v6074 = vadd.f32 %v5826, %v6009
      %v6075 = vadd.f32 %v5827, %v6011
      %s6076 = scalar_lea.vmem %s3, 8
      %v6077 = vld [vmem:[%s6076] sm:$0x1]
      %v6079 = vlaneseq
      %v6080 = vshrl.u32 %v6079, 7
      %v6081 = vsub.s32 0, %v6080
      %v6082 = vrot.slane %v6077, %v6081
      %v6084 = vmul.f32 %v4603, %v6082
      %v6085 = vmul.f32 %v4604, %v6082
      %v6086 = vmul.f32 %v4605, %v6082
      %v6087 = vmul.f32 %v4606, %v6082
      %v6088 = vmul.f32 %v4607, %v6082
      %v6089 = vmul.f32 %v4608, %v6082
      %v6090 = vmul.f32 %v4609, %v6082
      %v6091 = vmul.f32 %v4610, %v6082
      %v6092 = vmul.f32 %v4611, %v6082
      %v6093 = vmul.f32 %v4612, %v6082
      %v6094 = vmul.f32 %v4613, %v6082
      %v6095 = vmul.f32 %v4614, %v6082
      %v6096 = vmul.f32 %v4615, %v6082
      %v6097 = vmul.f32 %v4616, %v6082
      %v6098 = vmul.f32 %v4617, %v6082
      %v6099 = vmul.f32 %v4618, %v6082
      %v6100 = vmul.f32 %v4619, %v6082
      %v6101 = vmul.f32 %v4620, %v6082
      %v6102 = vmul.f32 %v4621, %v6082
      %v6103 = vmul.f32 %v4622, %v6082
      %v6104 = vmul.f32 %v4623, %v6082
      %v6105 = vmul.f32 %v4624, %v6082
      %v6106 = vmul.f32 %v4625, %v6082
      %v6107 = vmul.f32 %v4626, %v6082
      %v6108 = vmul.f32 %v4627, %v6082
      %v6109 = vmul.f32 %v4628, %v6082
      %v6110 = vmul.f32 %v4629, %v6082
      %v6111 = vmul.f32 %v4630, %v6082
      %v6112 = vmul.f32 %v4631, %v6082
      %v6113 = vmul.f32 %v4632, %v6082
      %v6114 = vmul.f32 %v4633, %v6082
      %v6115 = vmul.f32 %v4634, %v6082
      %v6116 = vmul.f32 %v4635, %v6082
      %v6117 = vmul.f32 %v4636, %v6082
      %v6118 = vmul.f32 %v4637, %v6082
      %v6119 = vmul.f32 %v4638, %v6082
      %v6120 = vmul.f32 %v4639, %v6082
      %v6121 = vmul.f32 %v4640, %v6082
      %v6122 = vmul.f32 %v4641, %v6082
      %v6123 = vmul.f32 %v4642, %v6082
      %v6124 = vmul.f32 %v4643, %v6082
      %v6125 = vmul.f32 %v4644, %v6082
      %v6126 = vmul.f32 %v4645, %v6082
      %v6127 = vmul.f32 %v4646, %v6082
      %v6128 = vmul.f32 %v4647, %v6082
      %v6129 = vmul.f32 %v4648, %v6082
      %v6130 = vmul.f32 %v4649, %v6082
      %v6131 = vmul.f32 %v4650, %v6082
      %v6180 = vrot.slane %v6084, 2
      %v6181 = vrot.slane %v6085, 2
      %v6182 = vsel %vm5043, %v6180, %v6181
      %v6183 = vrot.slane %v6086, 2
      %v6184 = vsel %vm5043, %v6181, %v6183
      %v6185 = vrot.slane %v6087, 2
      %v6186 = vrot.slane %v6088, 2
      %v6187 = vsel %vm5043, %v6185, %v6186
      %v6188 = vrot.slane %v6089, 2
      %v6189 = vsel %vm5043, %v6186, %v6188
      %v6190 = vrot.slane %v6090, 2
      %v6191 = vrot.slane %v6091, 2
      %v6192 = vsel %vm5043, %v6190, %v6191
      %v6193 = vrot.slane %v6092, 2
      %v6194 = vsel %vm5043, %v6191, %v6193
      %v6195 = vrot.slane %v6093, 2
      %v6196 = vrot.slane %v6094, 2
      %v6197 = vsel %vm5043, %v6195, %v6196
      %v6198 = vrot.slane %v6095, 2
      %v6199 = vsel %vm5043, %v6196, %v6198
      %v6200 = vrot.slane %v6096, 2
      %v6201 = vrot.slane %v6097, 2
      %v6202 = vsel %vm5043, %v6200, %v6201
      %v6203 = vrot.slane %v6098, 2
      %v6204 = vsel %vm5043, %v6201, %v6203
      %v6205 = vrot.slane %v6099, 2
      %v6206 = vrot.slane %v6100, 2
      %v6207 = vsel %vm5043, %v6205, %v6206
      %v6208 = vrot.slane %v6101, 2
      %v6209 = vsel %vm5043, %v6206, %v6208
      %v6210 = vrot.slane %v6102, 2
      %v6211 = vrot.slane %v6103, 2
      %v6212 = vsel %vm5043, %v6210, %v6211
      %v6213 = vrot.slane %v6104, 2
      %v6214 = vsel %vm5043, %v6211, %v6213
      %v6215 = vrot.slane %v6105, 2
      %v6216 = vrot.slane %v6106, 2
      %v6217 = vsel %vm5043, %v6215, %v6216
      %v6218 = vrot.slane %v6107, 2
      %v6219 = vsel %vm5043, %v6216, %v6218
      %v6220 = vrot.slane %v6108, 2
      %v6221 = vrot.slane %v6109, 2
      %v6222 = vsel %vm5043, %v6220, %v6221
      %v6223 = vrot.slane %v6110, 2
      %v6224 = vsel %vm5043, %v6221, %v6223
      %v6225 = vrot.slane %v6111, 2
      %v6226 = vrot.slane %v6112, 2
      %v6227 = vsel %vm5043, %v6225, %v6226
      %v6228 = vrot.slane %v6113, 2
      %v6229 = vsel %vm5043, %v6226, %v6228
      %v6230 = vrot.slane %v6114, 2
      %v6231 = vrot.slane %v6115, 2
      %v6232 = vsel %vm5043, %v6230, %v6231
      %v6233 = vrot.slane %v6116, 2
      %v6234 = vsel %vm5043, %v6231, %v6233
      %v6235 = vrot.slane %v6117, 2
      %v6236 = vrot.slane %v6118, 2
      %v6237 = vsel %vm5043, %v6235, %v6236
      %v6238 = vrot.slane %v6119, 2
      %v6239 = vsel %vm5043, %v6236, %v6238
      %v6240 = vrot.slane %v6120, 2
      %v6241 = vrot.slane %v6121, 2
      %v6242 = vsel %vm5043, %v6240, %v6241
      %v6243 = vrot.slane %v6122, 2
      %v6244 = vsel %vm5043, %v6241, %v6243
      %v6245 = vrot.slane %v6123, 2
      %v6246 = vrot.slane %v6124, 2
      %v6247 = vsel %vm5043, %v6245, %v6246
      %v6248 = vrot.slane %v6125, 2
      %v6249 = vsel %vm5043, %v6246, %v6248
      %v6250 = vrot.slane %v6126, 2
      %v6251 = vrot.slane %v6127, 2
      %v6252 = vsel %vm5043, %v6250, %v6251
      %v6253 = vrot.slane %v6128, 2
      %v6254 = vsel %vm5043, %v6251, %v6253
      %v6255 = vrot.slane %v6129, 2
      %v6256 = vrot.slane %v6130, 2
      %v6257 = vsel %vm5043, %v6255, %v6256
      %v6258 = vrot.slane %v6131, 2
      %v6259 = vsel %vm5043, %v6256, %v6258
      %v6292 = vadd.f32 %v6044, %v6182
      %v6293 = vadd.f32 %v6045, %v6184
      %v6294 = vadd.f32 %v6046, %v6187
      %v6295 = vadd.f32 %v6047, %v6189
      %v6296 = vadd.f32 %v6048, %v6192
      %v6297 = vadd.f32 %v6049, %v6194
      %v6298 = vadd.f32 %v6050, %v6197
      %v6299 = vadd.f32 %v6051, %v6199
      %v6300 = vadd.f32 %v6052, %v6202
      %v6301 = vadd.f32 %v6053, %v6204
      %v6302 = vadd.f32 %v6054, %v6207
      %v6303 = vadd.f32 %v6055, %v6209
      %v6304 = vadd.f32 %v6056, %v6212
      %v6305 = vadd.f32 %v6057, %v6214
      %v6306 = vadd.f32 %v6058, %v6217
      %v6307 = vadd.f32 %v6059, %v6219
      %v6308 = vadd.f32 %v6060, %v6222
      %v6309 = vadd.f32 %v6061, %v6224
      %v6310 = vadd.f32 %v6062, %v6227
      %v6311 = vadd.f32 %v6063, %v6229
      %v6312 = vadd.f32 %v6064, %v6232
      %v6313 = vadd.f32 %v6065, %v6234
      %v6314 = vadd.f32 %v6066, %v6237
      %v6315 = vadd.f32 %v6067, %v6239
      %v6316 = vadd.f32 %v6068, %v6242
      %v6317 = vadd.f32 %v6069, %v6244
      %v6318 = vadd.f32 %v6070, %v6247
      %v6319 = vadd.f32 %v6071, %v6249
      %v6320 = vadd.f32 %v6072, %v6252
      %v6321 = vadd.f32 %v6073, %v6254
      %v6322 = vadd.f32 %v6074, %v6257
      %v6323 = vadd.f32 %v6075, %v6259
      %vm6324 = vcmask 64512
      %6325 = vst.msk [vmem:[%s197] sm:$0xff] %vm6324, %v6292
      %6326 = vst.msk [vmem:[%s197 + $0x8] sm:$0xff] %vm6324, %v6293
      %6327 = vst.msk [vmem:[%s197 + $0x10] sm:$0xff] %vm6324, %v6294
      %6328 = vst.msk [vmem:[%s197 + $0x18] sm:$0xff] %vm6324, %v6295
      %6329 = vst.msk [vmem:[%s197 + $0x20] sm:$0xff] %vm6324, %v6296
      %6330 = vst.msk [vmem:[%s197 + $0x28] sm:$0xff] %vm6324, %v6297
      %6331 = vst.msk [vmem:[%s197 + $0x30] sm:$0xff] %vm6324, %v6298
      %6332 = vst.msk [vmem:[%s197 + $0x38] sm:$0xff] %vm6324, %v6299
      %6333 = vst.msk [vmem:[%s197 + $0x40] sm:$0xff] %vm6324, %v6300
      %6334 = vst.msk [vmem:[%s197 + $0x48] sm:$0xff] %vm6324, %v6301
      %6335 = vst.msk [vmem:[%s197 + $0x50] sm:$0xff] %vm6324, %v6302
      %6336 = vst.msk [vmem:[%s197 + $0x58] sm:$0xff] %vm6324, %v6303
      %6337 = vst.msk [vmem:[%s197 + $0x60] sm:$0xff] %vm6324, %v6304
      %6338 = vst.msk [vmem:[%s197 + $0x68] sm:$0xff] %vm6324, %v6305
      %6339 = vst.msk [vmem:[%s197 + $0x70] sm:$0xff] %vm6324, %v6306
      %6340 = vst.msk [vmem:[%s197 + $0x78] sm:$0xff] %vm6324, %v6307
      %6341 = vst.msk [vmem:[%s197 + $0x80] sm:$0xff] %vm6324, %v6308
      %6342 = vst.msk [vmem:[%s197 + $0x88] sm:$0xff] %vm6324, %v6309
      %6343 = vst.msk [vmem:[%s197 + $0x90] sm:$0xff] %vm6324, %v6310
      %6344 = vst.msk [vmem:[%s197 + $0x98] sm:$0xff] %vm6324, %v6311
      %6345 = vst.msk [vmem:[%s197 + $0xa0] sm:$0xff] %vm6324, %v6312
      %6346 = vst.msk [vmem:[%s197 + $0xa8] sm:$0xff] %vm6324, %v6313
      %6347 = vst.msk [vmem:[%s197 + $0xb0] sm:$0xff] %vm6324, %v6314
      %6348 = vst.msk [vmem:[%s197 + $0xb8] sm:$0xff] %vm6324, %v6315
      %6349 = vst.msk [vmem:[%s197 + $0xc0] sm:$0xff] %vm6324, %v6316
      %6350 = vst.msk [vmem:[%s197 + $0xc8] sm:$0xff] %vm6324, %v6317
      %6351 = vst.msk [vmem:[%s197 + $0xd0] sm:$0xff] %vm6324, %v6318
      %6352 = vst.msk [vmem:[%s197 + $0xd8] sm:$0xff] %vm6324, %v6319
      %6353 = vst.msk [vmem:[%s197 + $0xe0] sm:$0xff] %vm6324, %v6320
      %6354 = vst.msk [vmem:[%s197 + $0xe8] sm:$0xff] %vm6324, %v6321
      %6355 = vst.msk [vmem:[%s197 + $0xf0] sm:$0xff] %vm6324, %v6322
      %6356 = vst.msk [vmem:[%s197 + $0xf8] sm:$0xff] %vm6324, %v6323
      %p6357 = scmp.lt.s32.totalorder %s15, 1
      %s6358 = scalar_select %p6357, %s15, 1
      %s6359 = smul.addr %s6358, 32
      %s6360 = smul.addr %s6359, 8
      %s6361 = scalar_lea.vmem %s4, %s6360
      // Predicated region
      $region37: #{tpu_custom_call.1} parent=35 // pred_check
        %p6362 = pneg %p122
      $region38: #{tpu_custom_call.1} parent=35 // pred_check_branch
        %6364 = sbr.rel (%p6362) target = $region40
      $region39: #{tpu_custom_call.1} parent=35 // pred_region
        _
      $region40: #{tpu_custom_call.1} parent=35 // pred_fallthru
        _
    $region36: #{tpu_custom_call.1} parent=5 // pred_fallthru
      _
    %p6365 = scmp.le.s32.totalorder 2, %s10
    // Predicated region
    $region41: #{tpu_custom_call.1} parent=5 // pred_check
      %p6366 = pneg %p6365
    $region42: #{tpu_custom_call.1} parent=5 // pred_check_branch
      %6368 = sbr.rel (%p6366) target = $region44
    $region43: #{tpu_custom_call.1} parent=5 // pred_region
      %s6369 = ssub.s32 %s10, 2
      // Predicated region
      $region45: #{tpu_custom_call.1} parent=43 // pred_check
        %p6370 = pneg %p128
      $region46: #{tpu_custom_call.1} parent=43 // pred_check_branch
        %6372 = sbr.rel (%p6370) target = $region48
      $region47: #{tpu_custom_call.1} parent=43 // pred_region
        %p6373 = scmp.lt.s32.totalorder %s16, 1
        %s6374 = scalar_select %p6373, %s16, 1
        %s6375 = smul.addr %s6374, 32
        %s6376 = smul.addr %s6375, 8
        %s6377 = scalar_lea.vmem %s4, %s6376
      $region48: #{tpu_custom_call.1} parent=43 // pred_fallthru
        _
    $region44: #{tpu_custom_call.1} parent=5 // pred_fallthru
      _
  $region6: #{tpu_custom_call.1} parent=0 // loop_footer
    %s14 = sadd.s32 1, %s10
  $region7: #{tpu_custom_call.1} parent=0 // loop_footer_branch
    %9 = sbr.rel target = $region3
  $region8: #{tpu_custom_call.1} parent=0 // loop_exit
    _

</llo_original>
